<compile_context>
chip_gen: v7x
topology: tpu7x:2x2x1
jax: 0.10.0
libtpu: 0.0.40
codegen_flags: <defaults>
</compile_context>

<pallas_src>
import functools

import jax
import jax.numpy as jnp
from jax import lax
from jax.experimental import pallas as pl
from jax.experimental.pallas import tpu as pltpu


_VMEM_LIMIT = 32 * 1024 * 1024   # raise v5e's 16 MiB scoped default; no-op on v6e/v7x
_LANE_TILE_CAP = 4096            # lanes per tile; <= ~3.2 MB/buffer at K <= 400 (bf16)


# ----------------------------------------------------------------------------
# Pallas kernels (all lane-dense: pixels / samples on the 128-lane axis)
# ----------------------------------------------------------------------------
def _conv_pool_kernel(w_ref, a_ref, b_ref, o_ref):
    """o = maxpool2x2(relu(conv(x) + b)) as ONE block-diagonal MXU dot.

    w_ref: (4*Cpad, 4*K) bf16 block-diag weight (K = k*k*Cin, Cpad = Cout padded to 8/16)
    a_ref: (4*K, Mt)     bf16 pool-phase-grouped im2col columns
    b_ref: (Cpad, 1)     f32  bias
    o_ref: (Cout, Mt)    bf16 (lane-dense store)
    """
    z = jnp.dot(w_ref[...], a_ref[...], preferred_element_type=jnp.float32)
    cpad = b_ref.shape[0]
    z = z.reshape(4, cpad, z.shape[-1])            # aligned split (Cpad multiple of 8)
    m = jnp.maximum(jnp.maximum(z[0], z[1]), jnp.maximum(z[2], z[3]))
    m = jnp.maximum(m + b_ref[...], 0.0)           # relu(max+b) == maxpool(relu(.+b))
    o_ref[...] = m[: o_ref.shape[0]].astype(o_ref.dtype)


def _mlp_dec1_kernel(x_ref, w1_ref, b1_ref, w2_ref, b2_ref,
                     wd_ref, sd_ref, td_ref, o_ref):
    """fc1 -> ReLU -> fc2 -> deconv1(1x1 spatial input) -> BN1 -> ReLU.

    Columns are batch samples (lane axis); 3 MXU dots, everything VMEM-resident.
    """
    h = jnp.dot(w1_ref[...], x_ref[...], preferred_element_type=jnp.float32)
    h = jnp.maximum(h + b1_ref[...], 0.0)
    y = jnp.dot(w2_ref[...], h.astype(w2_ref.dtype),
                preferred_element_type=jnp.float32) + b2_ref[...]
    d = jnp.dot(wd_ref[...], y.astype(wd_ref.dtype),
                preferred_element_type=jnp.float32)
    d = d * sd_ref[...] + td_ref[...]
    o_ref[...] = jnp.maximum(d, 0.0).astype(o_ref.dtype)


def _mm_kernel(*refs, act, affine):
    """o = act((W @ A) [* scale + shift]); W (Cout, K), A (K, Mt), o (Cout, Mt)."""
    w_ref, a_ref = refs[0], refs[1]
    z = jnp.dot(w_ref[...], a_ref[...], preferred_element_type=jnp.float32)
    if affine:
        z = z * refs[2][...] + refs[3][...]
    if act == "relu":
        z = jnp.maximum(z, 0.0)
    elif act == "tanh":
        z = jnp.tanh(z)
    refs[-1][...] = z.astype(refs[-1].dtype)


# ----------------------------------------------------------------------------
# pallas_call wrapper: lane-tiled M-parallel grid (megacore + pipelining)
# ----------------------------------------------------------------------------
def _pick_lane_tile(m, cap=_LANE_TILE_CAP):
    """Largest multiple-of-128 divisor of m that is <= cap (None -> single block)."""
    if m <= cap:
        return None
    t = (cap // 128) * 128
    while t >= 128:
        if m % t == 0:
            return t
        t -= 128
    return None


def _full_spec(shape):
    zeros = (0,) * len(shape)
    return pl.BlockSpec(shape, lambda i: zeros)


def _call_lane_tiled(kernel, args, tiled_idx, out_rows, out_dtype):
    """Run kernel(*arg_refs, o_ref).  args[tiled_idx] is (K, M); output is (out_rows, M).

    The lane (M) axis gets an M-parallel grid whenever M has a multiple-of-128
    divisor <= _LANE_TILE_CAP (v7x 2-TC sharding + double-buffered DMA pipelining);
    otherwise one whole-array VMEM block is used with a raised vmem limit.
    (A third pipeline buffer via pipeline_mode=pl.Buffered(3) can be added on the
    tiled A spec if a v6e bundle dump shows exposed DMA waits.)
    """
    m = args[tiled_idx].shape[-1]
    out_shape = jax.ShapeDtypeStruct((out_rows, m), out_dtype)
    tm = _pick_lane_tile(m)
    if tm is None:
        return pl.pallas_call(
            kernel,
            out_shape=out_shape,
            compiler_params=pltpu.CompilerParams(vmem_limit_bytes=_VMEM_LIMIT),
        )(*args)

    in_specs = []
    for j, arr in enumerate(args):
        if j == tiled_idx:
            rows = arr.shape[0]
            in_specs.append(pl.BlockSpec((rows, tm), lambda i: (0, i)))
        else:
            in_specs.append(_full_spec(arr.shape))
    return pl.pallas_call(
        kernel,
        out_shape=out_shape,
        grid=(m // tm,),
        in_specs=in_specs,
        out_specs=pl.BlockSpec((out_rows, tm), lambda i: (0, i)),
        compiler_params=pltpu.CompilerParams(
            dimension_semantics=("parallel",),
            vmem_limit_bytes=_VMEM_LIMIT),
    )(*args)


# ----------------------------------------------------------------------------
# XLA-side im2col: zero-pad + static slices + stack.  No gather, no index arrays.
# TODO(synk): next step per review is fully in-kernel construction (shifted
#             pl.ds row windows) so the k*k-expanded A never touches HBM.
# ----------------------------------------------------------------------------
def _im2col_cm(x, k):
    """Valid kxk im2col of x (C, N, H, W) -> (k*k*C, N*Ho*Wo); rows tap-major, cin-minor."""
    C, N, H, W = x.shape
    Ho, Wo = H - k + 1, W - k + 1
    taps = [x[:, :, di:di + Ho, dj:dj + Wo] for di in range(k) for dj in range(k)]
    a = jnp.stack(taps, axis=0)                      # (kk, C, N, Ho, Wo)
    return a.reshape(k * k * C, N * Ho * Wo)


def _im2col_pool_cm(x, k, pad):
    """im2col for kxk stride-1 conv (zero pad) + 2x2/2 maxpool, phase-grouped rows.

    x (C, N, H, W) -> (4*k*k*C, N*(H//2)*(W//2)); row order (pool phase, tap, cin),
    columns are pooled output pixels (lane axis).
    """
    C, N, H, W = x.shape
    xp = jnp.pad(x, ((0, 0), (0, 0), (pad, pad), (pad, pad)))
    taps = [xp[:, :, di:di + H, dj:dj + W] for di in range(k) for dj in range(k)]
    a = jnp.stack(taps, axis=0)                       # (kk, C, N, H, W)
    a = a.reshape(k * k, C, N, H // 2, 2, W // 2, 2)
    a = a.transpose(4, 6, 0, 1, 2, 3, 5)              # (ph, pw, kk, C, N, H//2, W//2)
    return a.reshape(4 * k * k * C, N * (H // 2) * (W // 2))


def _dilate_pad(x, stride, k, pad):
    """Transposed-conv -> direct-conv transform: zero-dilate spatial dims by `stride`
    and edge-pad by k-1-pad, in a single lax.pad.
    TODO(synk): subpixel/parity decomposition would remove the dilation zeros
                (~4x fewer MACs / A bytes on the stride-2 deconvs)."""
    e = k - 1 - pad
    cfg = [(0, 0, 0), (0, 0, 0), (e, e, stride - 1), (e, e, stride - 1)]
    return lax.pad(x, jnp.zeros((), x.dtype), cfg)


# ----------------------------------------------------------------------------
# Weight preparation (matches the tap-major / cin-minor im2col row order)
# ----------------------------------------------------------------------------
def _conv_w(w):
    """Conv2d weight (Cout, Cin, k, k) -> (Cout, k*k*Cin)."""
    cout, cin, k, _ = w.shape
    return w.transpose(0, 2, 3, 1).reshape(cout, k * k * cin)


def _deconv_w(wt):
    """ConvTranspose2d weight (Cin, Cout, k, k) -> direct-conv weight (Cout, k*k*Cin)."""
    return _conv_w(jnp.flip(wt, (2, 3)).transpose(1, 0, 2, 3))


def _conv_pool_wbd(w, cpad):
    """Block-diagonal weight fusing the 4 maxpool phases into one MXU dot:
    (4*cpad, 4*k*k*Cin) with the (row-padded) conv weight on the diagonal."""
    wm = _conv_w(w)
    cout, kk = wm.shape
    wp = jnp.zeros((cpad, kk), wm.dtype).at[:cout].set(wm)
    return jnp.kron(jnp.eye(4, dtype=wm.dtype), wp).astype(jnp.bfloat16)


def _pad_bias(b, cpad):
    return jnp.zeros((cpad, 1), jnp.float32).at[: b.shape[0], 0].set(
        b.astype(jnp.float32))


def _bn_affine(g, b, m, v, eps=1e-5):
    s = g / jnp.sqrt(v + eps)
    return s, b - m * s


# ----------------------------------------------------------------------------
# Parameters (deterministic synthetic init, shapes from Autoencoder.__init__)
# ----------------------------------------------------------------------------
def init_params(key):
    ks = jax.random.split(key, 24)

    def n(k, shp, fan):
        return (jax.random.normal(k, shp) / (fan ** 0.5)).astype(jnp.float32)

    p = {
        "conv1_w": n(ks[0], (6, 1, 3, 3), 9),
        "conv1_b": 0.1 * n(ks[1], (6,), 1),
        "conv2_w": n(ks[2], (12, 6, 3, 3), 54),
        "conv2_b": 0.1 * n(ks[3], (12,), 1),
        "fc1_w": n(ks[4], (128, 12 * 7 * 7), 588),
        "fc1_b": 0.1 * n(ks[5], (128,), 1),
        "fc2_w": n(ks[6], (10, 128), 128),
        "fc2_b": 0.1 * n(ks[7], (10,), 1),
        "deconv1_w": n(ks[8], (10, 16, 3, 3), 10),
        "deconv2_w": n(ks[9], (16, 8, 5, 5), 100),
        "deconv3_w": n(ks[10], (8, 4, 4, 4), 32),
        "deconv4_w": n(ks[11], (4, 1, 4, 4), 16),
    }
    kb = iter(ks[12:])
    for name, c in (("bn1", 16), ("bn2", 8), ("bn3", 4)):
        p[name + "_g"] = 1.0 + 0.1 * jax.random.normal(next(kb), (c,), jnp.float32)
        p[name + "_b"] = 0.1 * jax.random.normal(next(kb), (c,), jnp.float32)
        p[name + "_m"] = 0.1 * jax.random.normal(next(kb), (c,), jnp.float32)
        p[name + "_v"] = 1.0 + 0.1 * jax.random.uniform(next(kb), (c,), jnp.float32)
    return p


# ----------------------------------------------------------------------------
# Forward pass (== Autoencoder.forward, eval mode)
# ----------------------------------------------------------------------------
@jax.jit
def autoencoder_forward(x, p):
    # TODO(synk): eval-mode only -- Dropout == identity, BatchNorm running stats.
    N = x.shape[0]
    bf = jnp.bfloat16
    f32 = jnp.float32

    # ----- encoder: 2x fused (conv 3x3 s1 p1 + bias + ReLU + maxpool 2x2) -----
    xc = jnp.transpose(x, (1, 0, 2, 3)).astype(bf)                 # (1, N, 28, 28)

    a1 = _im2col_pool_cm(xc, k=3, pad=1)                           # (36, N*196)
    h1 = _call_lane_tiled(
        _conv_pool_kernel,
        [_conv_pool_wbd(p["conv1_w"], 8), a1, _pad_bias(p["conv1_b"], 8)],
        tiled_idx=1, out_rows=6, out_dtype=bf)                     # (6, N*196)
    h1 = h1.reshape(6, N, 14, 14)

    a2 = _im2col_pool_cm(h1, k=3, pad=1)                           # (216, N*49)
    h2 = _call_lane_tiled(
        _conv_pool_kernel,
        [_conv_pool_wbd(p["conv2_w"], 16), a2, _pad_bias(p["conv2_b"], 16)],
        tiled_idx=1, out_rows=12, out_dtype=bf)                    # (12, N*49)

    # ----- classifier + deconv1 + BN1 + ReLU (one VMEM-resident kernel) -----
    # PyTorch flatten order (c, h, w) per sample -> columns are samples.
    xf = h2.reshape(12, N, 49).transpose(0, 2, 1).reshape(588, N)  # (588, N) bf16
    wd1 = p["deconv1_w"].transpose(1, 2, 3, 0).reshape(144, 10).astype(bf)
    s1, t1 = _bn_affine(p["bn1_g"], p["bn1_b"], p["bn1_m"], p["bn1_v"])
    d1 = _call_lane_tiled(
        _mlp_dec1_kernel,
        [xf,
         p["fc1_w"].astype(bf), p["fc1_b"].reshape(128, 1).astype(f32),
         p["fc2_w"].astype(bf), p["fc2_b"].reshape(10, 1).astype(f32),
         wd1,
         jnp.repeat(s1, 9).reshape(144, 1).astype(f32),
         jnp.repeat(t1, 9).reshape(144, 1).astype(f32)],
        tiled_idx=0, out_rows=144, out_dtype=bf)                   # (144, N)
    d1 = d1.reshape(16, 3, 3, N).transpose(0, 3, 1, 2)             # (16, N, 3, 3)

    # ----- decoder: transposed convs as dense matmuls (BN / act fused) -----
    s2, t2 = _bn_affine(p["bn2_g"], p["bn2_b"], p["bn2_m"], p["bn2_v"])
    a3 = _im2col_cm(_dilate_pad(d1, stride=2, k=5, pad=1), k=5)    # (400, N*49)
    x3 = _call_lane_tiled(
        functools.partial(_mm_kernel, act="relu", affine=True),
        [_deconv_w(p["deconv2_w"]).astype(bf), a3,
         s2.reshape(8, 1).astype(f32), t2.reshape(8, 1).astype(f32)],
        tiled_idx=1, out_rows=8, out_dtype=bf)                     # (8, N*49)
    x3 = x3.reshape(8, N, 7, 7)

    s3, t3 = _bn_affine(p["bn3_g"], p["bn3_b"], p["bn3_m"], p["bn3_v"])
    a4 = _im2col_cm(_dilate_pad(x3, stride=2, k=4, pad=1), k=4)    # (128, N*196)
    x4 = _call_lane_tiled(
        functools.partial(_mm_kernel, act="relu", affine=True),
        [_deconv_w(p["deconv3_w"]).astype(bf), a4,
         s3.reshape(4, 1).astype(f32), t3.reshape(4, 1).astype(f32)],
        tiled_idx=1, out_rows=4, out_dtype=bf)                     # (4, N*196)
    x4 = x4.reshape(4, N, 14, 14)

    a5 = _im2col_cm(_dilate_pad(x4, stride=2, k=4, pad=1), k=4)    # (64, N*784)
    x5 = _call_lane_tiled(
        functools.partial(_mm_kernel, act="tanh", affine=False),
        [_deconv_w(p["deconv4_w"]).astype(bf), a5],
        tiled_idx=1, out_rows=1, out_dtype=f32)                    # (1, N*784) lane-dense

    return x5.reshape(N, 1, 28, 28)


# ----------------------------------------------------------------------------
# Pure-JAX f32 reference (eval mode) for a loose-tolerance correctness check
# ----------------------------------------------------------------------------
def _ref_forward(x, p):
    hi = lax.Precision.HIGHEST

    def conv(h, w, b):
        y = lax.conv_general_dilated(h, w, (1, 1), [(1, 1), (1, 1)],
                                     dimension_numbers=("NCHW", "OIHW", "NCHW"),
                                     precision=hi)
        return y + b.reshape(1, -1, 1, 1)

    def pool(h):
        n, c, hh, ww = h.shape
        return h.reshape(n, c, hh // 2, 2, ww // 2, 2).max(axis=(3, 5))

    def deconv(h, wt, stride, padding):
        k = wt.shape[-1]
        w = jnp.flip(wt, (2, 3)).transpose(1, 0, 2, 3)
        e = k - 1 - padding
        return lax.conv_general_dilated(h, w, (1, 1), [(e, e), (e, e)],
                                        lhs_dilation=(stride, stride),
                                        dimension_numbers=("NCHW", "OIHW", "NCHW"),
                                        precision=hi)

    def bn(h, g, b, m, v, eps=1e-5):
        s = g / jnp.sqrt(v + eps)
        return h * s.reshape(1, -1, 1, 1) + (b - m * s).reshape(1, -1, 1, 1)

    h = pool(jnp.maximum(conv(x, p["conv1_w"], p["conv1_b"]), 0.0))
    h = pool(jnp.maximum(conv(h, p["conv2_w"], p["conv2_b"]), 0.0))
    f = h.reshape(x.shape[0], -1)
    f = jnp.maximum(jnp.dot(f, p["fc1_w"].T, precision=hi) + p["fc1_b"], 0.0)
    f = jnp.dot(f, p["fc2_w"].T, precision=hi) + p["fc2_b"]
    h = f.reshape(x.shape[0], 10, 1, 1)
    h = jnp.maximum(bn(deconv(h, p["deconv1_w"], 1, 0),
                       p["bn1_g"], p["bn1_b"], p["bn1_m"], p["bn1_v"]), 0.0)
    h = jnp.maximum(bn(deconv(h, p["deconv2_w"], 2, 1),
                       p["bn2_g"], p["bn2_b"], p["bn2_m"], p["bn2_v"]), 0.0)
    h = jnp.maximum(bn(deconv(h, p["deconv3_w"], 2, 1),
                       p["bn3_g"], p["bn3_b"], p["bn3_m"], p["bn3_v"]), 0.0)
    return jnp.tanh(deconv(h, p["deconv4_w"], 2, 1))


if __name__ == "__main__":
    key = jax.random.PRNGKey(0)
    kx, kp = jax.random.split(key)
    # Spatial size must be 28x28: classifier hard-codes 12*7*7 features.
    x = jax.random.normal(kx, (2, 1, 28, 28), dtype=jnp.float32)
    params = init_params(kp)

    out = jax.block_until_ready(autoencoder_forward(x, params))

    assert out.shape == (2, 1, 28, 28), out.shape
    assert out.dtype == jnp.float32
    assert bool(jnp.all(jnp.isfinite(out)))
    assert bool(jnp.all(jnp.abs(out) <= 1.0))          # tanh output range

    # Loose tolerance: kernel path uses bf16 operands / f32 accumulation.
    ref = jax.jit(_ref_forward)(x, params)
    err = float(jnp.max(jnp.abs(out - ref)))
    assert err < 0.1, f"max abs error vs f32 reference: {err}"

    print("KERNEL_OK")
</pallas_src>

<mosaic_0001>
module attributes {stable_mosaic.version = 11 : i64} {
  func.func @_conv_pool_kernel(%arg0: memref<32x36xbf16, #tpu.memory_space<vmem>>, %arg1: memref<36x392xbf16, #tpu.memory_space<vmem>>, %arg2: memref<8x1xf32, #tpu.memory_space<vmem>>, %arg3: memref<6x392xbf16, #tpu.memory_space<vmem>>) attributes {dimension_semantics = [], scalar_prefetch = 0 : i64, scratch_operands = 0 : i64, tpu.core_type = #tpu.core_type<tc>} {
    %c0 = arith.constant 0 : index
    %c0_0 = arith.constant 0 : index
    %0 = vector.load %arg0[%c0, %c0_0] : memref<32x36xbf16, #tpu.memory_space<vmem>>, vector<32x36xbf16>
    %c0_1 = arith.constant 0 : index
    %c0_2 = arith.constant 0 : index
    %1 = vector.load %arg1[%c0_1, %c0_2] : memref<36x392xbf16, #tpu.memory_space<vmem>>, vector<36x392xbf16>
    %cst = arith.constant dense<0.000000e+00> : vector<32x392xf32>
    %2 = tpu.matmul %0, %1, %cst {dimension_numbers = #tpu.dot_dimension_numbers<[1], [0], [0], [1], [0, 0, 1, 1], [], []>} : vector<32x36xbf16>, vector<36x392xbf16>, vector<32x392xf32> -> vector<32x392xf32>
    %3 = vector.shape_cast %2 : vector<32x392xf32> to vector<4x8x392xf32>
    %4 = vector.extract_strided_slice %3 {offsets = [0, 0, 0], sizes = [1, 8, 392], strides = [1, 1, 1]} : vector<4x8x392xf32> to vector<1x8x392xf32>
    %5 = vector.shape_cast %4 : vector<1x8x392xf32> to vector<8x392xf32>
    %6 = vector.extract_strided_slice %3 {offsets = [1, 0, 0], sizes = [1, 8, 392], strides = [1, 1, 1]} : vector<4x8x392xf32> to vector<1x8x392xf32>
    %7 = vector.shape_cast %6 : vector<1x8x392xf32> to vector<8x392xf32>
    %8 = arith.maximumf %5, %7 : vector<8x392xf32>
    %9 = vector.extract_strided_slice %3 {offsets = [2, 0, 0], sizes = [1, 8, 392], strides = [1, 1, 1]} : vector<4x8x392xf32> to vector<1x8x392xf32>
    %10 = vector.shape_cast %9 : vector<1x8x392xf32> to vector<8x392xf32>
    %11 = vector.extract_strided_slice %3 {offsets = [3, 0, 0], sizes = [1, 8, 392], strides = [1, 1, 1]} : vector<4x8x392xf32> to vector<1x8x392xf32>
    %12 = vector.shape_cast %11 : vector<1x8x392xf32> to vector<8x392xf32>
    %13 = arith.maximumf %10, %12 : vector<8x392xf32>
    %14 = arith.maximumf %8, %13 : vector<8x392xf32>
    %c0_3 = arith.constant 0 : index
    %c0_4 = arith.constant 0 : index
    %15 = vector.load %arg2[%c0_3, %c0_4] : memref<8x1xf32, #tpu.memory_space<vmem>>, vector<8x1xf32>
    %16 = vector.broadcast %15 : vector<8x1xf32> to vector<8x392xf32>
    %17 = arith.addf %14, %16 : vector<8x392xf32>
    %cst_5 = arith.constant 0.000000e+00 : f32
    %18 = vector.broadcast %cst_5 : f32 to vector<8x392xf32>
    %19 = arith.maximumf %17, %18 : vector<8x392xf32>
    %20 = vector.extract_strided_slice %19 {offsets = [0, 0], sizes = [6, 392], strides = [1, 1]} : vector<8x392xf32> to vector<6x392xf32>
    %21 = arith.truncf %20 : vector<6x392xf32> to vector<6x392xbf16>
    %c0_6 = arith.constant 0 : index
    %c0_7 = arith.constant 0 : index
    %22 = vector.load %arg3[%c0_6, %c0_7] : memref<6x392xbf16, #tpu.memory_space<vmem>>, vector<6x392xbf16>
    tpu.vector_store %arg3[%c0_6, %c0_7], %21 {strides = array<i32>} : memref<6x392xbf16, #tpu.memory_space<vmem>>, vector<6x392xbf16>,
    return
  }
}

module attributes {stable_mosaic.version = 11 : i64} {
  func.func @_conv_pool_kernel(%arg0: memref<64x216xbf16, #tpu.memory_space<vmem>>, %arg1: memref<216x98xbf16, #tpu.memory_space<vmem>>, %arg2: memref<16x1xf32, #tpu.memory_space<vmem>>, %arg3: memref<12x98xbf16, #tpu.memory_space<vmem>>) attributes {dimension_semantics = [], scalar_prefetch = 0 : i64, scratch_operands = 0 : i64, tpu.core_type = #tpu.core_type<tc>} {
    %c0 = arith.constant 0 : index
    %c0_0 = arith.constant 0 : index
    %0 = vector.load %arg0[%c0, %c0_0] : memref<64x216xbf16, #tpu.memory_space<vmem>>, vector<64x216xbf16>
    %c0_1 = arith.constant 0 : index
    %c0_2 = arith.constant 0 : index
    %1 = vector.load %arg1[%c0_1, %c0_2] : memref<216x98xbf16, #tpu.memory_space<vmem>>, vector<216x98xbf16>
    %cst = arith.constant dense<0.000000e+00> : vector<64x98xf32>
    %2 = tpu.matmul %0, %1, %cst {dimension_numbers = #tpu.dot_dimension_numbers<[1], [0], [0], [1], [0, 0, 1, 1], [], []>} : vector<64x216xbf16>, vector<216x98xbf16>, vector<64x98xf32> -> vector<64x98xf32>
    %3 = vector.shape_cast %2 : vector<64x98xf32> to vector<4x16x98xf32>
    %4 = vector.extract_strided_slice %3 {offsets = [0, 0, 0], sizes = [1, 16, 98], strides = [1, 1, 1]} : vector<4x16x98xf32> to vector<1x16x98xf32>
    %5 = vector.shape_cast %4 : vector<1x16x98xf32> to vector<16x98xf32>
    %6 = vector.extract_strided_slice %3 {offsets = [1, 0, 0], sizes = [1, 16, 98], strides = [1, 1, 1]} : vector<4x16x98xf32> to vector<1x16x98xf32>
    %7 = vector.shape_cast %6 : vector<1x16x98xf32> to vector<16x98xf32>
    %8 = arith.maximumf %5, %7 : vector<16x98xf32>
    %9 = vector.extract_strided_slice %3 {offsets = [2, 0, 0], sizes = [1, 16, 98], strides = [1, 1, 1]} : vector<4x16x98xf32> to vector<1x16x98xf32>
    %10 = vector.shape_cast %9 : vector<1x16x98xf32> to vector<16x98xf32>
    %11 = vector.extract_strided_slice %3 {offsets = [3, 0, 0], sizes = [1, 16, 98], strides = [1, 1, 1]} : vector<4x16x98xf32> to vector<1x16x98xf32>
    %12 = vector.shape_cast %11 : vector<1x16x98xf32> to vector<16x98xf32>
    %13 = arith.maximumf %10, %12 : vector<16x98xf32>
    %14 = arith.maximumf %8, %13 : vector<16x98xf32>
    %c0_3 = arith.constant 0 : index
    %c0_4 = arith.constant 0 : index
    %15 = vector.load %arg2[%c0_3, %c0_4] : memref<16x1xf32, #tpu.memory_space<vmem>>, vector<16x1xf32>
    %16 = vector.broadcast %15 : vector<16x1xf32> to vector<16x98xf32>
    %17 = arith.addf %14, %16 : vector<16x98xf32>
    %cst_5 = arith.constant 0.000000e+00 : f32
    %18 = vector.broadcast %cst_5 : f32 to vector<16x98xf32>
    %19 = arith.maximumf %17, %18 : vector<16x98xf32>
    %20 = vector.extract_strided_slice %19 {offsets = [0, 0], sizes = [12, 98], strides = [1, 1]} : vector<16x98xf32> to vector<12x98xf32>
    %21 = arith.truncf %20 : vector<12x98xf32> to vector<12x98xbf16>
    %c0_6 = arith.constant 0 : index
    %c0_7 = arith.constant 0 : index
    %22 = vector.load %arg3[%c0_6, %c0_7] : memref<12x98xbf16, #tpu.memory_space<vmem>>, vector<12x98xbf16>
    tpu.vector_store %arg3[%c0_6, %c0_7], %21 {strides = array<i32>} : memref<12x98xbf16, #tpu.memory_space<vmem>>, vector<12x98xbf16>,
    return
  }
}

module attributes {stable_mosaic.version = 11 : i64} {
  func.func @_mlp_dec1_kernel(%arg0: memref<588x2xbf16, #tpu.memory_space<vmem>>, %arg1: memref<128x588xbf16, #tpu.memory_space<vmem>>, %arg2: memref<128x1xf32, #tpu.memory_space<vmem>>, %arg3: memref<10x128xbf16, #tpu.memory_space<vmem>>, %arg4: memref<10x1xf32, #tpu.memory_space<vmem>>, %arg5: memref<144x10xbf16, #tpu.memory_space<vmem>>, %arg6: memref<144x1xf32, #tpu.memory_space<vmem>>, %arg7: memref<144x1xf32, #tpu.memory_space<vmem>>, %arg8: memref<144x2xbf16, #tpu.memory_space<vmem>>) attributes {dimension_semantics = [], scalar_prefetch = 0 : i64, scratch_operands = 0 : i64, tpu.core_type = #tpu.core_type<tc>} {
    %c0 = arith.constant 0 : index
    %c0_0 = arith.constant 0 : index
    %0 = vector.load %arg1[%c0, %c0_0] : memref<128x588xbf16, #tpu.memory_space<vmem>>, vector<128x588xbf16>
    %c0_1 = arith.constant 0 : index
    %c0_2 = arith.constant 0 : index
    %1 = vector.load %arg0[%c0_1, %c0_2] : memref<588x2xbf16, #tpu.memory_space<vmem>>, vector<588x2xbf16>
    %cst = arith.constant dense<0.000000e+00> : vector<128x2xf32>
    %2 = tpu.matmul %0, %1, %cst {dimension_numbers = #tpu.dot_dimension_numbers<[1], [0], [0], [1], [0, 0, 1, 1], [], []>} : vector<128x588xbf16>, vector<588x2xbf16>, vector<128x2xf32> -> vector<128x2xf32>
    %c0_3 = arith.constant 0 : index
    %c0_4 = arith.constant 0 : index
    %3 = vector.load %arg2[%c0_3, %c0_4] : memref<128x1xf32, #tpu.memory_space<vmem>>, vector<128x1xf32>
    %4 = vector.broadcast %3 : vector<128x1xf32> to vector<128x2xf32>
    %5 = arith.addf %2, %4 : vector<128x2xf32>
    %cst_5 = arith.constant 0.000000e+00 : f32
    %6 = vector.broadcast %cst_5 : f32 to vector<128x2xf32>
    %7 = arith.maximumf %5, %6 : vector<128x2xf32>
    %c0_6 = arith.constant 0 : index
    %c0_7 = arith.constant 0 : index
    %8 = vector.load %arg3[%c0_6, %c0_7] : memref<10x128xbf16, #tpu.memory_space<vmem>>, vector<10x128xbf16>
    %9 = arith.truncf %7 : vector<128x2xf32> to vector<128x2xbf16>
    %cst_8 = arith.constant dense<0.000000e+00> : vector<10x2xf32>
    %10 = tpu.matmul %8, %9, %cst_8 {dimension_numbers = #tpu.dot_dimension_numbers<[1], [0], [0], [1], [0, 0, 1, 1], [], []>} : vector<10x128xbf16>, vector<128x2xbf16>, vector<10x2xf32> -> vector<10x2xf32>
    %c0_9 = arith.constant 0 : index
    %c0_10 = arith.constant 0 : index
    %11 = vector.load %arg4[%c0_9, %c0_10] : memref<10x1xf32, #tpu.memory_space<vmem>>, vector<10x1xf32>
    %12 = vector.broadcast %11 : vector<10x1xf32> to vector<10x2xf32>
    %13 = arith.addf %10, %12 : vector<10x2xf32>
    %c0_11 = arith.constant 0 : index
    %c0_12 = arith.constant 0 : index
    %14 = vector.load %arg5[%c0_11, %c0_12] : memref<144x10xbf16, #tpu.memory_space<vmem>>, vector<144x10xbf16>
    %15 = arith.truncf %13 : vector<10x2xf32> to vector<10x2xbf16>
    %cst_13 = arith.constant dense<0.000000e+00> : vector<144x2xf32>
    %16 = tpu.matmul %14, %15, %cst_13 {dimension_numbers = #tpu.dot_dimension_numbers<[1], [0], [0], [1], [0, 0, 1, 1], [], []>} : vector<144x10xbf16>, vector<10x2xbf16>, vector<144x2xf32> -> vector<144x2xf32>
    %c0_14 = arith.constant 0 : index
    %c0_15 = arith.constant 0 : index
    %17 = vector.load %arg6[%c0_14, %c0_15] : memref<144x1xf32, #tpu.memory_space<vmem>>, vector<144x1xf32>
    %18 = vector.broadcast %17 : vector<144x1xf32> to vector<144x2xf32>
    %19 = arith.mulf %16, %18 : vector<144x2xf32>
    %c0_16 = arith.constant 0 : index
    %c0_17 = arith.constant 0 : index
    %20 = vector.load %arg7[%c0_16, %c0_17] : memref<144x1xf32, #tpu.memory_space<vmem>>, vector<144x1xf32>
    %21 = vector.broadcast %20 : vector<144x1xf32> to vector<144x2xf32>
    %22 = arith.addf %19, %21 : vector<144x2xf32>
    %cst_18 = arith.constant 0.000000e+00 : f32
    %23 = vector.broadcast %cst_18 : f32 to vector<144x2xf32>
    %24 = arith.maximumf %22, %23 : vector<144x2xf32>
    %25 = arith.truncf %24 : vector<144x2xf32> to vector<144x2xbf16>
    %c0_19 = arith.constant 0 : index
    %c0_20 = arith.constant 0 : index
    %26 = vector.load %arg8[%c0_19, %c0_20] : memref<144x2xbf16, #tpu.memory_space<vmem>>, vector<144x2xbf16>
    tpu.vector_store %arg8[%c0_19, %c0_20], %25 {strides = array<i32>} : memref<144x2xbf16, #tpu.memory_space<vmem>>, vector<144x2xbf16>,
    return
  }
}

module attributes {stable_mosaic.version = 11 : i64} {
  func.func @_mm_kernel(%arg0: memref<8x400xbf16, #tpu.memory_space<vmem>>, %arg1: memref<400x98xbf16, #tpu.memory_space<vmem>>, %arg2: memref<8x1xf32, #tpu.memory_space<vmem>>, %arg3: memref<8x1xf32, #tpu.memory_space<vmem>>, %arg4: memref<8x98xbf16, #tpu.memory_space<vmem>>) attributes {dimension_semantics = [], scalar_prefetch = 0 : i64, scratch_operands = 0 : i64, tpu.core_type = #tpu.core_type<tc>} {
    %c0 = arith.constant 0 : index
    %c0_0 = arith.constant 0 : index
    %0 = vector.load %arg0[%c0, %c0_0] : memref<8x400xbf16, #tpu.memory_space<vmem>>, vector<8x400xbf16>
    %c0_1 = arith.constant 0 : index
    %c0_2 = arith.constant 0 : index
    %1 = vector.load %arg1[%c0_1, %c0_2] : memref<400x98xbf16, #tpu.memory_space<vmem>>, vector<400x98xbf16>
    %cst = arith.constant dense<0.000000e+00> : vector<8x98xf32>
    %2 = tpu.matmul %0, %1, %cst {dimension_numbers = #tpu.dot_dimension_numbers<[1], [0], [0], [1], [0, 0, 1, 1], [], []>} : vector<8x400xbf16>, vector<400x98xbf16>, vector<8x98xf32> -> vector<8x98xf32>
    %c0_3 = arith.constant 0 : index
    %c0_4 = arith.constant 0 : index
    %3 = vector.load %arg2[%c0_3, %c0_4] : memref<8x1xf32, #tpu.memory_space<vmem>>, vector<8x1xf32>
    %4 = vector.broadcast %3 : vector<8x1xf32> to vector<8x98xf32>
    %5 = arith.mulf %2, %4 : vector<8x98xf32>
    %c0_5 = arith.constant 0 : index
    %c0_6 = arith.constant 0 : index
    %6 = vector.load %arg3[%c0_5, %c0_6] : memref<8x1xf32, #tpu.memory_space<vmem>>, vector<8x1xf32>
    %7 = vector.broadcast %6 : vector<8x1xf32> to vector<8x98xf32>
    %8 = arith.addf %5, %7 : vector<8x98xf32>
    %cst_7 = arith.constant 0.000000e+00 : f32
    %9 = vector.broadcast %cst_7 : f32 to vector<8x98xf32>
    %10 = arith.maximumf %8, %9 : vector<8x98xf32>
    %11 = arith.truncf %10 : vector<8x98xf32> to vector<8x98xbf16>
    %c0_8 = arith.constant 0 : index
    %c0_9 = arith.constant 0 : index
    %12 = vector.load %arg4[%c0_8, %c0_9] : memref<8x98xbf16, #tpu.memory_space<vmem>>, vector<8x98xbf16>
    tpu.vector_store %arg4[%c0_8, %c0_9], %11 {strides = array<i32>} : memref<8x98xbf16, #tpu.memory_space<vmem>>, vector<8x98xbf16>,
    return
  }
}

module attributes {stable_mosaic.version = 11 : i64} {
  func.func @_mm_kernel(%arg0: memref<4x128xbf16, #tpu.memory_space<vmem>>, %arg1: memref<128x392xbf16, #tpu.memory_space<vmem>>, %arg2: memref<4x1xf32, #tpu.memory_space<vmem>>, %arg3: memref<4x1xf32, #tpu.memory_space<vmem>>, %arg4: memref<4x392xbf16, #tpu.memory_space<vmem>>) attributes {dimension_semantics = [], scalar_prefetch = 0 : i64, scratch_operands = 0 : i64, tpu.core_type = #tpu.core_type<tc>} {
    %c0 = arith.constant 0 : index
    %c0_0 = arith.constant 0 : index
    %0 = vector.load %arg0[%c0, %c0_0] : memref<4x128xbf16, #tpu.memory_space<vmem>>, vector<4x128xbf16>
    %c0_1 = arith.constant 0 : index
    %c0_2 = arith.constant 0 : index
    %1 = vector.load %arg1[%c0_1, %c0_2] : memref<128x392xbf16, #tpu.memory_space<vmem>>, vector<128x392xbf16>
    %cst = arith.constant dense<0.000000e+00> : vector<4x392xf32>
    %2 = tpu.matmul %0, %1, %cst {dimension_numbers = #tpu.dot_dimension_numbers<[1], [0], [0], [1], [0, 0, 1, 1], [], []>} : vector<4x128xbf16>, vector<128x392xbf16>, vector<4x392xf32> -> vector<4x392xf32>
    %c0_3 = arith.constant 0 : index
    %c0_4 = arith.constant 0 : index
    %3 = vector.load %arg2[%c0_3, %c0_4] : memref<4x1xf32, #tpu.memory_space<vmem>>, vector<4x1xf32>
    %4 = vector.broadcast %3 : vector<4x1xf32> to vector<4x392xf32>
    %5 = arith.mulf %2, %4 : vector<4x392xf32>
    %c0_5 = arith.constant 0 : index
    %c0_6 = arith.constant 0 : index
    %6 = vector.load %arg3[%c0_5, %c0_6] : memref<4x1xf32, #tpu.memory_space<vmem>>, vector<4x1xf32>
    %7 = vector.broadcast %6 : vector<4x1xf32> to vector<4x392xf32>
    %8 = arith.addf %5, %7 : vector<4x392xf32>
    %cst_7 = arith.constant 0.000000e+00 : f32
    %9 = vector.broadcast %cst_7 : f32 to vector<4x392xf32>
    %10 = arith.maximumf %8, %9 : vector<4x392xf32>
    %11 = arith.truncf %10 : vector<4x392xf32> to vector<4x392xbf16>
    %c0_8 = arith.constant 0 : index
    %c0_9 = arith.constant 0 : index
    %12 = vector.load %arg4[%c0_8, %c0_9] : memref<4x392xbf16, #tpu.memory_space<vmem>>, vector<4x392xbf16>
    tpu.vector_store %arg4[%c0_8, %c0_9], %11 {strides = array<i32>} : memref<4x392xbf16, #tpu.memory_space<vmem>>, vector<4x392xbf16>,
    return
  }
}

module attributes {stable_mosaic.version = 11 : i64} {
  func.func @_mm_kernel(%arg0: memref<1x64xbf16, #tpu.memory_space<vmem>>, %arg1: memref<64x1568xbf16, #tpu.memory_space<vmem>>, %arg2: memref<1x1568xf32, #tpu.memory_space<vmem>>) attributes {dimension_semantics = [], scalar_prefetch = 0 : i64, scratch_operands = 0 : i64, tpu.core_type = #tpu.core_type<tc>} {
    %c0 = arith.constant 0 : index
    %c0_0 = arith.constant 0 : index
    %0 = vector.load %arg0[%c0, %c0_0] : memref<1x64xbf16, #tpu.memory_space<vmem>>, vector<1x64xbf16>
    %c0_1 = arith.constant 0 : index
    %c0_2 = arith.constant 0 : index
    %1 = vector.load %arg1[%c0_1, %c0_2] : memref<64x1568xbf16, #tpu.memory_space<vmem>>, vector<64x1568xbf16>
    %cst = arith.constant dense<0.000000e+00> : vector<1x1568xf32>
    %2 = tpu.matmul %0, %1, %cst {dimension_numbers = #tpu.dot_dimension_numbers<[1], [0], [0], [1], [0, 0, 1, 1], [], []>} : vector<1x64xbf16>, vector<64x1568xbf16>, vector<1x1568xf32> -> vector<1x1568xf32>
    %3 = math.tanh %2 : vector<1x1568xf32>
    %c0_3 = arith.constant 0 : index
    %c0_4 = arith.constant 0 : index
    %4 = vector.load %arg2[%c0_3, %c0_4] : memref<1x1568xf32, #tpu.memory_space<vmem>>, vector<1x1568xf32>
    tpu.vector_store %arg2[%c0_3, %c0_4], %3 {strides = array<i32>} : memref<1x1568xf32, #tpu.memory_space<vmem>>, vector<1x1568xf32>,
    return
  }
}

</mosaic_0001>

<llo_original>
// kernel: autoencoder_forward.6
$region0: #{autoencoder_forward.6}
  #allocation0 [shape = 'u32[]', space=smem, size = 0x4, offset = 0x4, fixed_abs, tag = 'smem constant byte address 0x4 - core index']
  #allocation1 [shape = 'u32[144,128]{1,0:T(1,128)}', space=vmem, size = 0x12000, scoped, tag = 'internal scratch']
  %s0 = inlined_call_operand.vmem [shape: bf16[32,36], index: 0, kind: input, shape index: {}]
  %s1 = inlined_call_operand.vmem [shape: bf16[36,392], index: 1, kind: input, shape index: {}]
  %s2 = inlined_call_operand.vmem [shape: f32[8,1], index: 2, kind: input, shape index: {}]
  %s3 = inlined_call_operand.vmem [shape: bf16[6,392], index: 3, kind: output, shape index: {}]
  %s4 = sld [smem:[#allocation0]]
  $region22: #{autoencoder_forward.6} parent=0
    _
  %s6 = ssub.s32 1, %s4
  %s7 = scalar_select 0, %s6, %s4
  // Predicated region
  $region2: #{autoencoder_forward.6} parent=0 // pred_check
    _
  $region3: #{autoencoder_forward.6} parent=0 // pred_check_branch
    %9 = sbr.rel (0) target = $region5
  $region4: #{autoencoder_forward.6} parent=0 // pred_region
    _
  $region5: #{autoencoder_forward.6} parent=0 // pred_fallthru
    _
  // Predicated region
  $region6: #{autoencoder_forward.6} parent=0 // pred_check
    _
  $region7: #{autoencoder_forward.6} parent=0 // pred_check_branch
    %11 = sbr.rel (0) target = $region9
  $region8: #{autoencoder_forward.6} parent=0 // pred_region
    _
  $region9: #{autoencoder_forward.6} parent=0 // pred_fallthru
    _
  // Predicated region
  $region10: #{autoencoder_forward.6} parent=0 // pred_check
    _
  $region11: #{autoencoder_forward.6} parent=0 // pred_check_branch
    %13 = sbr.rel (0) target = $region13
  $region12: #{autoencoder_forward.6} parent=0 // pred_region
    _
  $region13: #{autoencoder_forward.6} parent=0 // pred_fallthru
    _
  %v15 = vld [vmem:[%s0] sm:$0xf]
  %v16 = vld [vmem:[%s0 + $0x4] sm:$0xf]
  %v17 = vld [vmem:[%s0 + $0x8] sm:$0xf]
  %v18 = vld [vmem:[%s0 + $0xc] sm:$0xf]
  %v19 = vld [vmem:[%s1] sm:$0xff]
  %v20 = vld [vmem:[%s1 + $0x8] sm:$0xff]
  %v21 = vld [vmem:[%s1 + $0x10] sm:$0xff]
  %v22 = vld [vmem:[%s1 + $0x18] sm:$0xff]
  %v23 = vld [vmem:[%s1 + $0x20] sm:$0xff]
  %v24 = vld [vmem:[%s1 + $0x28] sm:$0xff]
  %v25 = vld [vmem:[%s1 + $0x30] sm:$0xff]
  %v26 = vld [vmem:[%s1 + $0x38] sm:$0xff]
  %v27 = vld [vmem:[%s1 + $0x40] sm:$0x33]
  %v28 = vld [vmem:[%s1 + $0x48] sm:$0x33]
  %v33 = vunpack.c.l.b16 %v15
  %v34 = vunpack.c.l.b16 %v16
  %v35 = vunpack.c.l.b16 %v17
  %v36 = vunpack.c.l.b16 %v18
  %v37 = vpack.c.b16 %v34, %v33
  %v38 = vpack.c.b16 %v36, %v35
  %v49 = vunpack.c.l.b16 %v19
  %v50 = vunpack.c.h.b16 %v19
  %v51 = vunpack.c.l.b16 %v20
  %v52 = vunpack.c.h.b16 %v20
  %v53 = vunpack.c.l.b16 %v21
  %v54 = vunpack.c.h.b16 %v21
  %v55 = vunpack.c.l.b16 %v22
  %v56 = vunpack.c.h.b16 %v22
  %v57 = vunpack.c.l.b16 %v23
  %v58 = vunpack.c.h.b16 %v23
  %v59 = vunpack.c.l.b16 %v24
  %v60 = vunpack.c.h.b16 %v24
  %v61 = vunpack.c.l.b16 %v25
  %v62 = vunpack.c.h.b16 %v25
  %v63 = vunpack.c.l.b16 %v26
  %v64 = vunpack.c.h.b16 %v26
  %v65 = vunpack.c.l.b16 %v27
  %v66 = vunpack.c.h.b16 %v27
  %v67 = vunpack.c.l.b16 %v28
  %v68 = vunpack.c.h.b16 %v28
  %v69 = vpack.c.b16 %v53, %v49
  %v70 = vpack.c.b16 %v54, %v50
  %v71 = vpack.c.b16 %v55, %v51
  %v72 = vpack.c.b16 %v56, %v52
  %v73 = vpack.c.b16 %v61, %v57
  %v74 = vpack.c.b16 %v62, %v58
  %v75 = vpack.c.b16 %v63, %v59
  %v76 = vpack.c.b16 %v64, %v60
  %v77 = vpack.c.b16 %v65, %v65
  %v78 = vpack.c.b16 %v66, %v66
  %v79 = vpack.c.b16 %v67, %v67
  %v80 = vpack.c.b16 %v68, %v68
  %vm89 = vcmask 293888
  %v91 = vsel %vm89, %v37, 0
  %v94 = vsel %vm89, %v38, 0
  %vm96 = vcmask 1041408
  %v98 = vsel %vm96, %v77, 0
  %v101 = vsel %vm96, %v78, 0
  %v104 = vsel %vm96, %v79, 0
  %v107 = vsel %vm96, %v80, 0
  %109 = vmatprep.subr.bf16.mxu0 %v70
  %110 = vmatpush1.bf16.msra.mxu0 %v69
  %111 = vmatprep.subr.bf16.mxu0 %v74
  %112 = vmatpush1.bf16.msra.mxu0 %v73
  %113 = vmatprep.subr.bf16.mxu0 %v101
  %114 = vmatpush1.bf16.msra.mxu0 %v98
  %115 = vmatprep.subr.bf16.mxu0 0
  %116 = vmatpush1.bf16.msra.mxu0 0
  %117 = vmatprep.subr.bf16.mxu0 0
  %118 = vmatpush1.bf16.msra.mxu0 0
  %119 = vmatprep.subr.bf16.mxu0 0
  %120 = vmatpush1.bf16.msra.mxu0 0
  %121 = vmatprep.subr.bf16.mxu0 0
  %122 = vmatpush1.bf16.msra.mxu0 0
  %123 = vmatprep.subr.bf16.mxu0 0
  %124 = vmatpush1.bf16.msra.mxu0 0
  %125 = vmatprep.subr.bf16.mxu0 0
  %126 = vmatpush1.bf16.msra.mxu0 0
  %127 = vmatprep.subr.bf16.mxu0 0
  %128 = vmatpush1.bf16.msra.mxu0 0
  %129 = vmatprep.subr.bf16.mxu0 0
  %130 = vmatpush1.bf16.msra.mxu0 0
  %131 = vmatprep.subr.bf16.mxu0 0
  %132 = vmatpush1.bf16.msra.mxu0 0
  %133 = vmatprep.subr.bf16.mxu0 0
  %134 = vmatpush1.bf16.msra.mxu0 0
  %135 = vmatprep.subr.bf16.mxu0 0
  %136 = vmatpush1.bf16.msra.mxu0 0
  %137 = vmatprep.subr.bf16.mxu0 0
  %138 = vmatpush1.bf16.msra.mxu0 0
  %139 = vmatprep.subr.bf16.mxu0 0
  %140 = vmatpush1.bf16.msra.mxu0 0
  %141 = vmatprep.mubr.bf16.mxu0 0
  %142 = vmatmul.mubr.bf16.gmra.mrb[0].mxu0 %v91
  %v143 = vpop.f32.mrb[0].mxu0
  %v144 = vadd.f32 0.0, %v143
  %v145 = vpop.f32.mrb[0].mxu0
  %v146 = vadd.f32 0.0, %v145
  %v147 = vpop.f32.mrb[0].mxu0
  %v148 = vadd.f32 0.0, %v147
  %v149 = vpop.f32.mrb[0].mxu0
  %v150 = vadd.f32 0.0, %v149
  %151 = vmatprep.mubr.bf16.mxu0 0
  %152 = vmatmul.mubr.bf16.gmra.mrb[0].mxu0 %v94
  %v153 = vpop.f32.mrb[0].mxu0
  %v154 = vadd.f32 0.0, %v153
  %v155 = vpop.f32.mrb[0].mxu0
  %v156 = vadd.f32 0.0, %v155
  %v157 = vpop.f32.mrb[0].mxu0
  %v158 = vadd.f32 0.0, %v157
  %v159 = vpop.f32.mrb[0].mxu0
  %v160 = vadd.f32 0.0, %v159
  %161 = vdwg.mxu0
  %162 = vmatprep.subr.bf16.mxu0 %v72
  %163 = vmatpush1.bf16.msra.mxu0 %v71
  %164 = vmatprep.subr.bf16.mxu0 %v76
  %165 = vmatpush1.bf16.msra.mxu0 %v75
  %166 = vmatprep.subr.bf16.mxu0 %v107
  %167 = vmatpush1.bf16.msra.mxu0 %v104
  %168 = vmatprep.subr.bf16.mxu0 0
  %169 = vmatpush1.bf16.msra.mxu0 0
  %170 = vmatprep.subr.bf16.mxu0 0
  %171 = vmatpush1.bf16.msra.mxu0 0
  %172 = vmatprep.subr.bf16.mxu0 0
  %173 = vmatpush1.bf16.msra.mxu0 0
  %174 = vmatprep.subr.bf16.mxu0 0
  %175 = vmatpush1.bf16.msra.mxu0 0
  %176 = vmatprep.subr.bf16.mxu0 0
  %177 = vmatpush1.bf16.msra.mxu0 0
  %178 = vmatprep.subr.bf16.mxu0 0
  %179 = vmatpush1.bf16.msra.mxu0 0
  %180 = vmatprep.subr.bf16.mxu0 0
  %181 = vmatpush1.bf16.msra.mxu0 0
  %182 = vmatprep.subr.bf16.mxu0 0
  %183 = vmatpush1.bf16.msra.mxu0 0
  %184 = vmatprep.subr.bf16.mxu0 0
  %185 = vmatpush1.bf16.msra.mxu0 0
  %186 = vmatprep.subr.bf16.mxu0 0
  %187 = vmatpush1.bf16.msra.mxu0 0
  %188 = vmatprep.subr.bf16.mxu0 0
  %189 = vmatpush1.bf16.msra.mxu0 0
  %190 = vmatprep.subr.bf16.mxu0 0
  %191 = vmatpush1.bf16.msra.mxu0 0
  %192 = vmatprep.subr.bf16.mxu0 0
  %193 = vmatpush1.bf16.msra.mxu0 0
  %194 = vmatprep.mubr.bf16.mxu0 0
  %195 = vmatmul.mubr.bf16.gmra.mrb[0].mxu0 %v91
  %v196 = vpop.f32.mrb[0].mxu0
  %v197 = vadd.f32 0.0, %v196
  %v198 = vpop.f32.mrb[0].mxu0
  %v199 = vadd.f32 0.0, %v198
  %v200 = vpop.f32.mrb[0].mxu0
  %v201 = vadd.f32 0.0, %v200
  %v202 = vpop.f32.mrb[0].mxu0
  %v203 = vadd.f32 0.0, %v202
  %204 = vmatprep.mubr.bf16.mxu0 0
  %205 = vmatmul.mubr.bf16.gmra.mrb[0].mxu0 %v94
  %v206 = vpop.f32.mrb[0].mxu0
  %v207 = vadd.f32 0.0, %v206
  %v208 = vpop.f32.mrb[0].mxu0
  %v209 = vadd.f32 0.0, %v208
  %v210 = vpop.f32.mrb[0].mxu0
  %v211 = vadd.f32 0.0, %v210
  %v212 = vpop.f32.mrb[0].mxu0
  %v213 = vadd.f32 0.0, %v212
  %214 = vdwg.mxu0
  %v215 = vmax.f32 %v144, %v148
  %v216 = vmax.f32 %v146, %v150
  %v217 = vmax.f32 %v197, %v201
  %v218 = vmax.f32 %v199, %v203
  %v219 = vmax.f32 %v154, %v158
  %v220 = vmax.f32 %v156, %v160
  %v221 = vmax.f32 %v207, %v211
  %v222 = vmax.f32 %v209, %v213
  %v223 = vmax.f32 %v215, %v219
  %v224 = vmax.f32 %v216, %v220
  %v225 = vmax.f32 %v217, %v221
  %v226 = vmax.f32 %v218, %v222
  %v227 = vld [vmem:[%s2] sm:$0xff]
  %229 = vset.pattern.permute.xlu0 0
  %230 = vperm.xlu0 %229, %v227
  %v231 = vpop.permute.xlu0 %230
  %v233 = vadd.f32 %v223, %v231
  %v234 = vadd.f32 %v224, %v231
  %v235 = vadd.f32 %v225, %v231
  %v236 = vadd.f32 %v226, %v231
  %v237 = vmax.f32 %v233, 0.0
  %v238 = vmax.f32 %v234, 0.0
  %v239 = vmax.f32 %v235, 0.0
  %v240 = vmax.f32 %v236, 0.0
  %v241 = vpack.c.bf16 %v237, %v237
  %v242 = vpack.c.bf16 %v238, %v238
  %v243 = vpack.c.bf16 %v239, %v239
  %v244 = vpack.c.bf16 %v240, %v240
  %v249 = vunpack.c.l.b16 %v241
  %v250 = vunpack.c.l.b16 %v242
  %v251 = vunpack.c.l.b16 %v243
  %v252 = vunpack.c.l.b16 %v244
  %v253 = vpack.c.b16 %v250, %v249
  %v254 = vpack.c.b16 %v252, %v251
  %257 = vst [vmem:[%s3] sm:$0x77] %v253
  %vm258 = vcmask 1042432
  %vm259 = vcmask 63492
  %vm260 = vmor %vm259, %vm258
  %261 = vst.msk [vmem:[%s3 + $0x8] sm:$0x77] %vm260, %v254
  // Predicated region
  $region14: #{autoencoder_forward.6} parent=0 // pred_check
    _
  $region15: #{autoencoder_forward.6} parent=0 // pred_check_branch
    %263 = sbr.rel (0) target = $region17
  $region16: #{autoencoder_forward.6} parent=0 // pred_region
    _
  $region17: #{autoencoder_forward.6} parent=0 // pred_fallthru
    _
  // Predicated region
  $region18: #{autoencoder_forward.6} parent=0 // pred_check
    _
  $region19: #{autoencoder_forward.6} parent=0 // pred_check_branch
    %265 = sbr.rel (0) target = $region21
  $region20: #{autoencoder_forward.6} parent=0 // pred_region
    _
  $region21: #{autoencoder_forward.6} parent=0 // pred_fallthru
    _

// kernel: autoencoder_forward.7
$region0: #{autoencoder_forward.7}
  #allocation0 [shape = 'u32[]', space=smem, size = 0x4, offset = 0x4, fixed_abs, tag = 'smem constant byte address 0x4 - core index']
  #allocation1 [shape = 'u32[144,128]{1,0:T(1,128)}', space=vmem, size = 0x12000, scoped, tag = 'internal scratch']
  %s0 = inlined_call_operand.vmem [shape: bf16[64,216], index: 0, kind: input, shape index: {}]
  %s1 = inlined_call_operand.vmem [shape: bf16[216,98], index: 1, kind: input, shape index: {}]
  %s2 = inlined_call_operand.vmem [shape: f32[16,1], index: 2, kind: input, shape index: {}]
  %s3 = inlined_call_operand.vmem [shape: bf16[12,98], index: 3, kind: output, shape index: {}]
  %s4 = sld [smem:[#allocation0]]
  $region22: #{autoencoder_forward.7} parent=0
    _
  %s6 = ssub.s32 1, %s4
  %s7 = scalar_select 0, %s6, %s4
  // Predicated region
  $region2: #{autoencoder_forward.7} parent=0 // pred_check
    _
  $region3: #{autoencoder_forward.7} parent=0 // pred_check_branch
    %9 = sbr.rel (0) target = $region5
  $region4: #{autoencoder_forward.7} parent=0 // pred_region
    _
  $region5: #{autoencoder_forward.7} parent=0 // pred_fallthru
    _
  // Predicated region
  $region6: #{autoencoder_forward.7} parent=0 // pred_check
    _
  $region7: #{autoencoder_forward.7} parent=0 // pred_check_branch
    %11 = sbr.rel (0) target = $region9
  $region8: #{autoencoder_forward.7} parent=0 // pred_region
    _
  $region9: #{autoencoder_forward.7} parent=0 // pred_fallthru
    _
  // Predicated region
  $region10: #{autoencoder_forward.7} parent=0 // pred_check
    _
  $region11: #{autoencoder_forward.7} parent=0 // pred_check_branch
    %13 = sbr.rel (0) target = $region13
  $region12: #{autoencoder_forward.7} parent=0 // pred_region
    _
  $region13: #{autoencoder_forward.7} parent=0 // pred_fallthru
    _
  %v15 = vld [vmem:[%s0] sm:$0xff]
  %v16 = vld [vmem:[%s0 + $0x8] sm:$0xff]
  %v17 = vld [vmem:[%s0 + $0x10] sm:$0xff]
  %v18 = vld [vmem:[%s0 + $0x18] sm:$0xff]
  %v19 = vld [vmem:[%s0 + $0x20] sm:$0xff]
  %v20 = vld [vmem:[%s0 + $0x28] sm:$0xff]
  %v21 = vld [vmem:[%s0 + $0x30] sm:$0xff]
  %v22 = vld [vmem:[%s0 + $0x38] sm:$0xff]
  %v23 = vld [vmem:[%s1] sm:$0xf]
  %v24 = vld [vmem:[%s1 + $0x4] sm:$0xf]
  %v25 = vld [vmem:[%s1 + $0x8] sm:$0xf]
  %v26 = vld [vmem:[%s1 + $0xc] sm:$0xf]
  %v27 = vld [vmem:[%s1 + $0x10] sm:$0xf]
  %v28 = vld [vmem:[%s1 + $0x14] sm:$0xf]
  %v29 = vld [vmem:[%s1 + $0x18] sm:$0xf]
  %v30 = vld [vmem:[%s1 + $0x1c] sm:$0xf]
  %v31 = vld [vmem:[%s1 + $0x20] sm:$0xf]
  %v32 = vld [vmem:[%s1 + $0x24] sm:$0xf]
  %v33 = vld [vmem:[%s1 + $0x28] sm:$0xf]
  %v34 = vld [vmem:[%s1 + $0x2c] sm:$0xf]
  %v35 = vld [vmem:[%s1 + $0x30] sm:$0xf]
  %v36 = vld [vmem:[%s1 + $0x34] sm:$0xf]
  %v37 = vld [vmem:[%s1 + $0x38] sm:$0xf]
  %v38 = vld [vmem:[%s1 + $0x3c] sm:$0xf]
  %v39 = vld [vmem:[%s1 + $0x40] sm:$0xf]
  %v40 = vld [vmem:[%s1 + $0x44] sm:$0xf]
  %v41 = vld [vmem:[%s1 + $0x48] sm:$0xf]
  %v42 = vld [vmem:[%s1 + $0x4c] sm:$0xf]
  %v43 = vld [vmem:[%s1 + $0x50] sm:$0xf]
  %v44 = vld [vmem:[%s1 + $0x54] sm:$0xf]
  %v45 = vld [vmem:[%s1 + $0x58] sm:$0xf]
  %v46 = vld [vmem:[%s1 + $0x5c] sm:$0xf]
  %v47 = vld [vmem:[%s1 + $0x60] sm:$0xf]
  %v48 = vld [vmem:[%s1 + $0x64] sm:$0xf]
  %v49 = vld [vmem:[%s1 + $0x68] sm:$0xf]
  %v58 = vunpack.c.l.b16 %v15
  %v59 = vunpack.c.h.b16 %v15
  %v60 = vunpack.c.l.b16 %v16
  %v61 = vunpack.c.h.b16 %v16
  %v62 = vunpack.c.l.b16 %v17
  %v63 = vunpack.c.h.b16 %v17
  %v64 = vunpack.c.l.b16 %v18
  %v65 = vunpack.c.h.b16 %v18
  %v66 = vunpack.c.l.b16 %v19
  %v67 = vunpack.c.h.b16 %v19
  %v68 = vunpack.c.l.b16 %v20
  %v69 = vunpack.c.h.b16 %v20
  %v70 = vunpack.c.l.b16 %v21
  %v71 = vunpack.c.h.b16 %v21
  %v72 = vunpack.c.l.b16 %v22
  %v73 = vunpack.c.h.b16 %v22
  %v74 = vpack.c.b16 %v60, %v58
  %v75 = vpack.c.b16 %v61, %v59
  %v76 = vpack.c.b16 %v64, %v62
  %v77 = vpack.c.b16 %v65, %v63
  %v78 = vpack.c.b16 %v68, %v66
  %v79 = vpack.c.b16 %v69, %v67
  %v80 = vpack.c.b16 %v72, %v70
  %v81 = vpack.c.b16 %v73, %v71
  %v113 = vunpack.c.l.b16 %v23
  %v114 = vunpack.c.l.b16 %v24
  %v115 = vunpack.c.l.b16 %v25
  %v116 = vunpack.c.l.b16 %v26
  %v117 = vunpack.c.l.b16 %v27
  %v118 = vunpack.c.l.b16 %v28
  %v119 = vunpack.c.l.b16 %v29
  %v120 = vunpack.c.l.b16 %v30
  %v121 = vunpack.c.l.b16 %v31
  %v122 = vunpack.c.l.b16 %v32
  %v123 = vunpack.c.l.b16 %v33
  %v124 = vunpack.c.l.b16 %v34
  %v125 = vunpack.c.l.b16 %v35
  %v126 = vunpack.c.l.b16 %v36
  %v127 = vunpack.c.l.b16 %v37
  %v128 = vunpack.c.l.b16 %v38
  %v129 = vunpack.c.l.b16 %v39
  %v130 = vunpack.c.l.b16 %v40
  %v131 = vunpack.c.l.b16 %v41
  %v132 = vunpack.c.l.b16 %v42
  %v133 = vunpack.c.l.b16 %v43
  %v134 = vunpack.c.l.b16 %v44
  %v135 = vunpack.c.l.b16 %v45
  %v136 = vunpack.c.l.b16 %v46
  %v137 = vunpack.c.l.b16 %v47
  %v138 = vunpack.c.l.b16 %v48
  %v139 = vunpack.c.l.b16 %v49
  %v140 = vpack.c.b16 %v114, %v113
  %v141 = vpack.c.b16 %v116, %v115
  %v142 = vpack.c.b16 %v118, %v117
  %v143 = vpack.c.b16 %v120, %v119
  %v144 = vpack.c.b16 %v122, %v121
  %v145 = vpack.c.b16 %v124, %v123
  %v146 = vpack.c.b16 %v126, %v125
  %v147 = vpack.c.b16 %v128, %v127
  %v148 = vpack.c.b16 %v130, %v129
  %v149 = vpack.c.b16 %v132, %v131
  %v150 = vpack.c.b16 %v134, %v133
  %v151 = vpack.c.b16 %v136, %v135
  %v152 = vpack.c.b16 %v138, %v137
  %v153 = vpack.c.b16 %v139, %v139
  %vm167 = vcmask 719872
  %v169 = vsel %vm167, %v75, 0
  %v172 = vsel %vm167, %v77, 0
  %v175 = vsel %vm167, %v79, 0
  %v178 = vsel %vm167, %v81, 0
  %vm180 = vcmask 1043456
  %v182 = vsel %vm180, %v153, 0
  %184 = vmatprep.subr.bf16.mxu0 0
  %185 = vmatpush1.bf16.msra.mxu0 %v140
  %186 = vmatprep.subr.bf16.mxu0 0
  %187 = vmatpush1.bf16.msra.mxu0 %v141
  %188 = vmatprep.subr.bf16.mxu0 0
  %189 = vmatpush1.bf16.msra.mxu0 %v142
  %190 = vmatprep.subr.bf16.mxu0 0
  %191 = vmatpush1.bf16.msra.mxu0 %v143
  %192 = vmatprep.subr.bf16.mxu0 0
  %193 = vmatpush1.bf16.msra.mxu0 %v144
  %194 = vmatprep.subr.bf16.mxu0 0
  %195 = vmatpush1.bf16.msra.mxu0 %v145
  %196 = vmatprep.subr.bf16.mxu0 0
  %197 = vmatpush1.bf16.msra.mxu0 %v146
  %198 = vmatprep.subr.bf16.mxu0 0
  %199 = vmatpush1.bf16.msra.mxu0 %v147
  %200 = vmatprep.subr.bf16.mxu0 0
  %201 = vmatpush1.bf16.msra.mxu0 %v148
  %202 = vmatprep.subr.bf16.mxu0 0
  %203 = vmatpush1.bf16.msra.mxu0 %v149
  %204 = vmatprep.subr.bf16.mxu0 0
  %205 = vmatpush1.bf16.msra.mxu0 %v150
  %206 = vmatprep.subr.bf16.mxu0 0
  %207 = vmatpush1.bf16.msra.mxu0 %v151
  %208 = vmatprep.subr.bf16.mxu0 0
  %209 = vmatpush1.bf16.msra.mxu0 %v152
  %210 = vmatprep.subr.bf16.mxu0 0
  %211 = vmatpush1.bf16.msra.mxu0 %v182
  %212 = vmatprep.subr.bf16.mxu0 0
  %213 = vmatpush1.bf16.msra.mxu0 0
  %214 = vmatprep.subr.bf16.mxu0 0
  %215 = vmatpush1.bf16.msra.mxu0 0
  %216 = vmatprep.mubr.bf16.mxu0 %v169
  %217 = vmatmul.mubr.bf16.gmra.mrb[0].mxu0 %v74
  %v218 = vpop.f32.mrb[0].mxu0
  %v219 = vadd.f32 0.0, %v218
  %v220 = vpop.f32.mrb[0].mxu0
  %v221 = vpop.f32.mrb[0].mxu0
  %v222 = vadd.f32 0.0, %v221
  %v223 = vpop.f32.mrb[0].mxu0
  %224 = vmatprep.mubr.bf16.mxu0 %v172
  %225 = vmatmul.mubr.bf16.gmra.mrb[0].mxu0 %v76
  %v226 = vpop.f32.mrb[0].mxu0
  %v227 = vadd.f32 0.0, %v226
  %v228 = vpop.f32.mrb[0].mxu0
  %v229 = vpop.f32.mrb[0].mxu0
  %v230 = vadd.f32 0.0, %v229
  %v231 = vpop.f32.mrb[0].mxu0
  %232 = vmatprep.mubr.bf16.mxu0 %v175
  %233 = vmatmul.mubr.bf16.gmra.mrb[0].mxu0 %v78
  %v234 = vpop.f32.mrb[0].mxu0
  %v235 = vadd.f32 0.0, %v234
  %v236 = vpop.f32.mrb[0].mxu0
  %v237 = vpop.f32.mrb[0].mxu0
  %v238 = vadd.f32 0.0, %v237
  %v239 = vpop.f32.mrb[0].mxu0
  %240 = vmatprep.mubr.bf16.mxu0 %v178
  %241 = vmatmul.mubr.bf16.gmra.mrb[0].mxu0 %v80
  %v242 = vpop.f32.mrb[0].mxu0
  %v243 = vadd.f32 0.0, %v242
  %v244 = vpop.f32.mrb[0].mxu0
  %v245 = vpop.f32.mrb[0].mxu0
  %v246 = vadd.f32 0.0, %v245
  %v247 = vpop.f32.mrb[0].mxu0
  %248 = vdwg.mxu0
  %v249 = vmax.f32 %v219, %v227
  %v250 = vmax.f32 %v222, %v230
  %v251 = vmax.f32 %v235, %v243
  %v252 = vmax.f32 %v238, %v246
  %v253 = vmax.f32 %v249, %v251
  %v254 = vmax.f32 %v250, %v252
  %v255 = vld [vmem:[%s2] sm:$0xff]
  %v256 = vld [vmem:[%s2 + $0x8] sm:$0xff]
  %258 = vset.pattern.permute.xlu0 0
  %259 = vperm.xlu0 %258, %v255
  %v260 = vpop.permute.xlu0 %259
  %263 = vset.pattern.permute.xlu0 0
  %264 = vperm.xlu0 %263, %v256
  %v265 = vpop.permute.xlu0 %264
  %v267 = vadd.f32 %v253, %v260
  %v268 = vadd.f32 %v254, %v265
  %v269 = vmax.f32 %v267, 0.0
  %v270 = vmax.f32 %v268, 0.0
  %v271 = vpack.c.bf16 %v270, %v269
  %v273 = vunpack.c.l.b16 %v271
  %v274 = vunpack.c.h.b16 %v271
  %v275 = vpack.c.b16 %v273, %v273
  %v276 = vpack.c.b16 %v274, %v274
  %vm279 = vcmask 797696
  %280 = vst.msk [vmem:[%s3] sm:$0xf] %vm279, %v275
  %vm281 = vcmask 795648
  %282 = vst.msk [vmem:[%s3 + $0x4] sm:$0x3] %vm281, %v276
  // Predicated region
  $region14: #{autoencoder_forward.7} parent=0 // pred_check
    _
  $region15: #{autoencoder_forward.7} parent=0 // pred_check_branch
    %284 = sbr.rel (0) target = $region17
  $region16: #{autoencoder_forward.7} parent=0 // pred_region
    _
  $region17: #{autoencoder_forward.7} parent=0 // pred_fallthru
    _
  // Predicated region
  $region18: #{autoencoder_forward.7} parent=0 // pred_check
    _
  $region19: #{autoencoder_forward.7} parent=0 // pred_check_branch
    %286 = sbr.rel (0) target = $region21
  $region20: #{autoencoder_forward.7} parent=0 // pred_region
    _
  $region21: #{autoencoder_forward.7} parent=0 // pred_fallthru
    _

// kernel: autoencoder_forward.8
$region0: #{autoencoder_forward.8}
  #allocation0 [shape = 'u32[]', space=smem, size = 0x4, offset = 0x4, fixed_abs, tag = 'smem constant byte address 0x4 - core index']
  #allocation1 [shape = 'u32[144,128]{1,0:T(1,128)}', space=vmem, size = 0x12000, scoped, tag = 'internal scratch']
  %s0 = inlined_call_operand.vmem [shape: bf16[588,2], index: 0, kind: input, shape index: {}]
  %s1 = inlined_call_operand.vmem [shape: bf16[128,588], index: 1, kind: input, shape index: {}]
  %s2 = inlined_call_operand.vmem [shape: f32[128,1], index: 2, kind: input, shape index: {}]
  %s3 = inlined_call_operand.vmem [shape: bf16[10,128], index: 3, kind: input, shape index: {}]
  %s4 = inlined_call_operand.vmem [shape: f32[10,1], index: 4, kind: input, shape index: {}]
  %s5 = inlined_call_operand.vmem [shape: bf16[144,10], index: 5, kind: input, shape index: {}]
  %s6 = inlined_call_operand.vmem [shape: f32[144,1], index: 6, kind: input, shape index: {}]
  %s7 = inlined_call_operand.vmem [shape: f32[144,1], index: 7, kind: input, shape index: {}]
  %s8 = inlined_call_operand.vmem [shape: bf16[144,2], index: 8, kind: output, shape index: {}]
  %s9 = sld [smem:[#allocation0]]
  $region42: #{autoencoder_forward.8} parent=0
    _
  %s11 = ssub.s32 1, %s9
  %s12 = scalar_select 0, %s11, %s9
  // Predicated region
  $region2: #{autoencoder_forward.8} parent=0 // pred_check
    _
  $region3: #{autoencoder_forward.8} parent=0 // pred_check_branch
    %14 = sbr.rel (0) target = $region5
  $region4: #{autoencoder_forward.8} parent=0 // pred_region
    _
  $region5: #{autoencoder_forward.8} parent=0 // pred_fallthru
    _
  // Predicated region
  $region6: #{autoencoder_forward.8} parent=0 // pred_check
    _
  $region7: #{autoencoder_forward.8} parent=0 // pred_check_branch
    %16 = sbr.rel (0) target = $region9
  $region8: #{autoencoder_forward.8} parent=0 // pred_region
    _
  $region9: #{autoencoder_forward.8} parent=0 // pred_fallthru
    _
  // Predicated region
  $region10: #{autoencoder_forward.8} parent=0 // pred_check
    _
  $region11: #{autoencoder_forward.8} parent=0 // pred_check_branch
    %18 = sbr.rel (0) target = $region13
  $region12: #{autoencoder_forward.8} parent=0 // pred_region
    _
  $region13: #{autoencoder_forward.8} parent=0 // pred_fallthru
    _
  // Predicated region
  $region14: #{autoencoder_forward.8} parent=0 // pred_check
    _
  $region15: #{autoencoder_forward.8} parent=0 // pred_check_branch
    %20 = sbr.rel (0) target = $region17
  $region16: #{autoencoder_forward.8} parent=0 // pred_region
    _
  $region17: #{autoencoder_forward.8} parent=0 // pred_fallthru
    _
  // Predicated region
  $region18: #{autoencoder_forward.8} parent=0 // pred_check
    _
  $region19: #{autoencoder_forward.8} parent=0 // pred_check_branch
    %22 = sbr.rel (0) target = $region21
  $region20: #{autoencoder_forward.8} parent=0 // pred_region
    _
  $region21: #{autoencoder_forward.8} parent=0 // pred_fallthru
    _
  // Predicated region
  $region22: #{autoencoder_forward.8} parent=0 // pred_check
    _
  $region23: #{autoencoder_forward.8} parent=0 // pred_check_branch
    %24 = sbr.rel (0) target = $region25
  $region24: #{autoencoder_forward.8} parent=0 // pred_region
    _
  $region25: #{autoencoder_forward.8} parent=0 // pred_fallthru
    _
  // Predicated region
  $region26: #{autoencoder_forward.8} parent=0 // pred_check
    _
  $region27: #{autoencoder_forward.8} parent=0 // pred_check_branch
    %26 = sbr.rel (0) target = $region29
  $region28: #{autoencoder_forward.8} parent=0 // pred_region
    _
  $region29: #{autoencoder_forward.8} parent=0 // pred_fallthru
    _
  // Predicated region
  $region30: #{autoencoder_forward.8} parent=0 // pred_check
    _
  $region31: #{autoencoder_forward.8} parent=0 // pred_check_branch
    %28 = sbr.rel (0) target = $region33
  $region32: #{autoencoder_forward.8} parent=0 // pred_region
    _
  $region33: #{autoencoder_forward.8} parent=0 // pred_fallthru
    _
  %v30 = vld [vmem:[%s1] sm:$0xff]
  %v31 = vld [vmem:[%s1 + $0x8] sm:$0xff]
  %v32 = vld [vmem:[%s1 + $0x10] sm:$0xf]
  %v33 = vld [vmem:[%s1 + $0x14] sm:$0xff]
  %v34 = vld [vmem:[%s1 + $0x1c] sm:$0xff]
  %v35 = vld [vmem:[%s1 + $0x24] sm:$0xf]
  %v36 = vld [vmem:[%s1 + $0x28] sm:$0xff]
  %v37 = vld [vmem:[%s1 + $0x30] sm:$0xff]
  %v38 = vld [vmem:[%s1 + $0x38] sm:$0xf]
  %v39 = vld [vmem:[%s1 + $0x3c] sm:$0xff]
  %v40 = vld [vmem:[%s1 + $0x44] sm:$0xff]
  %v41 = vld [vmem:[%s1 + $0x4c] sm:$0xf]
  %v42 = vld [vmem:[%s1 + $0x50] sm:$0xff]
  %v43 = vld [vmem:[%s1 + $0x58] sm:$0xff]
  %v44 = vld [vmem:[%s1 + $0x60] sm:$0xf]
  %v45 = vld [vmem:[%s1 + $0x64] sm:$0xff]
  %v46 = vld [vmem:[%s1 + $0x6c] sm:$0xff]
  %v47 = vld [vmem:[%s1 + $0x74] sm:$0xf]
  %v48 = vld [vmem:[%s1 + $0x78] sm:$0xff]
  %v49 = vld [vmem:[%s1 + $0x80] sm:$0xff]
  %v50 = vld [vmem:[%s1 + $0x88] sm:$0xf]
  %v51 = vld [vmem:[%s1 + $0x8c] sm:$0xff]
  %v52 = vld [vmem:[%s1 + $0x94] sm:$0xff]
  %v53 = vld [vmem:[%s1 + $0x9c] sm:$0xf]
  %v54 = vld [vmem:[%s1 + $0xa0] sm:$0xff]
  %v55 = vld [vmem:[%s1 + $0xa8] sm:$0xff]
  %v56 = vld [vmem:[%s1 + $0xb0] sm:$0xf]
  %v57 = vld [vmem:[%s1 + $0xb4] sm:$0xff]
  %v58 = vld [vmem:[%s1 + $0xbc] sm:$0xff]
  %v59 = vld [vmem:[%s1 + $0xc4] sm:$0xf]
  %v60 = vld [vmem:[%s1 + $0xc8] sm:$0xff]
  %v61 = vld [vmem:[%s1 + $0xd0] sm:$0xff]
  %v62 = vld [vmem:[%s1 + $0xd8] sm:$0xf]
  %v63 = vld [vmem:[%s1 + $0xdc] sm:$0xff]
  %v64 = vld [vmem:[%s1 + $0xe4] sm:$0xff]
  %v65 = vld [vmem:[%s1 + $0xec] sm:$0xf]
  %v66 = vld [vmem:[%s1 + $0xf0] sm:$0xff]
  %v67 = vld [vmem:[%s1 + $0xf8] sm:$0xff]
  %v68 = vld [vmem:[%s1 + $0x100] sm:$0xf]
  %v69 = vld [vmem:[%s1 + $0x104] sm:$0xff]
  %v70 = vld [vmem:[%s1 + $0x10c] sm:$0xff]
  %v71 = vld [vmem:[%s1 + $0x114] sm:$0xf]
  %v72 = vld [vmem:[%s1 + $0x118] sm:$0xff]
  %v73 = vld [vmem:[%s1 + $0x120] sm:$0xff]
  %v74 = vld [vmem:[%s1 + $0x128] sm:$0xf]
  %v75 = vld [vmem:[%s1 + $0x12c] sm:$0xff]
  %v76 = vld [vmem:[%s1 + $0x134] sm:$0xff]
  %v77 = vld [vmem:[%s1 + $0x13c] sm:$0xf]
  %v78 = vld [vmem:[%s0] sm:$0xf]
  %v79 = vld [vmem:[%s0 + $0x4] sm:$0xf]
  %v80 = vld [vmem:[%s0 + $0x8] sm:$0xf]
  %v81 = vld [vmem:[%s0 + $0xc] sm:$0xf]
  %v82 = vld [vmem:[%s0 + $0x10] sm:$0xf]
  %v83 = vld [vmem:[%s0 + $0x14] sm:$0xf]
  %v84 = vld [vmem:[%s0 + $0x18] sm:$0xf]
  %v85 = vld [vmem:[%s0 + $0x1c] sm:$0xf]
  %v86 = vld [vmem:[%s0 + $0x20] sm:$0xf]
  %v87 = vld [vmem:[%s0 + $0x24] sm:$0xf]
  %v88 = vld [vmem:[%s0 + $0x28] sm:$0xf]
  %v89 = vld [vmem:[%s0 + $0x2c] sm:$0xf]
  %v90 = vld [vmem:[%s0 + $0x30] sm:$0xf]
  %v91 = vld [vmem:[%s0 + $0x34] sm:$0xf]
  %v92 = vld [vmem:[%s0 + $0x38] sm:$0xf]
  %v93 = vld [vmem:[%s0 + $0x3c] sm:$0xf]
  %v94 = vld [vmem:[%s0 + $0x40] sm:$0xf]
  %v95 = vld [vmem:[%s0 + $0x44] sm:$0xf]
  %v96 = vld [vmem:[%s0 + $0x48] sm:$0xf]
  %v97 = vld [vmem:[%s0 + $0x4c] sm:$0xf]
  %v98 = vld [vmem:[%s0 + $0x50] sm:$0xf]
  %v99 = vld [vmem:[%s0 + $0x54] sm:$0xf]
  %v100 = vld [vmem:[%s0 + $0x58] sm:$0xf]
  %v101 = vld [vmem:[%s0 + $0x5c] sm:$0xf]
  %v102 = vld [vmem:[%s0 + $0x60] sm:$0xf]
  %v103 = vld [vmem:[%s0 + $0x64] sm:$0xf]
  %v104 = vld [vmem:[%s0 + $0x68] sm:$0xf]
  %v105 = vld [vmem:[%s0 + $0x6c] sm:$0xf]
  %v106 = vld [vmem:[%s0 + $0x70] sm:$0xf]
  %v107 = vld [vmem:[%s0 + $0x74] sm:$0xf]
  %v108 = vld [vmem:[%s0 + $0x78] sm:$0xf]
  %v109 = vld [vmem:[%s0 + $0x7c] sm:$0xf]
  %v110 = vld [vmem:[%s0 + $0x80] sm:$0xf]
  %v111 = vld [vmem:[%s0 + $0x84] sm:$0xf]
  %v112 = vld [vmem:[%s0 + $0x88] sm:$0xf]
  %v113 = vld [vmem:[%s0 + $0x8c] sm:$0xf]
  %v114 = vld [vmem:[%s0 + $0x90] sm:$0xf]
  %v115 = vld [vmem:[%s0 + $0x94] sm:$0xf]
  %v116 = vld [vmem:[%s0 + $0x98] sm:$0xf]
  %v117 = vld [vmem:[%s0 + $0x9c] sm:$0xf]
  %v118 = vld [vmem:[%s0 + $0xa0] sm:$0xf]
  %v119 = vld [vmem:[%s0 + $0xa4] sm:$0xf]
  %v120 = vld [vmem:[%s0 + $0xa8] sm:$0xf]
  %v121 = vld [vmem:[%s0 + $0xac] sm:$0xf]
  %v122 = vld [vmem:[%s0 + $0xb0] sm:$0xf]
  %v123 = vld [vmem:[%s0 + $0xb4] sm:$0xf]
  %v124 = vld [vmem:[%s0 + $0xb8] sm:$0xf]
  %v125 = vld [vmem:[%s0 + $0xbc] sm:$0xf]
  %v126 = vld [vmem:[%s0 + $0xc0] sm:$0xf]
  %v127 = vld [vmem:[%s0 + $0xc4] sm:$0xf]
  %v128 = vld [vmem:[%s0 + $0xc8] sm:$0xf]
  %v129 = vld [vmem:[%s0 + $0xcc] sm:$0xf]
  %v130 = vld [vmem:[%s0 + $0xd0] sm:$0xf]
  %v131 = vld [vmem:[%s0 + $0xd4] sm:$0xf]
  %v132 = vld [vmem:[%s0 + $0xd8] sm:$0xf]
  %v133 = vld [vmem:[%s0 + $0xdc] sm:$0xf]
  %v134 = vld [vmem:[%s0 + $0xe0] sm:$0xf]
  %v135 = vld [vmem:[%s0 + $0xe4] sm:$0xf]
  %v136 = vld [vmem:[%s0 + $0xe8] sm:$0xf]
  %v137 = vld [vmem:[%s0 + $0xec] sm:$0xf]
  %v138 = vld [vmem:[%s0 + $0xf0] sm:$0xf]
  %v139 = vld [vmem:[%s0 + $0xf4] sm:$0xf]
  %v140 = vld [vmem:[%s0 + $0xf8] sm:$0xf]
  %v141 = vld [vmem:[%s0 + $0xfc] sm:$0xf]
  %v142 = vld [vmem:[%s0 + $0x100] sm:$0xf]
  %v143 = vld [vmem:[%s0 + $0x104] sm:$0xf]
  %v144 = vld [vmem:[%s0 + $0x108] sm:$0xf]
  %v145 = vld [vmem:[%s0 + $0x10c] sm:$0xf]
  %v146 = vld [vmem:[%s0 + $0x110] sm:$0xf]
  %v147 = vld [vmem:[%s0 + $0x114] sm:$0xf]
  %v148 = vld [vmem:[%s0 + $0x118] sm:$0xf]
  %v149 = vld [vmem:[%s0 + $0x11c] sm:$0xf]
  %v150 = vld [vmem:[%s0 + $0x120] sm:$0xf]
  %v151 = vld [vmem:[%s0 + $0x124] sm:$0x3]
  %v152 = vld [vmem:[%s2] sm:$0xff]
  %v153 = vld [vmem:[%s2 + $0x8] sm:$0xff]
  %v154 = vld [vmem:[%s2 + $0x10] sm:$0xff]
  %v155 = vld [vmem:[%s2 + $0x18] sm:$0xff]
  %v156 = vld [vmem:[%s2 + $0x20] sm:$0xff]
  %v157 = vld [vmem:[%s2 + $0x28] sm:$0xff]
  %v158 = vld [vmem:[%s2 + $0x30] sm:$0xff]
  %v159 = vld [vmem:[%s2 + $0x38] sm:$0xff]
  %v160 = vld [vmem:[%s2 + $0x40] sm:$0xff]
  %v161 = vld [vmem:[%s2 + $0x48] sm:$0xff]
  %v162 = vld [vmem:[%s2 + $0x50] sm:$0xff]
  %v163 = vld [vmem:[%s2 + $0x58] sm:$0xff]
  %v164 = vld [vmem:[%s2 + $0x60] sm:$0xff]
  %v165 = vld [vmem:[%s2 + $0x68] sm:$0xff]
  %v166 = vld [vmem:[%s2 + $0x70] sm:$0xff]
  %v167 = vld [vmem:[%s2 + $0x78] sm:$0xff]
  %169 = vset.pattern.permute.xlu0 0
  %170 = vperm.xlu0 %169, %v152
  %v171 = vpop.permute.xlu0 %170
  %174 = vset.pattern.permute.xlu0 0
  %175 = vperm.xlu0 %174, %v153
  %v176 = vpop.permute.xlu0 %175
  %179 = vset.pattern.permute.xlu0 0
  %180 = vperm.xlu0 %179, %v154
  %v181 = vpop.permute.xlu0 %180
  %184 = vset.pattern.permute.xlu0 0
  %185 = vperm.xlu0 %184, %v155
  %v186 = vpop.permute.xlu0 %185
  %189 = vset.pattern.permute.xlu0 0
  %190 = vperm.xlu0 %189, %v156
  %v191 = vpop.permute.xlu0 %190
  %194 = vset.pattern.permute.xlu0 0
  %195 = vperm.xlu0 %194, %v157
  %v196 = vpop.permute.xlu0 %195
  %199 = vset.pattern.permute.xlu0 0
  %200 = vperm.xlu0 %199, %v158
  %v201 = vpop.permute.xlu0 %200
  %204 = vset.pattern.permute.xlu0 0
  %205 = vperm.xlu0 %204, %v159
  %v206 = vpop.permute.xlu0 %205
  %209 = vset.pattern.permute.xlu0 0
  %210 = vperm.xlu0 %209, %v160
  %v211 = vpop.permute.xlu0 %210
  %214 = vset.pattern.permute.xlu0 0
  %215 = vperm.xlu0 %214, %v161
  %v216 = vpop.permute.xlu0 %215
  %219 = vset.pattern.permute.xlu0 0
  %220 = vperm.xlu0 %219, %v162
  %v221 = vpop.permute.xlu0 %220
  %224 = vset.pattern.permute.xlu0 0
  %225 = vperm.xlu0 %224, %v163
  %v226 = vpop.permute.xlu0 %225
  %229 = vset.pattern.permute.xlu0 0
  %230 = vperm.xlu0 %229, %v164
  %v231 = vpop.permute.xlu0 %230
  %234 = vset.pattern.permute.xlu0 0
  %235 = vperm.xlu0 %234, %v165
  %v236 = vpop.permute.xlu0 %235
  %239 = vset.pattern.permute.xlu0 0
  %240 = vperm.xlu0 %239, %v166
  %v241 = vpop.permute.xlu0 %240
  %244 = vset.pattern.permute.xlu0 0
  %245 = vperm.xlu0 %244, %v167
  %v246 = vpop.permute.xlu0 %245
  %v296 = vunpack.c.l.b16 %v30
  %v297 = vunpack.c.h.b16 %v30
  %v298 = vunpack.c.l.b16 %v31
  %v299 = vunpack.c.h.b16 %v31
  %v300 = vunpack.c.l.b16 %v32
  %v301 = vunpack.c.l.b16 %v33
  %v302 = vunpack.c.h.b16 %v33
  %v303 = vunpack.c.l.b16 %v34
  %v304 = vunpack.c.h.b16 %v34
  %v305 = vunpack.c.l.b16 %v35
  %v306 = vunpack.c.l.b16 %v36
  %v307 = vunpack.c.h.b16 %v36
  %v308 = vunpack.c.l.b16 %v37
  %v309 = vunpack.c.h.b16 %v37
  %v310 = vunpack.c.l.b16 %v38
  %v311 = vunpack.c.l.b16 %v39
  %v312 = vunpack.c.h.b16 %v39
  %v313 = vunpack.c.l.b16 %v40
  %v314 = vunpack.c.h.b16 %v40
  %v315 = vunpack.c.l.b16 %v41
  %v316 = vunpack.c.l.b16 %v42
  %v317 = vunpack.c.h.b16 %v42
  %v318 = vunpack.c.l.b16 %v43
  %v319 = vunpack.c.h.b16 %v43
  %v320 = vunpack.c.l.b16 %v44
  %v321 = vunpack.c.l.b16 %v45
  %v322 = vunpack.c.h.b16 %v45
  %v323 = vunpack.c.l.b16 %v46
  %v324 = vunpack.c.h.b16 %v46
  %v325 = vunpack.c.l.b16 %v47
  %v326 = vunpack.c.l.b16 %v48
  %v327 = vunpack.c.h.b16 %v48
  %v328 = vunpack.c.l.b16 %v49
  %v329 = vunpack.c.h.b16 %v49
  %v330 = vunpack.c.l.b16 %v50
  %v331 = vunpack.c.l.b16 %v51
  %v332 = vunpack.c.h.b16 %v51
  %v333 = vunpack.c.l.b16 %v52
  %v334 = vunpack.c.h.b16 %v52
  %v335 = vunpack.c.l.b16 %v53
  %v336 = vunpack.c.l.b16 %v54
  %v337 = vunpack.c.h.b16 %v54
  %v338 = vunpack.c.l.b16 %v55
  %v339 = vunpack.c.h.b16 %v55
  %v340 = vunpack.c.l.b16 %v56
  %v341 = vunpack.c.l.b16 %v57
  %v342 = vunpack.c.h.b16 %v57
  %v343 = vunpack.c.l.b16 %v58
  %v344 = vunpack.c.h.b16 %v58
  %v345 = vunpack.c.l.b16 %v59
  %v346 = vunpack.c.l.b16 %v60
  %v347 = vunpack.c.h.b16 %v60
  %v348 = vunpack.c.l.b16 %v61
  %v349 = vunpack.c.h.b16 %v61
  %v350 = vunpack.c.l.b16 %v62
  %v351 = vunpack.c.l.b16 %v63
  %v352 = vunpack.c.h.b16 %v63
  %v353 = vunpack.c.l.b16 %v64
  %v354 = vunpack.c.h.b16 %v64
  %v355 = vunpack.c.l.b16 %v65
  %v356 = vunpack.c.l.b16 %v66
  %v357 = vunpack.c.h.b16 %v66
  %v358 = vunpack.c.l.b16 %v67
  %v359 = vunpack.c.h.b16 %v67
  %v360 = vunpack.c.l.b16 %v68
  %v361 = vunpack.c.l.b16 %v69
  %v362 = vunpack.c.h.b16 %v69
  %v363 = vunpack.c.l.b16 %v70
  %v364 = vunpack.c.h.b16 %v70
  %v365 = vunpack.c.l.b16 %v71
  %v366 = vunpack.c.l.b16 %v72
  %v367 = vunpack.c.h.b16 %v72
  %v368 = vunpack.c.l.b16 %v73
  %v369 = vunpack.c.h.b16 %v73
  %v370 = vunpack.c.l.b16 %v74
  %v371 = vunpack.c.l.b16 %v75
  %v372 = vunpack.c.h.b16 %v75
  %v373 = vunpack.c.l.b16 %v76
  %v374 = vunpack.c.h.b16 %v76
  %v375 = vunpack.c.l.b16 %v77
  %v376 = vpack.c.b16 %v301, %v296
  %v377 = vpack.c.b16 %v302, %v297
  %v378 = vpack.c.b16 %v303, %v298
  %v379 = vpack.c.b16 %v304, %v299
  %v380 = vpack.c.b16 %v305, %v300
  %v381 = vpack.c.b16 %v311, %v306
  %v382 = vpack.c.b16 %v312, %v307
  %v383 = vpack.c.b16 %v313, %v308
  %v384 = vpack.c.b16 %v314, %v309
  %v385 = vpack.c.b16 %v315, %v310
  %v386 = vpack.c.b16 %v321, %v316
  %v387 = vpack.c.b16 %v322, %v317
  %v388 = vpack.c.b16 %v323, %v318
  %v389 = vpack.c.b16 %v324, %v319
  %v390 = vpack.c.b16 %v325, %v320
  %v391 = vpack.c.b16 %v331, %v326
  %v392 = vpack.c.b16 %v332, %v327
  %v393 = vpack.c.b16 %v333, %v328
  %v394 = vpack.c.b16 %v334, %v329
  %v395 = vpack.c.b16 %v335, %v330
  %v396 = vpack.c.b16 %v341, %v336
  %v397 = vpack.c.b16 %v342, %v337
  %v398 = vpack.c.b16 %v343, %v338
  %v399 = vpack.c.b16 %v344, %v339
  %v400 = vpack.c.b16 %v345, %v340
  %v401 = vpack.c.b16 %v351, %v346
  %v402 = vpack.c.b16 %v352, %v347
  %v403 = vpack.c.b16 %v353, %v348
  %v404 = vpack.c.b16 %v354, %v349
  %v405 = vpack.c.b16 %v355, %v350
  %v406 = vpack.c.b16 %v361, %v356
  %v407 = vpack.c.b16 %v362, %v357
  %v408 = vpack.c.b16 %v363, %v358
  %v409 = vpack.c.b16 %v364, %v359
  %v410 = vpack.c.b16 %v365, %v360
  %v411 = vpack.c.b16 %v371, %v366
  %v412 = vpack.c.b16 %v372, %v367
  %v413 = vpack.c.b16 %v373, %v368
  %v414 = vpack.c.b16 %v374, %v369
  %v415 = vpack.c.b16 %v375, %v370
  %v522 = vunpack.c.l.b16 %v78
  %v523 = vunpack.c.l.b16 %v79
  %v524 = vunpack.c.l.b16 %v80
  %v525 = vunpack.c.l.b16 %v81
  %v526 = vunpack.c.l.b16 %v82
  %v527 = vunpack.c.l.b16 %v83
  %v528 = vunpack.c.l.b16 %v84
  %v529 = vunpack.c.l.b16 %v85
  %v530 = vunpack.c.l.b16 %v86
  %v531 = vunpack.c.l.b16 %v87
  %v532 = vunpack.c.l.b16 %v88
  %v533 = vunpack.c.l.b16 %v89
  %v534 = vunpack.c.l.b16 %v90
  %v535 = vunpack.c.l.b16 %v91
  %v536 = vunpack.c.l.b16 %v92
  %v537 = vunpack.c.l.b16 %v93
  %v538 = vunpack.c.l.b16 %v94
  %v539 = vunpack.c.l.b16 %v95
  %v540 = vunpack.c.l.b16 %v96
  %v541 = vunpack.c.l.b16 %v97
  %v542 = vunpack.c.l.b16 %v98
  %v543 = vunpack.c.l.b16 %v99
  %v544 = vunpack.c.l.b16 %v100
  %v545 = vunpack.c.l.b16 %v101
  %v546 = vunpack.c.l.b16 %v102
  %v547 = vunpack.c.l.b16 %v103
  %v548 = vunpack.c.l.b16 %v104
  %v549 = vunpack.c.l.b16 %v105
  %v550 = vunpack.c.l.b16 %v106
  %v551 = vunpack.c.l.b16 %v107
  %v552 = vunpack.c.l.b16 %v108
  %v553 = vunpack.c.l.b16 %v109
  %v554 = vunpack.c.l.b16 %v110
  %v555 = vunpack.c.l.b16 %v111
  %v556 = vunpack.c.l.b16 %v112
  %v557 = vunpack.c.l.b16 %v113
  %v558 = vunpack.c.l.b16 %v114
  %v559 = vunpack.c.l.b16 %v115
  %v560 = vunpack.c.l.b16 %v116
  %v561 = vunpack.c.l.b16 %v117
  %v562 = vunpack.c.l.b16 %v118
  %v563 = vunpack.c.l.b16 %v119
  %v564 = vunpack.c.l.b16 %v120
  %v565 = vunpack.c.l.b16 %v121
  %v566 = vunpack.c.l.b16 %v122
  %v567 = vunpack.c.l.b16 %v123
  %v568 = vunpack.c.l.b16 %v124
  %v569 = vunpack.c.l.b16 %v125
  %v570 = vunpack.c.l.b16 %v126
  %v571 = vunpack.c.l.b16 %v127
  %v572 = vunpack.c.l.b16 %v128
  %v573 = vunpack.c.l.b16 %v129
  %v574 = vunpack.c.l.b16 %v130
  %v575 = vunpack.c.l.b16 %v131
  %v576 = vunpack.c.l.b16 %v132
  %v577 = vunpack.c.l.b16 %v133
  %v578 = vunpack.c.l.b16 %v134
  %v579 = vunpack.c.l.b16 %v135
  %v580 = vunpack.c.l.b16 %v136
  %v581 = vunpack.c.l.b16 %v137
  %v582 = vunpack.c.l.b16 %v138
  %v583 = vunpack.c.l.b16 %v139
  %v584 = vunpack.c.l.b16 %v140
  %v585 = vunpack.c.l.b16 %v141
  %v586 = vunpack.c.l.b16 %v142
  %v587 = vunpack.c.l.b16 %v143
  %v588 = vunpack.c.l.b16 %v144
  %v589 = vunpack.c.l.b16 %v145
  %v590 = vunpack.c.l.b16 %v146
  %v591 = vunpack.c.l.b16 %v147
  %v592 = vunpack.c.l.b16 %v148
  %v593 = vunpack.c.l.b16 %v149
  %v594 = vunpack.c.l.b16 %v150
  %v595 = vunpack.c.l.b16 %v151
  %v596 = vpack.c.b16 %v523, %v522
  %v597 = vpack.c.b16 %v525, %v524
  %v598 = vpack.c.b16 %v527, %v526
  %v599 = vpack.c.b16 %v529, %v528
  %v600 = vpack.c.b16 %v531, %v530
  %v601 = vpack.c.b16 %v533, %v532
  %v602 = vpack.c.b16 %v535, %v534
  %v603 = vpack.c.b16 %v537, %v536
  %v604 = vpack.c.b16 %v539, %v538
  %v605 = vpack.c.b16 %v541, %v540
  %v606 = vpack.c.b16 %v543, %v542
  %v607 = vpack.c.b16 %v545, %v544
  %v608 = vpack.c.b16 %v547, %v546
  %v609 = vpack.c.b16 %v549, %v548
  %v610 = vpack.c.b16 %v551, %v550
  %v611 = vpack.c.b16 %v553, %v552
  %v612 = vpack.c.b16 %v555, %v554
  %v613 = vpack.c.b16 %v557, %v556
  %v614 = vpack.c.b16 %v559, %v558
  %v615 = vpack.c.b16 %v561, %v560
  %v616 = vpack.c.b16 %v563, %v562
  %v617 = vpack.c.b16 %v565, %v564
  %v618 = vpack.c.b16 %v567, %v566
  %v619 = vpack.c.b16 %v569, %v568
  %v620 = vpack.c.b16 %v571, %v570
  %v621 = vpack.c.b16 %v573, %v572
  %v622 = vpack.c.b16 %v575, %v574
  %v623 = vpack.c.b16 %v577, %v576
  %v624 = vpack.c.b16 %v579, %v578
  %v625 = vpack.c.b16 %v581, %v580
  %v626 = vpack.c.b16 %v583, %v582
  %v627 = vpack.c.b16 %v585, %v584
  %v628 = vpack.c.b16 %v587, %v586
  %v629 = vpack.c.b16 %v589, %v588
  %v630 = vpack.c.b16 %v591, %v590
  %v631 = vpack.c.b16 %v593, %v592
  %v632 = vpack.c.b16 %v595, %v594
  %vm669 = vcmask 621568
  %v671 = vsel %vm669, %v380, 0
  %v674 = vsel %vm669, %v385, 0
  %v677 = vsel %vm669, %v390, 0
  %v680 = vsel %vm669, %v395, 0
  %v683 = vsel %vm669, %v400, 0
  %v686 = vsel %vm669, %v405, 0
  %v689 = vsel %vm669, %v410, 0
  %v692 = vsel %vm669, %v415, 0
  %vm694 = vcmask 1045504
  %v696 = vsel %vm694, %v632, 0
  %698 = vmatprep.subr.bf16.mxu0 0
  %699 = vmatpush1.bf16.msra.mxu0 %v596
  %700 = vmatprep.subr.bf16.mxu0 0
  %701 = vmatpush1.bf16.msra.mxu0 %v597
  %702 = vmatprep.subr.bf16.mxu0 0
  %703 = vmatpush1.bf16.msra.mxu0 %v598
  %704 = vmatprep.subr.bf16.mxu0 0
  %705 = vmatpush1.bf16.msra.mxu0 %v599
  %706 = vmatprep.subr.bf16.mxu0 0
  %707 = vmatpush1.bf16.msra.mxu0 %v600
  %708 = vmatprep.subr.bf16.mxu0 0
  %709 = vmatpush1.bf16.msra.mxu0 %v601
  %710 = vmatprep.subr.bf16.mxu0 0
  %711 = vmatpush1.bf16.msra.mxu0 %v602
  %712 = vmatprep.subr.bf16.mxu0 0
  %713 = vmatpush1.bf16.msra.mxu0 %v603
  %714 = vmatprep.subr.bf16.mxu0 0
  %715 = vmatpush1.bf16.msra.mxu0 %v604
  %716 = vmatprep.subr.bf16.mxu0 0
  %717 = vmatpush1.bf16.msra.mxu0 %v605
  %718 = vmatprep.subr.bf16.mxu0 0
  %719 = vmatpush1.bf16.msra.mxu0 %v606
  %720 = vmatprep.subr.bf16.mxu0 0
  %721 = vmatpush1.bf16.msra.mxu0 %v607
  %722 = vmatprep.subr.bf16.mxu0 0
  %723 = vmatpush1.bf16.msra.mxu0 %v608
  %724 = vmatprep.subr.bf16.mxu0 0
  %725 = vmatpush1.bf16.msra.mxu0 %v609
  %726 = vmatprep.subr.bf16.mxu0 0
  %727 = vmatpush1.bf16.msra.mxu0 %v610
  %728 = vmatprep.subr.bf16.mxu0 0
  %729 = vmatpush1.bf16.msra.mxu0 %v611
  %730 = vmatprep.mubr.bf16.mxu0 %v377
  %731 = vmatmul.mubr.bf16.gmra.mrb[0].mxu0 %v376
  %v732 = vpop.f32.mrb[0].mxu0
  %v733 = vadd.f32 %v171, %v732
  %v734 = vpop.f32.mrb[0].mxu0
  %v735 = vpop.f32.mrb[0].mxu0
  %v736 = vadd.f32 %v176, %v735
  %v737 = vpop.f32.mrb[0].mxu0
  %738 = vmatprep.mubr.bf16.mxu0 %v382
  %739 = vmatmul.mubr.bf16.gmra.mrb[0].mxu0 %v381
  %v740 = vpop.f32.mrb[0].mxu0
  %v741 = vadd.f32 %v181, %v740
  %v742 = vpop.f32.mrb[0].mxu0
  %v743 = vpop.f32.mrb[0].mxu0
  %v744 = vadd.f32 %v186, %v743
  %v745 = vpop.f32.mrb[0].mxu0
  %746 = vmatprep.mubr.bf16.mxu0 %v387
  %747 = vmatmul.mubr.bf16.gmra.mrb[0].mxu0 %v386
  %v748 = vpop.f32.mrb[0].mxu0
  %v749 = vadd.f32 %v191, %v748
  %v750 = vpop.f32.mrb[0].mxu0
  %v751 = vpop.f32.mrb[0].mxu0
  %v752 = vadd.f32 %v196, %v751
  %v753 = vpop.f32.mrb[0].mxu0
  %754 = vmatprep.mubr.bf16.mxu0 %v392
  %755 = vmatmul.mubr.bf16.gmra.mrb[0].mxu0 %v391
  %v756 = vpop.f32.mrb[0].mxu0
  %v757 = vadd.f32 %v201, %v756
  %v758 = vpop.f32.mrb[0].mxu0
  %v759 = vpop.f32.mrb[0].mxu0
  %v760 = vadd.f32 %v206, %v759
  %v761 = vpop.f32.mrb[0].mxu0
  %762 = vmatprep.mubr.bf16.mxu0 %v397
  %763 = vmatmul.mubr.bf16.gmra.mrb[0].mxu0 %v396
  %v764 = vpop.f32.mrb[0].mxu0
  %v765 = vadd.f32 %v211, %v764
  %v766 = vpop.f32.mrb[0].mxu0
  %v767 = vpop.f32.mrb[0].mxu0
  %v768 = vadd.f32 %v216, %v767
  %v769 = vpop.f32.mrb[0].mxu0
  %770 = vmatprep.mubr.bf16.mxu0 %v402
  %771 = vmatmul.mubr.bf16.gmra.mrb[0].mxu0 %v401
  %v772 = vpop.f32.mrb[0].mxu0
  %v773 = vadd.f32 %v221, %v772
  %v774 = vpop.f32.mrb[0].mxu0
  %v775 = vpop.f32.mrb[0].mxu0
  %v776 = vadd.f32 %v226, %v775
  %v777 = vpop.f32.mrb[0].mxu0
  %778 = vmatprep.mubr.bf16.mxu0 %v407
  %779 = vmatmul.mubr.bf16.gmra.mrb[0].mxu0 %v406
  %v780 = vpop.f32.mrb[0].mxu0
  %v781 = vadd.f32 %v231, %v780
  %v782 = vpop.f32.mrb[0].mxu0
  %v783 = vpop.f32.mrb[0].mxu0
  %v784 = vadd.f32 %v236, %v783
  %v785 = vpop.f32.mrb[0].mxu0
  %786 = vmatprep.mubr.bf16.mxu0 %v412
  %787 = vmatmul.mubr.bf16.gmra.mrb[0].mxu0 %v411
  %v788 = vpop.f32.mrb[0].mxu0
  %v789 = vadd.f32 %v241, %v788
  %v790 = vpop.f32.mrb[0].mxu0
  %v791 = vpop.f32.mrb[0].mxu0
  %v792 = vadd.f32 %v246, %v791
  %v793 = vpop.f32.mrb[0].mxu0
  %794 = vdwg.mxu0
  %795 = vmatprep.subr.bf16.mxu0 0
  %796 = vmatpush1.bf16.msra.mxu0 %v612
  %797 = vmatprep.subr.bf16.mxu0 0
  %798 = vmatpush1.bf16.msra.mxu0 %v613
  %799 = vmatprep.subr.bf16.mxu0 0
  %800 = vmatpush1.bf16.msra.mxu0 %v614
  %801 = vmatprep.subr.bf16.mxu0 0
  %802 = vmatpush1.bf16.msra.mxu0 %v615
  %803 = vmatprep.subr.bf16.mxu0 0
  %804 = vmatpush1.bf16.msra.mxu0 %v616
  %805 = vmatprep.subr.bf16.mxu0 0
  %806 = vmatpush1.bf16.msra.mxu0 %v617
  %807 = vmatprep.subr.bf16.mxu0 0
  %808 = vmatpush1.bf16.msra.mxu0 %v618
  %809 = vmatprep.subr.bf16.mxu0 0
  %810 = vmatpush1.bf16.msra.mxu0 %v619
  %811 = vmatprep.subr.bf16.mxu0 0
  %812 = vmatpush1.bf16.msra.mxu0 %v620
  %813 = vmatprep.subr.bf16.mxu0 0
  %814 = vmatpush1.bf16.msra.mxu0 %v621
  %815 = vmatprep.subr.bf16.mxu0 0
  %816 = vmatpush1.bf16.msra.mxu0 %v622
  %817 = vmatprep.subr.bf16.mxu0 0
  %818 = vmatpush1.bf16.msra.mxu0 %v623
  %819 = vmatprep.subr.bf16.mxu0 0
  %820 = vmatpush1.bf16.msra.mxu0 %v624
  %821 = vmatprep.subr.bf16.mxu0 0
  %822 = vmatpush1.bf16.msra.mxu0 %v625
  %823 = vmatprep.subr.bf16.mxu0 0
  %824 = vmatpush1.bf16.msra.mxu0 %v626
  %825 = vmatprep.subr.bf16.mxu0 0
  %826 = vmatpush1.bf16.msra.mxu0 %v627
  %827 = vmatprep.mubr.bf16.mxu0 %v379
  %828 = vmatmul.mubr.bf16.gmra.mrb[0].mxu0 %v378
  %v829 = vpop.f32.mrb[0].mxu0
  %v830 = vadd.f32 %v733, %v829
  %v831 = vpop.f32.mrb[0].mxu0
  %v832 = vpop.f32.mrb[0].mxu0
  %v833 = vadd.f32 %v736, %v832
  %v834 = vpop.f32.mrb[0].mxu0
  %835 = vmatprep.mubr.bf16.mxu0 %v384
  %836 = vmatmul.mubr.bf16.gmra.mrb[0].mxu0 %v383
  %v837 = vpop.f32.mrb[0].mxu0
  %v838 = vadd.f32 %v741, %v837
  %v839 = vpop.f32.mrb[0].mxu0
  %v840 = vpop.f32.mrb[0].mxu0
  %v841 = vadd.f32 %v744, %v840
  %v842 = vpop.f32.mrb[0].mxu0
  %843 = vmatprep.mubr.bf16.mxu0 %v389
  %844 = vmatmul.mubr.bf16.gmra.mrb[0].mxu0 %v388
  %v845 = vpop.f32.mrb[0].mxu0
  %v846 = vadd.f32 %v749, %v845
  %v847 = vpop.f32.mrb[0].mxu0
  %v848 = vpop.f32.mrb[0].mxu0
  %v849 = vadd.f32 %v752, %v848
  %v850 = vpop.f32.mrb[0].mxu0
  %851 = vmatprep.mubr.bf16.mxu0 %v394
  %852 = vmatmul.mubr.bf16.gmra.mrb[0].mxu0 %v393
  %v853 = vpop.f32.mrb[0].mxu0
  %v854 = vadd.f32 %v757, %v853
  %v855 = vpop.f32.mrb[0].mxu0
  %v856 = vpop.f32.mrb[0].mxu0
  %v857 = vadd.f32 %v760, %v856
  %v858 = vpop.f32.mrb[0].mxu0
  %859 = vmatprep.mubr.bf16.mxu0 %v399
  %860 = vmatmul.mubr.bf16.gmra.mrb[0].mxu0 %v398
  %v861 = vpop.f32.mrb[0].mxu0
  %v862 = vadd.f32 %v765, %v861
  %v863 = vpop.f32.mrb[0].mxu0
  %v864 = vpop.f32.mrb[0].mxu0
  %v865 = vadd.f32 %v768, %v864
  %v866 = vpop.f32.mrb[0].mxu0
  %867 = vmatprep.mubr.bf16.mxu0 %v404
  %868 = vmatmul.mubr.bf16.gmra.mrb[0].mxu0 %v403
  %v869 = vpop.f32.mrb[0].mxu0
  %v870 = vadd.f32 %v773, %v869
  %v871 = vpop.f32.mrb[0].mxu0
  %v872 = vpop.f32.mrb[0].mxu0
  %v873 = vadd.f32 %v776, %v872
  %v874 = vpop.f32.mrb[0].mxu0
  %875 = vmatprep.mubr.bf16.mxu0 %v409
  %876 = vmatmul.mubr.bf16.gmra.mrb[0].mxu0 %v408
  %v877 = vpop.f32.mrb[0].mxu0
  %v878 = vadd.f32 %v781, %v877
  %v879 = vpop.f32.mrb[0].mxu0
  %v880 = vpop.f32.mrb[0].mxu0
  %v881 = vadd.f32 %v784, %v880
  %v882 = vpop.f32.mrb[0].mxu0
  %883 = vmatprep.mubr.bf16.mxu0 %v414
  %884 = vmatmul.mubr.bf16.gmra.mrb[0].mxu0 %v413
  %v885 = vpop.f32.mrb[0].mxu0
  %v886 = vadd.f32 %v789, %v885
  %v887 = vpop.f32.mrb[0].mxu0
  %v888 = vpop.f32.mrb[0].mxu0
  %v889 = vadd.f32 %v792, %v888
  %v890 = vpop.f32.mrb[0].mxu0
  %891 = vdwg.mxu0
  %892 = vmatprep.subr.bf16.mxu0 0
  %893 = vmatpush1.bf16.msra.mxu0 %v628
  %894 = vmatprep.subr.bf16.mxu0 0
  %895 = vmatpush1.bf16.msra.mxu0 %v629
  %896 = vmatprep.subr.bf16.mxu0 0
  %897 = vmatpush1.bf16.msra.mxu0 %v630
  %898 = vmatprep.subr.bf16.mxu0 0
  %899 = vmatpush1.bf16.msra.mxu0 %v631
  %900 = vmatprep.subr.bf16.mxu0 0
  %901 = vmatpush1.bf16.msra.mxu0 %v696
  %902 = vmatprep.subr.bf16.mxu0 0
  %903 = vmatpush1.bf16.msra.mxu0 0
  %904 = vmatprep.subr.bf16.mxu0 0
  %905 = vmatpush1.bf16.msra.mxu0 0
  %906 = vmatprep.subr.bf16.mxu0 0
  %907 = vmatpush1.bf16.msra.mxu0 0
  %908 = vmatprep.subr.bf16.mxu0 0
  %909 = vmatpush1.bf16.msra.mxu0 0
  %910 = vmatprep.subr.bf16.mxu0 0
  %911 = vmatpush1.bf16.msra.mxu0 0
  %912 = vmatprep.subr.bf16.mxu0 0
  %913 = vmatpush1.bf16.msra.mxu0 0
  %914 = vmatprep.subr.bf16.mxu0 0
  %915 = vmatpush1.bf16.msra.mxu0 0
  %916 = vmatprep.subr.bf16.mxu0 0
  %917 = vmatpush1.bf16.msra.mxu0 0
  %918 = vmatprep.subr.bf16.mxu0 0
  %919 = vmatpush1.bf16.msra.mxu0 0
  %920 = vmatprep.subr.bf16.mxu0 0
  %921 = vmatpush1.bf16.msra.mxu0 0
  %922 = vmatprep.subr.bf16.mxu0 0
  %923 = vmatpush1.bf16.msra.mxu0 0
  %924 = vmatprep.mubr.bf16.mxu0 0
  %925 = vmatmul.mubr.bf16.gmra.mrb[0].mxu0 %v671
  %v926 = vpop.f32.mrb[0].mxu0
  %v927 = vadd.f32 %v830, %v926
  %v928 = vpop.f32.mrb[0].mxu0
  %v929 = vpop.f32.mrb[0].mxu0
  %v930 = vadd.f32 %v833, %v929
  %v931 = vpop.f32.mrb[0].mxu0
  %932 = vmatprep.mubr.bf16.mxu0 0
  %933 = vmatmul.mubr.bf16.gmra.mrb[0].mxu0 %v674
  %v934 = vpop.f32.mrb[0].mxu0
  %v935 = vadd.f32 %v838, %v934
  %v936 = vpop.f32.mrb[0].mxu0
  %v937 = vpop.f32.mrb[0].mxu0
  %v938 = vadd.f32 %v841, %v937
  %v939 = vpop.f32.mrb[0].mxu0
  %940 = vmatprep.mubr.bf16.mxu0 0
  %941 = vmatmul.mubr.bf16.gmra.mrb[0].mxu0 %v677
  %v942 = vpop.f32.mrb[0].mxu0
  %v943 = vadd.f32 %v846, %v942
  %v944 = vpop.f32.mrb[0].mxu0
  %v945 = vpop.f32.mrb[0].mxu0
  %v946 = vadd.f32 %v849, %v945
  %v947 = vpop.f32.mrb[0].mxu0
  %948 = vmatprep.mubr.bf16.mxu0 0
  %949 = vmatmul.mubr.bf16.gmra.mrb[0].mxu0 %v680
  %v950 = vpop.f32.mrb[0].mxu0
  %v951 = vadd.f32 %v854, %v950
  %v952 = vpop.f32.mrb[0].mxu0
  %v953 = vpop.f32.mrb[0].mxu0
  %v954 = vadd.f32 %v857, %v953
  %v955 = vpop.f32.mrb[0].mxu0
  %956 = vmatprep.mubr.bf16.mxu0 0
  %957 = vmatmul.mubr.bf16.gmra.mrb[0].mxu0 %v683
  %v958 = vpop.f32.mrb[0].mxu0
  %v959 = vadd.f32 %v862, %v958
  %v960 = vpop.f32.mrb[0].mxu0
  %v961 = vpop.f32.mrb[0].mxu0
  %v962 = vadd.f32 %v865, %v961
  %v963 = vpop.f32.mrb[0].mxu0
  %964 = vmatprep.mubr.bf16.mxu0 0
  %965 = vmatmul.mubr.bf16.gmra.mrb[0].mxu0 %v686
  %v966 = vpop.f32.mrb[0].mxu0
  %v967 = vadd.f32 %v870, %v966
  %v968 = vpop.f32.mrb[0].mxu0
  %v969 = vpop.f32.mrb[0].mxu0
  %v970 = vadd.f32 %v873, %v969
  %v971 = vpop.f32.mrb[0].mxu0
  %972 = vmatprep.mubr.bf16.mxu0 0
  %973 = vmatmul.mubr.bf16.gmra.mrb[0].mxu0 %v689
  %v974 = vpop.f32.mrb[0].mxu0
  %v975 = vadd.f32 %v878, %v974
  %v976 = vpop.f32.mrb[0].mxu0
  %v977 = vpop.f32.mrb[0].mxu0
  %v978 = vadd.f32 %v881, %v977
  %v979 = vpop.f32.mrb[0].mxu0
  %980 = vmatprep.mubr.bf16.mxu0 0
  %981 = vmatmul.mubr.bf16.gmra.mrb[0].mxu0 %v692
  %v982 = vpop.f32.mrb[0].mxu0
  %v983 = vadd.f32 %v886, %v982
  %v984 = vpop.f32.mrb[0].mxu0
  %v985 = vpop.f32.mrb[0].mxu0
  %v986 = vadd.f32 %v889, %v985
  %v987 = vpop.f32.mrb[0].mxu0
  %988 = vdwg.mxu0
  %v989 = vmax.f32 %v927, 0.0
  %v990 = vmax.f32 %v930, 0.0
  %v991 = vmax.f32 %v935, 0.0
  %v992 = vmax.f32 %v938, 0.0
  %v993 = vmax.f32 %v943, 0.0
  %v994 = vmax.f32 %v946, 0.0
  %v995 = vmax.f32 %v951, 0.0
  %v996 = vmax.f32 %v954, 0.0
  %v997 = vmax.f32 %v959, 0.0
  %v998 = vmax.f32 %v962, 0.0
  %v999 = vmax.f32 %v967, 0.0
  %v1000 = vmax.f32 %v970, 0.0
  %v1001 = vmax.f32 %v975, 0.0
  %v1002 = vmax.f32 %v978, 0.0
  %v1003 = vmax.f32 %v983, 0.0
  %v1004 = vmax.f32 %v986, 0.0
  %v1005 = vld [vmem:[%s3] sm:$0xf]
  %v1006 = vld [vmem:[%s3 + $0x4] sm:$0x1]
  %v1007 = vpack.c.bf16 %v990, %v989
  %v1008 = vpack.c.bf16 %v992, %v991
  %v1009 = vpack.c.bf16 %v994, %v993
  %v1010 = vpack.c.bf16 %v996, %v995
  %v1011 = vpack.c.bf16 %v998, %v997
  %v1012 = vpack.c.bf16 %v1000, %v999
  %v1013 = vpack.c.bf16 %v1002, %v1001
  %v1014 = vpack.c.bf16 %v1004, %v1003
  %v1015 = vld [vmem:[%s4] sm:$0xff]
  %v1016 = vld [vmem:[%s4 + $0x8] sm:$0x3]
  %1018 = vset.pattern.permute.xlu0 0
  %1019 = vperm.xlu0 %1018, %v1015
  %v1020 = vpop.permute.xlu0 %1019
  %1023 = vset.pattern.permute.xlu0 0
  %1024 = vperm.xlu0 %1023, %v1016
  %v1025 = vpop.permute.xlu0 %1024
  %v1029 = vunpack.c.l.b16 %v1005
  %v1030 = vunpack.c.l.b16 %v1006
  %v1031 = vpack.c.b16 %v1030, %v1029
  %1033 = vmatprep.subr.bf16.mxu0 0
  %1034 = vmatpush1.bf16.msra.mxu0 %v1007
  %1035 = vmatprep.subr.bf16.mxu0 0
  %1036 = vmatpush1.bf16.msra.mxu0 %v1008
  %1037 = vmatprep.subr.bf16.mxu0 0
  %1038 = vmatpush1.bf16.msra.mxu0 %v1009
  %1039 = vmatprep.subr.bf16.mxu0 0
  %1040 = vmatpush1.bf16.msra.mxu0 %v1010
  %1041 = vmatprep.subr.bf16.mxu0 0
  %1042 = vmatpush1.bf16.msra.mxu0 %v1011
  %1043 = vmatprep.subr.bf16.mxu0 0
  %1044 = vmatpush1.bf16.msra.mxu0 %v1012
  %1045 = vmatprep.subr.bf16.mxu0 0
  %1046 = vmatpush1.bf16.msra.mxu0 %v1013
  %1047 = vmatprep.subr.bf16.mxu0 0
  %1048 = vmatpush1.bf16.msra.mxu0 %v1014
  %1049 = vmatprep.subr.bf16.mxu0 0
  %1050 = vmatpush1.bf16.msra.mxu0 0
  %1051 = vmatprep.subr.bf16.mxu0 0
  %1052 = vmatpush1.bf16.msra.mxu0 0
  %1053 = vmatprep.subr.bf16.mxu0 0
  %1054 = vmatpush1.bf16.msra.mxu0 0
  %1055 = vmatprep.subr.bf16.mxu0 0
  %1056 = vmatpush1.bf16.msra.mxu0 0
  %1057 = vmatprep.subr.bf16.mxu0 0
  %1058 = vmatpush1.bf16.msra.mxu0 0
  %1059 = vmatprep.subr.bf16.mxu0 0
  %1060 = vmatpush1.bf16.msra.mxu0 0
  %1061 = vmatprep.subr.bf16.mxu0 0
  %1062 = vmatpush1.bf16.msra.mxu0 0
  %1063 = vmatprep.subr.bf16.mxu0 0
  %1064 = vmatpush1.bf16.msra.mxu0 0
  %1065 = vmatprep.mubr.bf16.mxu0 0
  %1066 = vmatmul.mubr.bf16.gmra.mrb[0].mxu0 %v1031
  %v1067 = vpop.f32.mrb[0].mxu0
  %v1068 = vadd.f32 %v1020, %v1067
  %v1069 = vpop.f32.mrb[0].mxu0
  %v1070 = vpop.f32.mrb[0].mxu0
  %v1071 = vadd.f32 %v1025, %v1070
  %v1072 = vpop.f32.mrb[0].mxu0
  %1073 = vdwg.mxu0
  %v1074 = vld [vmem:[%s5] sm:$0xf]
  %v1075 = vld [vmem:[%s5 + $0x4] sm:$0xf]
  %v1076 = vld [vmem:[%s5 + $0x8] sm:$0xf]
  %v1077 = vld [vmem:[%s5 + $0xc] sm:$0xf]
  %v1078 = vld [vmem:[%s5 + $0x10] sm:$0xf]
  %v1079 = vld [vmem:[%s5 + $0x14] sm:$0xf]
  %v1080 = vld [vmem:[%s5 + $0x18] sm:$0xf]
  %v1081 = vld [vmem:[%s5 + $0x1c] sm:$0xf]
  %v1082 = vld [vmem:[%s5 + $0x20] sm:$0xf]
  %v1083 = vld [vmem:[%s5 + $0x24] sm:$0xf]
  %v1084 = vld [vmem:[%s5 + $0x28] sm:$0xf]
  %v1085 = vld [vmem:[%s5 + $0x2c] sm:$0xf]
  %v1086 = vld [vmem:[%s5 + $0x30] sm:$0xf]
  %v1087 = vld [vmem:[%s5 + $0x34] sm:$0xf]
  %v1088 = vld [vmem:[%s5 + $0x38] sm:$0xf]
  %v1089 = vld [vmem:[%s5 + $0x3c] sm:$0xf]
  %v1090 = vld [vmem:[%s5 + $0x40] sm:$0xf]
  %v1091 = vld [vmem:[%s5 + $0x44] sm:$0xf]
  %v1092 = vpack.c.bf16 %v1071, %v1068
  %v1111 = vunpack.c.l.b16 %v1074
  %v1112 = vunpack.c.l.b16 %v1075
  %v1113 = vunpack.c.l.b16 %v1076
  %v1114 = vunpack.c.l.b16 %v1077
  %v1115 = vunpack.c.l.b16 %v1078
  %v1116 = vunpack.c.l.b16 %v1079
  %v1117 = vunpack.c.l.b16 %v1080
  %v1118 = vunpack.c.l.b16 %v1081
  %v1119 = vunpack.c.l.b16 %v1082
  %v1120 = vunpack.c.l.b16 %v1083
  %v1121 = vunpack.c.l.b16 %v1084
  %v1122 = vunpack.c.l.b16 %v1085
  %v1123 = vunpack.c.l.b16 %v1086
  %v1124 = vunpack.c.l.b16 %v1087
  %v1125 = vunpack.c.l.b16 %v1088
  %v1126 = vunpack.c.l.b16 %v1089
  %v1127 = vunpack.c.l.b16 %v1090
  %v1128 = vunpack.c.l.b16 %v1091
  %v1129 = vpack.c.b16 %v1112, %v1111
  %v1130 = vpack.c.b16 %v1114, %v1113
  %v1131 = vpack.c.b16 %v1116, %v1115
  %v1132 = vpack.c.b16 %v1118, %v1117
  %v1133 = vpack.c.b16 %v1120, %v1119
  %v1134 = vpack.c.b16 %v1122, %v1121
  %v1135 = vpack.c.b16 %v1124, %v1123
  %v1136 = vpack.c.b16 %v1126, %v1125
  %v1137 = vpack.c.b16 %v1128, %v1127
  %vm1138 = vcmask 80896
  %v1140 = vsel %vm1138, %v1129, 0
  %v1143 = vsel %vm1138, %v1130, 0
  %v1146 = vsel %vm1138, %v1131, 0
  %v1149 = vsel %vm1138, %v1132, 0
  %v1152 = vsel %vm1138, %v1133, 0
  %v1155 = vsel %vm1138, %v1134, 0
  %v1158 = vsel %vm1138, %v1135, 0
  %v1161 = vsel %vm1138, %v1136, 0
  %v1164 = vsel %vm1138, %v1137, 0
  %vm1166 = vcmask 1044480
  %v1168 = vsel %vm1166, %v1092, 0
  %1170 = vmatprep.subr.bf16.mxu0 0
  %1171 = vmatpush1.bf16.msra.mxu0 %v1168
  %1172 = vmatprep.subr.bf16.mxu0 0
  %1173 = vmatpush1.bf16.msra.mxu0 0
  %1174 = vmatprep.subr.bf16.mxu0 0
  %1175 = vmatpush1.bf16.msra.mxu0 0
  %1176 = vmatprep.subr.bf16.mxu0 0
  %1177 = vmatpush1.bf16.msra.mxu0 0
  %1178 = vmatprep.subr.bf16.mxu0 0
  %1179 = vmatpush1.bf16.msra.mxu0 0
  %1180 = vmatprep.subr.bf16.mxu0 0
  %1181 = vmatpush1.bf16.msra.mxu0 0
  %1182 = vmatprep.subr.bf16.mxu0 0
  %1183 = vmatpush1.bf16.msra.mxu0 0
  %1184 = vmatprep.subr.bf16.mxu0 0
  %1185 = vmatpush1.bf16.msra.mxu0 0
  %1186 = vmatprep.subr.bf16.mxu0 0
  %1187 = vmatpush1.bf16.msra.mxu0 0
  %1188 = vmatprep.subr.bf16.mxu0 0
  %1189 = vmatpush1.bf16.msra.mxu0 0
  %1190 = vmatprep.subr.bf16.mxu0 0
  %1191 = vmatpush1.bf16.msra.mxu0 0
  %1192 = vmatprep.subr.bf16.mxu0 0
  %1193 = vmatpush1.bf16.msra.mxu0 0
  %1194 = vmatprep.subr.bf16.mxu0 0
  %1195 = vmatpush1.bf16.msra.mxu0 0
  %1196 = vmatprep.subr.bf16.mxu0 0
  %1197 = vmatpush1.bf16.msra.mxu0 0
  %1198 = vmatprep.subr.bf16.mxu0 0
  %1199 = vmatpush1.bf16.msra.mxu0 0
  %1200 = vmatprep.subr.bf16.mxu0 0
  %1201 = vmatpush1.bf16.msra.mxu0 0
  %1202 = vmatprep.mubr.bf16.mxu0 0
  %1203 = vmatmul.mubr.bf16.gmra.mrb[0].mxu0 %v1140
  %v1204 = vpop.f32.mrb[0].mxu0
  %v1205 = vadd.f32 0.0, %v1204
  %v1206 = vpop.f32.mrb[0].mxu0
  %v1207 = vpop.f32.mrb[0].mxu0
  %v1208 = vadd.f32 0.0, %v1207
  %v1209 = vpop.f32.mrb[0].mxu0
  %1210 = vmatprep.mubr.bf16.mxu0 0
  %1211 = vmatmul.mubr.bf16.gmra.mrb[0].mxu0 %v1143
  %v1212 = vpop.f32.mrb[0].mxu0
  %v1213 = vadd.f32 0.0, %v1212
  %v1214 = vpop.f32.mrb[0].mxu0
  %v1215 = vpop.f32.mrb[0].mxu0
  %v1216 = vadd.f32 0.0, %v1215
  %v1217 = vpop.f32.mrb[0].mxu0
  %1218 = vmatprep.mubr.bf16.mxu0 0
  %1219 = vmatmul.mubr.bf16.gmra.mrb[0].mxu0 %v1146
  %v1220 = vpop.f32.mrb[0].mxu0
  %v1221 = vadd.f32 0.0, %v1220
  %v1222 = vpop.f32.mrb[0].mxu0
  %v1223 = vpop.f32.mrb[0].mxu0
  %v1224 = vadd.f32 0.0, %v1223
  %v1225 = vpop.f32.mrb[0].mxu0
  %1226 = vmatprep.mubr.bf16.mxu0 0
  %1227 = vmatmul.mubr.bf16.gmra.mrb[0].mxu0 %v1149
  %v1228 = vpop.f32.mrb[0].mxu0
  %v1229 = vadd.f32 0.0, %v1228
  %v1230 = vpop.f32.mrb[0].mxu0
  %v1231 = vpop.f32.mrb[0].mxu0
  %v1232 = vadd.f32 0.0, %v1231
  %v1233 = vpop.f32.mrb[0].mxu0
  %1234 = vmatprep.mubr.bf16.mxu0 0
  %1235 = vmatmul.mubr.bf16.gmra.mrb[0].mxu0 %v1152
  %v1236 = vpop.f32.mrb[0].mxu0
  %v1237 = vadd.f32 0.0, %v1236
  %v1238 = vpop.f32.mrb[0].mxu0
  %v1239 = vpop.f32.mrb[0].mxu0
  %v1240 = vadd.f32 0.0, %v1239
  %v1241 = vpop.f32.mrb[0].mxu0
  %1242 = vmatprep.mubr.bf16.mxu0 0
  %1243 = vmatmul.mubr.bf16.gmra.mrb[0].mxu0 %v1155
  %v1244 = vpop.f32.mrb[0].mxu0
  %v1245 = vadd.f32 0.0, %v1244
  %v1246 = vpop.f32.mrb[0].mxu0
  %v1247 = vpop.f32.mrb[0].mxu0
  %v1248 = vadd.f32 0.0, %v1247
  %v1249 = vpop.f32.mrb[0].mxu0
  %1250 = vmatprep.mubr.bf16.mxu0 0
  %1251 = vmatmul.mubr.bf16.gmra.mrb[0].mxu0 %v1158
  %v1252 = vpop.f32.mrb[0].mxu0
  %v1253 = vadd.f32 0.0, %v1252
  %v1254 = vpop.f32.mrb[0].mxu0
  %v1255 = vpop.f32.mrb[0].mxu0
  %v1256 = vadd.f32 0.0, %v1255
  %v1257 = vpop.f32.mrb[0].mxu0
  %1258 = vmatprep.mubr.bf16.mxu0 0
  %1259 = vmatmul.mubr.bf16.gmra.mrb[0].mxu0 %v1161
  %v1260 = vpop.f32.mrb[0].mxu0
  %v1261 = vadd.f32 0.0, %v1260
  %v1262 = vpop.f32.mrb[0].mxu0
  %v1263 = vpop.f32.mrb[0].mxu0
  %v1264 = vadd.f32 0.0, %v1263
  %v1265 = vpop.f32.mrb[0].mxu0
  %1266 = vmatprep.mubr.bf16.mxu0 0
  %1267 = vmatmul.mubr.bf16.gmra.mrb[0].mxu0 %v1164
  %v1268 = vpop.f32.mrb[0].mxu0
  %v1269 = vadd.f32 0.0, %v1268
  %v1270 = vpop.f32.mrb[0].mxu0
  %v1271 = vpop.f32.mrb[0].mxu0
  %v1272 = vadd.f32 0.0, %v1271
  %v1273 = vpop.f32.mrb[0].mxu0
  %1274 = vdwg.mxu0
  %v1275 = vld [vmem:[%s6] sm:$0xff]
  %v1276 = vld [vmem:[%s6 + $0x8] sm:$0xff]
  %v1277 = vld [vmem:[%s6 + $0x10] sm:$0xff]
  %v1278 = vld [vmem:[%s6 + $0x18] sm:$0xff]
  %v1279 = vld [vmem:[%s6 + $0x20] sm:$0xff]
  %v1280 = vld [vmem:[%s6 + $0x28] sm:$0xff]
  %v1281 = vld [vmem:[%s6 + $0x30] sm:$0xff]
  %v1282 = vld [vmem:[%s6 + $0x38] sm:$0xff]
  %v1283 = vld [vmem:[%s6 + $0x40] sm:$0xff]
  %v1284 = vld [vmem:[%s6 + $0x48] sm:$0xff]
  %v1285 = vld [vmem:[%s6 + $0x50] sm:$0xff]
  %v1286 = vld [vmem:[%s6 + $0x58] sm:$0xff]
  %v1287 = vld [vmem:[%s6 + $0x60] sm:$0xff]
  %v1288 = vld [vmem:[%s6 + $0x68] sm:$0xff]
  %v1289 = vld [vmem:[%s6 + $0x70] sm:$0xff]
  %v1290 = vld [vmem:[%s6 + $0x78] sm:$0xff]
  %v1291 = vld [vmem:[%s6 + $0x80] sm:$0xff]
  %v1292 = vld [vmem:[%s6 + $0x88] sm:$0xff]
  %1294 = vset.pattern.permute.xlu0 0
  %1295 = vperm.xlu0 %1294, %v1275
  %v1296 = vpop.permute.xlu0 %1295
  %1299 = vset.pattern.permute.xlu0 0
  %1300 = vperm.xlu0 %1299, %v1276
  %v1301 = vpop.permute.xlu0 %1300
  %1304 = vset.pattern.permute.xlu0 0
  %1305 = vperm.xlu0 %1304, %v1277
  %v1306 = vpop.permute.xlu0 %1305
  %1309 = vset.pattern.permute.xlu0 0
  %1310 = vperm.xlu0 %1309, %v1278
  %v1311 = vpop.permute.xlu0 %1310
  %1314 = vset.pattern.permute.xlu0 0
  %1315 = vperm.xlu0 %1314, %v1279
  %v1316 = vpop.permute.xlu0 %1315
  %1319 = vset.pattern.permute.xlu0 0
  %1320 = vperm.xlu0 %1319, %v1280
  %v1321 = vpop.permute.xlu0 %1320
  %1324 = vset.pattern.permute.xlu0 0
  %1325 = vperm.xlu0 %1324, %v1281
  %v1326 = vpop.permute.xlu0 %1325
  %1329 = vset.pattern.permute.xlu0 0
  %1330 = vperm.xlu0 %1329, %v1282
  %v1331 = vpop.permute.xlu0 %1330
  %1334 = vset.pattern.permute.xlu0 0
  %1335 = vperm.xlu0 %1334, %v1283
  %v1336 = vpop.permute.xlu0 %1335
  %1339 = vset.pattern.permute.xlu0 0
  %1340 = vperm.xlu0 %1339, %v1284
  %v1341 = vpop.permute.xlu0 %1340
  %1344 = vset.pattern.permute.xlu0 0
  %1345 = vperm.xlu0 %1344, %v1285
  %v1346 = vpop.permute.xlu0 %1345
  %1349 = vset.pattern.permute.xlu0 0
  %1350 = vperm.xlu0 %1349, %v1286
  %v1351 = vpop.permute.xlu0 %1350
  %1354 = vset.pattern.permute.xlu0 0
  %1355 = vperm.xlu0 %1354, %v1287
  %v1356 = vpop.permute.xlu0 %1355
  %1359 = vset.pattern.permute.xlu0 0
  %1360 = vperm.xlu0 %1359, %v1288
  %v1361 = vpop.permute.xlu0 %1360
  %1364 = vset.pattern.permute.xlu0 0
  %1365 = vperm.xlu0 %1364, %v1289
  %v1366 = vpop.permute.xlu0 %1365
  %1369 = vset.pattern.permute.xlu0 0
  %1370 = vperm.xlu0 %1369, %v1290
  %v1371 = vpop.permute.xlu0 %1370
  %1374 = vset.pattern.permute.xlu0 0
  %1375 = vperm.xlu0 %1374, %v1291
  %v1376 = vpop.permute.xlu0 %1375
  %1379 = vset.pattern.permute.xlu0 0
  %1380 = vperm.xlu0 %1379, %v1292
  %v1381 = vpop.permute.xlu0 %1380
  %v1383 = vmul.f32 %v1205, %v1296
  %v1384 = vmul.f32 %v1208, %v1301
  %v1385 = vmul.f32 %v1213, %v1306
  %v1386 = vmul.f32 %v1216, %v1311
  %v1387 = vmul.f32 %v1221, %v1316
  %v1388 = vmul.f32 %v1224, %v1321
  %v1389 = vmul.f32 %v1229, %v1326
  %v1390 = vmul.f32 %v1232, %v1331
  %v1391 = vmul.f32 %v1237, %v1336
  %v1392 = vmul.f32 %v1240, %v1341
  %v1393 = vmul.f32 %v1245, %v1346
  %v1394 = vmul.f32 %v1248, %v1351
  %v1395 = vmul.f32 %v1253, %v1356
  %v1396 = vmul.f32 %v1256, %v1361
  %v1397 = vmul.f32 %v1261, %v1366
  %v1398 = vmul.f32 %v1264, %v1371
  %v1399 = vmul.f32 %v1269, %v1376
  %v1400 = vmul.f32 %v1272, %v1381
  %v1401 = vld [vmem:[%s7] sm:$0xff]
  %v1402 = vld [vmem:[%s7 + $0x8] sm:$0xff]
  %v1403 = vld [vmem:[%s7 + $0x10] sm:$0xff]
  %v1404 = vld [vmem:[%s7 + $0x18] sm:$0xff]
  %v1405 = vld [vmem:[%s7 + $0x20] sm:$0xff]
  %v1406 = vld [vmem:[%s7 + $0x28] sm:$0xff]
  %v1407 = vld [vmem:[%s7 + $0x30] sm:$0xff]
  %v1408 = vld [vmem:[%s7 + $0x38] sm:$0xff]
  %v1409 = vld [vmem:[%s7 + $0x40] sm:$0xff]
  %v1410 = vld [vmem:[%s7 + $0x48] sm:$0xff]
  %v1411 = vld [vmem:[%s7 + $0x50] sm:$0xff]
  %v1412 = vld [vmem:[%s7 + $0x58] sm:$0xff]
  %v1413 = vld [vmem:[%s7 + $0x60] sm:$0xff]
  %v1414 = vld [vmem:[%s7 + $0x68] sm:$0xff]
  %v1415 = vld [vmem:[%s7 + $0x70] sm:$0xff]
  %v1416 = vld [vmem:[%s7 + $0x78] sm:$0xff]
  %v1417 = vld [vmem:[%s7 + $0x80] sm:$0xff]
  %v1418 = vld [vmem:[%s7 + $0x88] sm:$0xff]
  %1420 = vset.pattern.permute.xlu0 0
  %1421 = vperm.xlu0 %1420, %v1401
  %v1422 = vpop.permute.xlu0 %1421
  %1425 = vset.pattern.permute.xlu0 0
  %1426 = vperm.xlu0 %1425, %v1402
  %v1427 = vpop.permute.xlu0 %1426
  %1430 = vset.pattern.permute.xlu0 0
  %1431 = vperm.xlu0 %1430, %v1403
  %v1432 = vpop.permute.xlu0 %1431
  %1435 = vset.pattern.permute.xlu0 0
  %1436 = vperm.xlu0 %1435, %v1404
  %v1437 = vpop.permute.xlu0 %1436
  %1440 = vset.pattern.permute.xlu0 0
  %1441 = vperm.xlu0 %1440, %v1405
  %v1442 = vpop.permute.xlu0 %1441
  %1445 = vset.pattern.permute.xlu0 0
  %1446 = vperm.xlu0 %1445, %v1406
  %v1447 = vpop.permute.xlu0 %1446
  %1450 = vset.pattern.permute.xlu0 0
  %1451 = vperm.xlu0 %1450, %v1407
  %v1452 = vpop.permute.xlu0 %1451
  %1455 = vset.pattern.permute.xlu0 0
  %1456 = vperm.xlu0 %1455, %v1408
  %v1457 = vpop.permute.xlu0 %1456
  %1460 = vset.pattern.permute.xlu0 0
  %1461 = vperm.xlu0 %1460, %v1409
  %v1462 = vpop.permute.xlu0 %1461
  %1465 = vset.pattern.permute.xlu0 0
  %1466 = vperm.xlu0 %1465, %v1410
  %v1467 = vpop.permute.xlu0 %1466
  %1470 = vset.pattern.permute.xlu0 0
  %1471 = vperm.xlu0 %1470, %v1411
  %v1472 = vpop.permute.xlu0 %1471
  %1475 = vset.pattern.permute.xlu0 0
  %1476 = vperm.xlu0 %1475, %v1412
  %v1477 = vpop.permute.xlu0 %1476
  %1480 = vset.pattern.permute.xlu0 0
  %1481 = vperm.xlu0 %1480, %v1413
  %v1482 = vpop.permute.xlu0 %1481
  %1485 = vset.pattern.permute.xlu0 0
  %1486 = vperm.xlu0 %1485, %v1414
  %v1487 = vpop.permute.xlu0 %1486
  %1490 = vset.pattern.permute.xlu0 0
  %1491 = vperm.xlu0 %1490, %v1415
  %v1492 = vpop.permute.xlu0 %1491
  %1495 = vset.pattern.permute.xlu0 0
  %1496 = vperm.xlu0 %1495, %v1416
  %v1497 = vpop.permute.xlu0 %1496
  %1500 = vset.pattern.permute.xlu0 0
  %1501 = vperm.xlu0 %1500, %v1417
  %v1502 = vpop.permute.xlu0 %1501
  %1505 = vset.pattern.permute.xlu0 0
  %1506 = vperm.xlu0 %1505, %v1418
  %v1507 = vpop.permute.xlu0 %1506
  %v1509 = vadd.f32 %v1383, %v1422
  %v1510 = vadd.f32 %v1384, %v1427
  %v1511 = vadd.f32 %v1385, %v1432
  %v1512 = vadd.f32 %v1386, %v1437
  %v1513 = vadd.f32 %v1387, %v1442
  %v1514 = vadd.f32 %v1388, %v1447
  %v1515 = vadd.f32 %v1389, %v1452
  %v1516 = vadd.f32 %v1390, %v1457
  %v1517 = vadd.f32 %v1391, %v1462
  %v1518 = vadd.f32 %v1392, %v1467
  %v1519 = vadd.f32 %v1393, %v1472
  %v1520 = vadd.f32 %v1394, %v1477
  %v1521 = vadd.f32 %v1395, %v1482
  %v1522 = vadd.f32 %v1396, %v1487
  %v1523 = vadd.f32 %v1397, %v1492
  %v1524 = vadd.f32 %v1398, %v1497
  %v1525 = vadd.f32 %v1399, %v1502
  %v1526 = vadd.f32 %v1400, %v1507
  %v1527 = vmax.f32 %v1509, 0.0
  %v1528 = vmax.f32 %v1510, 0.0
  %v1529 = vmax.f32 %v1511, 0.0
  %v1530 = vmax.f32 %v1512, 0.0
  %v1531 = vmax.f32 %v1513, 0.0
  %v1532 = vmax.f32 %v1514, 0.0
  %v1533 = vmax.f32 %v1515, 0.0
  %v1534 = vmax.f32 %v1516, 0.0
  %v1535 = vmax.f32 %v1517, 0.0
  %v1536 = vmax.f32 %v1518, 0.0
  %v1537 = vmax.f32 %v1519, 0.0
  %v1538 = vmax.f32 %v1520, 0.0
  %v1539 = vmax.f32 %v1521, 0.0
  %v1540 = vmax.f32 %v1522, 0.0
  %v1541 = vmax.f32 %v1523, 0.0
  %v1542 = vmax.f32 %v1524, 0.0
  %v1543 = vmax.f32 %v1525, 0.0
  %v1544 = vmax.f32 %v1526, 0.0
  %v1545 = vpack.c.bf16 %v1528, %v1527
  %v1546 = vpack.c.bf16 %v1530, %v1529
  %v1547 = vpack.c.bf16 %v1532, %v1531
  %v1548 = vpack.c.bf16 %v1534, %v1533
  %v1549 = vpack.c.bf16 %v1536, %v1535
  %v1550 = vpack.c.bf16 %v1538, %v1537
  %v1551 = vpack.c.bf16 %v1540, %v1539
  %v1552 = vpack.c.bf16 %v1542, %v1541
  %v1553 = vpack.c.bf16 %v1544, %v1543
  %v1563 = vunpack.c.l.b16 %v1545
  %v1564 = vunpack.c.h.b16 %v1545
  %v1565 = vunpack.c.l.b16 %v1546
  %v1566 = vunpack.c.h.b16 %v1546
  %v1567 = vunpack.c.l.b16 %v1547
  %v1568 = vunpack.c.h.b16 %v1547
  %v1569 = vunpack.c.l.b16 %v1548
  %v1570 = vunpack.c.h.b16 %v1548
  %v1571 = vunpack.c.l.b16 %v1549
  %v1572 = vunpack.c.h.b16 %v1549
  %v1573 = vunpack.c.l.b16 %v1550
  %v1574 = vunpack.c.h.b16 %v1550
  %v1575 = vunpack.c.l.b16 %v1551
  %v1576 = vunpack.c.h.b16 %v1551
  %v1577 = vunpack.c.l.b16 %v1552
  %v1578 = vunpack.c.h.b16 %v1552
  %v1579 = vunpack.c.l.b16 %v1553
  %v1580 = vunpack.c.h.b16 %v1553
  %v1581 = vpack.c.b16 %v1563, %v1563
  %v1582 = vpack.c.b16 %v1564, %v1564
  %v1583 = vpack.c.b16 %v1565, %v1565
  %v1584 = vpack.c.b16 %v1566, %v1566
  %v1585 = vpack.c.b16 %v1567, %v1567
  %v1586 = vpack.c.b16 %v1568, %v1568
  %v1587 = vpack.c.b16 %v1569, %v1569
  %v1588 = vpack.c.b16 %v1570, %v1570
  %v1589 = vpack.c.b16 %v1571, %v1571
  %v1590 = vpack.c.b16 %v1572, %v1572
  %v1591 = vpack.c.b16 %v1573, %v1573
  %v1592 = vpack.c.b16 %v1574, %v1574
  %v1593 = vpack.c.b16 %v1575, %v1575
  %v1594 = vpack.c.b16 %v1576, %v1576
  %v1595 = vpack.c.b16 %v1577, %v1577
  %v1596 = vpack.c.b16 %v1578, %v1578
  %v1597 = vpack.c.b16 %v1579, %v1579
  %v1598 = vpack.c.b16 %v1580, %v1580
  %vm1617 = vcmask 11264
  %1618 = vst.msk [vmem:[%s8] sm:$0xf] %vm1617, %v1581
  %1619 = vst.msk [vmem:[%s8 + $0x4] sm:$0xf] %vm1617, %v1582
  %1620 = vst.msk [vmem:[%s8 + $0x8] sm:$0xf] %vm1617, %v1583
  %1621 = vst.msk [vmem:[%s8 + $0xc] sm:$0xf] %vm1617, %v1584
  %1622 = vst.msk [vmem:[%s8 + $0x10] sm:$0xf] %vm1617, %v1585
  %1623 = vst.msk [vmem:[%s8 + $0x14] sm:$0xf] %vm1617, %v1586
  %1624 = vst.msk [vmem:[%s8 + $0x18] sm:$0xf] %vm1617, %v1587
  %1625 = vst.msk [vmem:[%s8 + $0x1c] sm:$0xf] %vm1617, %v1588
  %1626 = vst.msk [vmem:[%s8 + $0x20] sm:$0xf] %vm1617, %v1589
  %1627 = vst.msk [vmem:[%s8 + $0x24] sm:$0xf] %vm1617, %v1590
  %1628 = vst.msk [vmem:[%s8 + $0x28] sm:$0xf] %vm1617, %v1591
  %1629 = vst.msk [vmem:[%s8 + $0x2c] sm:$0xf] %vm1617, %v1592
  %1630 = vst.msk [vmem:[%s8 + $0x30] sm:$0xf] %vm1617, %v1593
  %1631 = vst.msk [vmem:[%s8 + $0x34] sm:$0xf] %vm1617, %v1594
  %1632 = vst.msk [vmem:[%s8 + $0x38] sm:$0xf] %vm1617, %v1595
  %1633 = vst.msk [vmem:[%s8 + $0x3c] sm:$0xf] %vm1617, %v1596
  %1634 = vst.msk [vmem:[%s8 + $0x40] sm:$0xf] %vm1617, %v1597
  %1635 = vst.msk [vmem:[%s8 + $0x44] sm:$0xf] %vm1617, %v1598
  // Predicated region
  $region34: #{autoencoder_forward.8} parent=0 // pred_check
    _
  $region35: #{autoencoder_forward.8} parent=0 // pred_check_branch
    %1637 = sbr.rel (0) target = $region37
  $region36: #{autoencoder_forward.8} parent=0 // pred_region
    _
  $region37: #{autoencoder_forward.8} parent=0 // pred_fallthru
    _
  // Predicated region
  $region38: #{autoencoder_forward.8} parent=0 // pred_check
    _
  $region39: #{autoencoder_forward.8} parent=0 // pred_check_branch
    %1639 = sbr.rel (0) target = $region41
  $region40: #{autoencoder_forward.8} parent=0 // pred_region
    _
  $region41: #{autoencoder_forward.8} parent=0 // pred_fallthru
    _

// kernel: autoencoder_forward.9
$region0: #{autoencoder_forward.9}
  #allocation0 [shape = 'u32[]', space=smem, size = 0x4, offset = 0x4, fixed_abs, tag = 'smem constant byte address 0x4 - core index']
  #allocation1 [shape = 'u32[144,128]{1,0:T(1,128)}', space=vmem, size = 0x12000, scoped, tag = 'internal scratch']
  %s0 = inlined_call_operand.vmem [shape: bf16[8,400], index: 0, kind: input, shape index: {}]
  %s1 = inlined_call_operand.vmem [shape: bf16[400,98], index: 1, kind: input, shape index: {}]
  %s2 = inlined_call_operand.vmem [shape: f32[8,1], index: 2, kind: input, shape index: {}]
  %s3 = inlined_call_operand.vmem [shape: f32[8,1], index: 3, kind: input, shape index: {}]
  %s4 = inlined_call_operand.vmem [shape: bf16[8,98], index: 4, kind: output, shape index: {}]
  %s5 = sld [smem:[#allocation0]]
  $region26: #{autoencoder_forward.9} parent=0
    _
  %s7 = ssub.s32 1, %s5
  %s8 = scalar_select 0, %s7, %s5
  // Predicated region
  $region2: #{autoencoder_forward.9} parent=0 // pred_check
    _
  $region3: #{autoencoder_forward.9} parent=0 // pred_check_branch
    %10 = sbr.rel (0) target = $region5
  $region4: #{autoencoder_forward.9} parent=0 // pred_region
    _
  $region5: #{autoencoder_forward.9} parent=0 // pred_fallthru
    _
  // Predicated region
  $region6: #{autoencoder_forward.9} parent=0 // pred_check
    _
  $region7: #{autoencoder_forward.9} parent=0 // pred_check_branch
    %12 = sbr.rel (0) target = $region9
  $region8: #{autoencoder_forward.9} parent=0 // pred_region
    _
  $region9: #{autoencoder_forward.9} parent=0 // pred_fallthru
    _
  // Predicated region
  $region10: #{autoencoder_forward.9} parent=0 // pred_check
    _
  $region11: #{autoencoder_forward.9} parent=0 // pred_check_branch
    %14 = sbr.rel (0) target = $region13
  $region12: #{autoencoder_forward.9} parent=0 // pred_region
    _
  $region13: #{autoencoder_forward.9} parent=0 // pred_fallthru
    _
  // Predicated region
  $region14: #{autoencoder_forward.9} parent=0 // pred_check
    _
  $region15: #{autoencoder_forward.9} parent=0 // pred_check_branch
    %16 = sbr.rel (0) target = $region17
  $region16: #{autoencoder_forward.9} parent=0 // pred_region
    _
  $region17: #{autoencoder_forward.9} parent=0 // pred_fallthru
    _
  %v18 = vld [vmem:[%s0] sm:$0xff]
  %v19 = vld [vmem:[%s0 + $0x8] sm:$0xff]
  %v20 = vld [vmem:[%s1] sm:$0xf]
  %v21 = vld [vmem:[%s1 + $0x4] sm:$0xf]
  %v22 = vld [vmem:[%s1 + $0x8] sm:$0xf]
  %v23 = vld [vmem:[%s1 + $0xc] sm:$0xf]
  %v24 = vld [vmem:[%s1 + $0x10] sm:$0xf]
  %v25 = vld [vmem:[%s1 + $0x14] sm:$0xf]
  %v26 = vld [vmem:[%s1 + $0x18] sm:$0xf]
  %v27 = vld [vmem:[%s1 + $0x1c] sm:$0xf]
  %v28 = vld [vmem:[%s1 + $0x20] sm:$0xf]
  %v29 = vld [vmem:[%s1 + $0x24] sm:$0xf]
  %v30 = vld [vmem:[%s1 + $0x28] sm:$0xf]
  %v31 = vld [vmem:[%s1 + $0x2c] sm:$0xf]
  %v32 = vld [vmem:[%s1 + $0x30] sm:$0xf]
  %v33 = vld [vmem:[%s1 + $0x34] sm:$0xf]
  %v34 = vld [vmem:[%s1 + $0x38] sm:$0xf]
  %v35 = vld [vmem:[%s1 + $0x3c] sm:$0xf]
  %v36 = vld [vmem:[%s1 + $0x40] sm:$0xf]
  %v37 = vld [vmem:[%s1 + $0x44] sm:$0xf]
  %v38 = vld [vmem:[%s1 + $0x48] sm:$0xf]
  %v39 = vld [vmem:[%s1 + $0x4c] sm:$0xf]
  %v40 = vld [vmem:[%s1 + $0x50] sm:$0xf]
  %v41 = vld [vmem:[%s1 + $0x54] sm:$0xf]
  %v42 = vld [vmem:[%s1 + $0x58] sm:$0xf]
  %v43 = vld [vmem:[%s1 + $0x5c] sm:$0xf]
  %v44 = vld [vmem:[%s1 + $0x60] sm:$0xf]
  %v45 = vld [vmem:[%s1 + $0x64] sm:$0xf]
  %v46 = vld [vmem:[%s1 + $0x68] sm:$0xf]
  %v47 = vld [vmem:[%s1 + $0x6c] sm:$0xf]
  %v48 = vld [vmem:[%s1 + $0x70] sm:$0xf]
  %v49 = vld [vmem:[%s1 + $0x74] sm:$0xf]
  %v50 = vld [vmem:[%s1 + $0x78] sm:$0xf]
  %v51 = vld [vmem:[%s1 + $0x7c] sm:$0xf]
  %v52 = vld [vmem:[%s1 + $0x80] sm:$0xf]
  %v53 = vld [vmem:[%s1 + $0x84] sm:$0xf]
  %v54 = vld [vmem:[%s1 + $0x88] sm:$0xf]
  %v55 = vld [vmem:[%s1 + $0x8c] sm:$0xf]
  %v56 = vld [vmem:[%s1 + $0x90] sm:$0xf]
  %v57 = vld [vmem:[%s1 + $0x94] sm:$0xf]
  %v58 = vld [vmem:[%s1 + $0x98] sm:$0xf]
  %v59 = vld [vmem:[%s1 + $0x9c] sm:$0xf]
  %v60 = vld [vmem:[%s1 + $0xa0] sm:$0xf]
  %v61 = vld [vmem:[%s1 + $0xa4] sm:$0xf]
  %v62 = vld [vmem:[%s1 + $0xa8] sm:$0xf]
  %v63 = vld [vmem:[%s1 + $0xac] sm:$0xf]
  %v64 = vld [vmem:[%s1 + $0xb0] sm:$0xf]
  %v65 = vld [vmem:[%s1 + $0xb4] sm:$0xf]
  %v66 = vld [vmem:[%s1 + $0xb8] sm:$0xf]
  %v67 = vld [vmem:[%s1 + $0xbc] sm:$0xf]
  %v68 = vld [vmem:[%s1 + $0xc0] sm:$0xf]
  %v69 = vld [vmem:[%s1 + $0xc4] sm:$0xf]
  %v72 = vunpack.c.l.b16 %v18
  %v73 = vunpack.c.h.b16 %v18
  %v74 = vunpack.c.l.b16 %v19
  %v75 = vunpack.c.h.b16 %v19
  %v76 = vpack.c.b16 %v72, %v72
  %v77 = vpack.c.b16 %v73, %v73
  %v78 = vpack.c.b16 %v74, %v74
  %v79 = vpack.c.b16 %v75, %v75
  %v133 = vunpack.c.l.b16 %v20
  %v134 = vunpack.c.l.b16 %v21
  %v135 = vunpack.c.l.b16 %v22
  %v136 = vunpack.c.l.b16 %v23
  %v137 = vunpack.c.l.b16 %v24
  %v138 = vunpack.c.l.b16 %v25
  %v139 = vunpack.c.l.b16 %v26
  %v140 = vunpack.c.l.b16 %v27
  %v141 = vunpack.c.l.b16 %v28
  %v142 = vunpack.c.l.b16 %v29
  %v143 = vunpack.c.l.b16 %v30
  %v144 = vunpack.c.l.b16 %v31
  %v145 = vunpack.c.l.b16 %v32
  %v146 = vunpack.c.l.b16 %v33
  %v147 = vunpack.c.l.b16 %v34
  %v148 = vunpack.c.l.b16 %v35
  %v149 = vunpack.c.l.b16 %v36
  %v150 = vunpack.c.l.b16 %v37
  %v151 = vunpack.c.l.b16 %v38
  %v152 = vunpack.c.l.b16 %v39
  %v153 = vunpack.c.l.b16 %v40
  %v154 = vunpack.c.l.b16 %v41
  %v155 = vunpack.c.l.b16 %v42
  %v156 = vunpack.c.l.b16 %v43
  %v157 = vunpack.c.l.b16 %v44
  %v158 = vunpack.c.l.b16 %v45
  %v159 = vunpack.c.l.b16 %v46
  %v160 = vunpack.c.l.b16 %v47
  %v161 = vunpack.c.l.b16 %v48
  %v162 = vunpack.c.l.b16 %v49
  %v163 = vunpack.c.l.b16 %v50
  %v164 = vunpack.c.l.b16 %v51
  %v165 = vunpack.c.l.b16 %v52
  %v166 = vunpack.c.l.b16 %v53
  %v167 = vunpack.c.l.b16 %v54
  %v168 = vunpack.c.l.b16 %v55
  %v169 = vunpack.c.l.b16 %v56
  %v170 = vunpack.c.l.b16 %v57
  %v171 = vunpack.c.l.b16 %v58
  %v172 = vunpack.c.l.b16 %v59
  %v173 = vunpack.c.l.b16 %v60
  %v174 = vunpack.c.l.b16 %v61
  %v175 = vunpack.c.l.b16 %v62
  %v176 = vunpack.c.l.b16 %v63
  %v177 = vunpack.c.l.b16 %v64
  %v178 = vunpack.c.l.b16 %v65
  %v179 = vunpack.c.l.b16 %v66
  %v180 = vunpack.c.l.b16 %v67
  %v181 = vunpack.c.l.b16 %v68
  %v182 = vunpack.c.l.b16 %v69
  %v183 = vpack.c.b16 %v134, %v133
  %v184 = vpack.c.b16 %v136, %v135
  %v185 = vpack.c.b16 %v138, %v137
  %v186 = vpack.c.b16 %v140, %v139
  %v187 = vpack.c.b16 %v142, %v141
  %v188 = vpack.c.b16 %v144, %v143
  %v189 = vpack.c.b16 %v146, %v145
  %v190 = vpack.c.b16 %v148, %v147
  %v191 = vpack.c.b16 %v150, %v149
  %v192 = vpack.c.b16 %v152, %v151
  %v193 = vpack.c.b16 %v154, %v153
  %v194 = vpack.c.b16 %v156, %v155
  %v195 = vpack.c.b16 %v158, %v157
  %v196 = vpack.c.b16 %v160, %v159
  %v197 = vpack.c.b16 %v162, %v161
  %v198 = vpack.c.b16 %v164, %v163
  %v199 = vpack.c.b16 %v166, %v165
  %v200 = vpack.c.b16 %v168, %v167
  %v201 = vpack.c.b16 %v170, %v169
  %v202 = vpack.c.b16 %v172, %v171
  %v203 = vpack.c.b16 %v174, %v173
  %v204 = vpack.c.b16 %v176, %v175
  %v205 = vpack.c.b16 %v178, %v177
  %v206 = vpack.c.b16 %v180, %v179
  %v207 = vpack.c.b16 %v182, %v181
  %vm233 = vcmask 130048
  %v235 = vsel %vm233, %v79, 0
  %237 = vmatprep.subr.bf16.mxu0 0
  %238 = vmatpush1.bf16.msra.mxu0 %v183
  %239 = vmatprep.subr.bf16.mxu0 0
  %240 = vmatpush1.bf16.msra.mxu0 %v184
  %241 = vmatprep.subr.bf16.mxu0 0
  %242 = vmatpush1.bf16.msra.mxu0 %v185
  %243 = vmatprep.subr.bf16.mxu0 0
  %244 = vmatpush1.bf16.msra.mxu0 %v186
  %245 = vmatprep.subr.bf16.mxu0 0
  %246 = vmatpush1.bf16.msra.mxu0 %v187
  %247 = vmatprep.subr.bf16.mxu0 0
  %248 = vmatpush1.bf16.msra.mxu0 %v188
  %249 = vmatprep.subr.bf16.mxu0 0
  %250 = vmatpush1.bf16.msra.mxu0 %v189
  %251 = vmatprep.subr.bf16.mxu0 0
  %252 = vmatpush1.bf16.msra.mxu0 %v190
  %253 = vmatprep.subr.bf16.mxu0 0
  %254 = vmatpush1.bf16.msra.mxu0 %v191
  %255 = vmatprep.subr.bf16.mxu0 0
  %256 = vmatpush1.bf16.msra.mxu0 %v192
  %257 = vmatprep.subr.bf16.mxu0 0
  %258 = vmatpush1.bf16.msra.mxu0 %v193
  %259 = vmatprep.subr.bf16.mxu0 0
  %260 = vmatpush1.bf16.msra.mxu0 %v194
  %261 = vmatprep.subr.bf16.mxu0 0
  %262 = vmatpush1.bf16.msra.mxu0 %v195
  %263 = vmatprep.subr.bf16.mxu0 0
  %264 = vmatpush1.bf16.msra.mxu0 %v196
  %265 = vmatprep.subr.bf16.mxu0 0
  %266 = vmatpush1.bf16.msra.mxu0 %v197
  %267 = vmatprep.subr.bf16.mxu0 0
  %268 = vmatpush1.bf16.msra.mxu0 %v198
  %269 = vmatprep.mubr.bf16.mxu0 %v77
  %270 = vmatmul.mubr.bf16.gmra.mrb[0].mxu0 %v76
  %v271 = vpop.f32.mrb[0].mxu0
  %v272 = vadd.f32 0.0, %v271
  %v273 = vpop.f32.mrb[0].mxu0
  %v274 = vpop.f32.mrb[0].mxu0
  %v275 = vpop.f32.mrb[0].mxu0
  %276 = vdwg.mxu0
  %277 = vmatprep.subr.bf16.mxu0 0
  %278 = vmatpush1.bf16.msra.mxu0 %v199
  %279 = vmatprep.subr.bf16.mxu0 0
  %280 = vmatpush1.bf16.msra.mxu0 %v200
  %281 = vmatprep.subr.bf16.mxu0 0
  %282 = vmatpush1.bf16.msra.mxu0 %v201
  %283 = vmatprep.subr.bf16.mxu0 0
  %284 = vmatpush1.bf16.msra.mxu0 %v202
  %285 = vmatprep.subr.bf16.mxu0 0
  %286 = vmatpush1.bf16.msra.mxu0 %v203
  %287 = vmatprep.subr.bf16.mxu0 0
  %288 = vmatpush1.bf16.msra.mxu0 %v204
  %289 = vmatprep.subr.bf16.mxu0 0
  %290 = vmatpush1.bf16.msra.mxu0 %v205
  %291 = vmatprep.subr.bf16.mxu0 0
  %292 = vmatpush1.bf16.msra.mxu0 %v206
  %293 = vmatprep.subr.bf16.mxu0 0
  %294 = vmatpush1.bf16.msra.mxu0 %v207
  %295 = vmatprep.subr.bf16.mxu0 0
  %296 = vmatpush1.bf16.msra.mxu0 0
  %297 = vmatprep.subr.bf16.mxu0 0
  %298 = vmatpush1.bf16.msra.mxu0 0
  %299 = vmatprep.subr.bf16.mxu0 0
  %300 = vmatpush1.bf16.msra.mxu0 0
  %301 = vmatprep.subr.bf16.mxu0 0
  %302 = vmatpush1.bf16.msra.mxu0 0
  %303 = vmatprep.subr.bf16.mxu0 0
  %304 = vmatpush1.bf16.msra.mxu0 0
  %305 = vmatprep.subr.bf16.mxu0 0
  %306 = vmatpush1.bf16.msra.mxu0 0
  %307 = vmatprep.subr.bf16.mxu0 0
  %308 = vmatpush1.bf16.msra.mxu0 0
  %309 = vmatprep.mubr.bf16.mxu0 %v235
  %310 = vmatmul.mubr.bf16.gmra.mrb[0].mxu0 %v78
  %v311 = vpop.f32.mrb[0].mxu0
  %v312 = vadd.f32 %v272, %v311
  %v313 = vpop.f32.mrb[0].mxu0
  %v314 = vpop.f32.mrb[0].mxu0
  %v315 = vpop.f32.mrb[0].mxu0
  %316 = vdwg.mxu0
  %v317 = vld [vmem:[%s2] sm:$0xff]
  %319 = vset.pattern.permute.xlu0 0
  %320 = vperm.xlu0 %319, %v317
  %v321 = vpop.permute.xlu0 %320
  %v323 = vmul.f32 %v312, %v321
  %v324 = vld [vmem:[%s3] sm:$0xff]
  %326 = vset.pattern.permute.xlu0 0
  %327 = vperm.xlu0 %326, %v324
  %v328 = vpop.permute.xlu0 %327
  %v330 = vadd.f32 %v323, %v328
  %v331 = vmax.f32 %v330, 0.0
  %v332 = vpack.c.bf16 %v331, %v331
  %vm333 = vcmask 797696
  %334 = vst.msk [vmem:[%s4] sm:$0xf] %vm333, %v332
  // Predicated region
  $region18: #{autoencoder_forward.9} parent=0 // pred_check
    _
  $region19: #{autoencoder_forward.9} parent=0 // pred_check_branch
    %336 = sbr.rel (0) target = $region21
  $region20: #{autoencoder_forward.9} parent=0 // pred_region
    _
  $region21: #{autoencoder_forward.9} parent=0 // pred_fallthru
    _
  // Predicated region
  $region22: #{autoencoder_forward.9} parent=0 // pred_check
    _
  $region23: #{autoencoder_forward.9} parent=0 // pred_check_branch
    %338 = sbr.rel (0) target = $region25
  $region24: #{autoencoder_forward.9} parent=0 // pred_region
    _
  $region25: #{autoencoder_forward.9} parent=0 // pred_fallthru
    _

// kernel: autoencoder_forward.10
$region0: #{autoencoder_forward.10}
  #allocation0 [shape = 'u32[]', space=smem, size = 0x4, offset = 0x4, fixed_abs, tag = 'smem constant byte address 0x4 - core index']
  #allocation1 [shape = 'u32[144,128]{1,0:T(1,128)}', space=vmem, size = 0x12000, scoped, tag = 'internal scratch']
  %s0 = inlined_call_operand.vmem [shape: bf16[4,128], index: 0, kind: input, shape index: {}]
  %s1 = inlined_call_operand.vmem [shape: bf16[128,392], index: 1, kind: input, shape index: {}]
  %s2 = inlined_call_operand.vmem [shape: f32[4,1], index: 2, kind: input, shape index: {}]
  %s3 = inlined_call_operand.vmem [shape: f32[4,1], index: 3, kind: input, shape index: {}]
  %s4 = inlined_call_operand.vmem [shape: bf16[4,392], index: 4, kind: output, shape index: {}]
  %s5 = sld [smem:[#allocation0]]
  $region26: #{autoencoder_forward.10} parent=0
    _
  %s7 = ssub.s32 1, %s5
  %s8 = scalar_select 0, %s7, %s5
  // Predicated region
  $region2: #{autoencoder_forward.10} parent=0 // pred_check
    _
  $region3: #{autoencoder_forward.10} parent=0 // pred_check_branch
    %10 = sbr.rel (0) target = $region5
  $region4: #{autoencoder_forward.10} parent=0 // pred_region
    _
  $region5: #{autoencoder_forward.10} parent=0 // pred_fallthru
    _
  // Predicated region
  $region6: #{autoencoder_forward.10} parent=0 // pred_check
    _
  $region7: #{autoencoder_forward.10} parent=0 // pred_check_branch
    %12 = sbr.rel (0) target = $region9
  $region8: #{autoencoder_forward.10} parent=0 // pred_region
    _
  $region9: #{autoencoder_forward.10} parent=0 // pred_fallthru
    _
  // Predicated region
  $region10: #{autoencoder_forward.10} parent=0 // pred_check
    _
  $region11: #{autoencoder_forward.10} parent=0 // pred_check_branch
    %14 = sbr.rel (0) target = $region13
  $region12: #{autoencoder_forward.10} parent=0 // pred_region
    _
  $region13: #{autoencoder_forward.10} parent=0 // pred_fallthru
    _
  // Predicated region
  $region14: #{autoencoder_forward.10} parent=0 // pred_check
    _
  $region15: #{autoencoder_forward.10} parent=0 // pred_check_branch
    %16 = sbr.rel (0) target = $region17
  $region16: #{autoencoder_forward.10} parent=0 // pred_region
    _
  $region17: #{autoencoder_forward.10} parent=0 // pred_fallthru
    _
  %v18 = vld [vmem:[%s0] sm:$0x3]
  %v19 = vld [vmem:[%s1] sm:$0xff]
  %v20 = vld [vmem:[%s1 + $0x8] sm:$0xff]
  %v21 = vld [vmem:[%s1 + $0x10] sm:$0xff]
  %v22 = vld [vmem:[%s1 + $0x18] sm:$0xff]
  %v23 = vld [vmem:[%s1 + $0x20] sm:$0xff]
  %v24 = vld [vmem:[%s1 + $0x28] sm:$0xff]
  %v25 = vld [vmem:[%s1 + $0x30] sm:$0xff]
  %v26 = vld [vmem:[%s1 + $0x38] sm:$0xff]
  %v27 = vld [vmem:[%s1 + $0x40] sm:$0xff]
  %v28 = vld [vmem:[%s1 + $0x48] sm:$0xff]
  %v29 = vld [vmem:[%s1 + $0x50] sm:$0xff]
  %v30 = vld [vmem:[%s1 + $0x58] sm:$0xff]
  %v31 = vld [vmem:[%s1 + $0x60] sm:$0xff]
  %v32 = vld [vmem:[%s1 + $0x68] sm:$0xff]
  %v33 = vld [vmem:[%s1 + $0x70] sm:$0xff]
  %v34 = vld [vmem:[%s1 + $0x78] sm:$0xff]
  %v35 = vld [vmem:[%s1 + $0x80] sm:$0xff]
  %v36 = vld [vmem:[%s1 + $0x88] sm:$0xff]
  %v37 = vld [vmem:[%s1 + $0x90] sm:$0xff]
  %v38 = vld [vmem:[%s1 + $0x98] sm:$0xff]
  %v39 = vld [vmem:[%s1 + $0xa0] sm:$0xff]
  %v40 = vld [vmem:[%s1 + $0xa8] sm:$0xff]
  %v41 = vld [vmem:[%s1 + $0xb0] sm:$0xff]
  %v42 = vld [vmem:[%s1 + $0xb8] sm:$0xff]
  %v43 = vld [vmem:[%s1 + $0xc0] sm:$0xff]
  %v44 = vld [vmem:[%s1 + $0xc8] sm:$0xff]
  %v45 = vld [vmem:[%s1 + $0xd0] sm:$0xff]
  %v46 = vld [vmem:[%s1 + $0xd8] sm:$0xff]
  %v47 = vld [vmem:[%s1 + $0xe0] sm:$0xff]
  %v48 = vld [vmem:[%s1 + $0xe8] sm:$0xff]
  %v49 = vld [vmem:[%s1 + $0xf0] sm:$0xff]
  %v50 = vld [vmem:[%s1 + $0xf8] sm:$0xff]
  %v83 = vunpack.c.l.b16 %v19
  %v84 = vunpack.c.h.b16 %v19
  %v85 = vunpack.c.l.b16 %v20
  %v86 = vunpack.c.h.b16 %v20
  %v87 = vunpack.c.l.b16 %v21
  %v88 = vunpack.c.h.b16 %v21
  %v89 = vunpack.c.l.b16 %v22
  %v90 = vunpack.c.h.b16 %v22
  %v91 = vunpack.c.l.b16 %v23
  %v92 = vunpack.c.h.b16 %v23
  %v93 = vunpack.c.l.b16 %v24
  %v94 = vunpack.c.h.b16 %v24
  %v95 = vunpack.c.l.b16 %v25
  %v96 = vunpack.c.h.b16 %v25
  %v97 = vunpack.c.l.b16 %v26
  %v98 = vunpack.c.h.b16 %v26
  %v99 = vunpack.c.l.b16 %v27
  %v100 = vunpack.c.h.b16 %v27
  %v101 = vunpack.c.l.b16 %v28
  %v102 = vunpack.c.h.b16 %v28
  %v103 = vunpack.c.l.b16 %v29
  %v104 = vunpack.c.h.b16 %v29
  %v105 = vunpack.c.l.b16 %v30
  %v106 = vunpack.c.h.b16 %v30
  %v107 = vunpack.c.l.b16 %v31
  %v108 = vunpack.c.h.b16 %v31
  %v109 = vunpack.c.l.b16 %v32
  %v110 = vunpack.c.h.b16 %v32
  %v111 = vunpack.c.l.b16 %v33
  %v112 = vunpack.c.h.b16 %v33
  %v113 = vunpack.c.l.b16 %v34
  %v114 = vunpack.c.h.b16 %v34
  %v115 = vunpack.c.l.b16 %v35
  %v116 = vunpack.c.h.b16 %v35
  %v117 = vunpack.c.l.b16 %v36
  %v118 = vunpack.c.h.b16 %v36
  %v119 = vunpack.c.l.b16 %v37
  %v120 = vunpack.c.h.b16 %v37
  %v121 = vunpack.c.l.b16 %v38
  %v122 = vunpack.c.h.b16 %v38
  %v123 = vunpack.c.l.b16 %v39
  %v124 = vunpack.c.h.b16 %v39
  %v125 = vunpack.c.l.b16 %v40
  %v126 = vunpack.c.h.b16 %v40
  %v127 = vunpack.c.l.b16 %v41
  %v128 = vunpack.c.h.b16 %v41
  %v129 = vunpack.c.l.b16 %v42
  %v130 = vunpack.c.h.b16 %v42
  %v131 = vunpack.c.l.b16 %v43
  %v132 = vunpack.c.h.b16 %v43
  %v133 = vunpack.c.l.b16 %v44
  %v134 = vunpack.c.h.b16 %v44
  %v135 = vunpack.c.l.b16 %v45
  %v136 = vunpack.c.h.b16 %v45
  %v137 = vunpack.c.l.b16 %v46
  %v138 = vunpack.c.h.b16 %v46
  %v139 = vunpack.c.l.b16 %v47
  %v140 = vunpack.c.h.b16 %v47
  %v141 = vunpack.c.l.b16 %v48
  %v142 = vunpack.c.h.b16 %v48
  %v143 = vunpack.c.l.b16 %v49
  %v144 = vunpack.c.h.b16 %v49
  %v145 = vunpack.c.l.b16 %v50
  %v146 = vunpack.c.h.b16 %v50
  %v147 = vpack.c.b16 %v87, %v83
  %v148 = vpack.c.b16 %v88, %v84
  %v149 = vpack.c.b16 %v89, %v85
  %v150 = vpack.c.b16 %v90, %v86
  %v151 = vpack.c.b16 %v95, %v91
  %v152 = vpack.c.b16 %v96, %v92
  %v153 = vpack.c.b16 %v97, %v93
  %v154 = vpack.c.b16 %v98, %v94
  %v155 = vpack.c.b16 %v103, %v99
  %v156 = vpack.c.b16 %v104, %v100
  %v157 = vpack.c.b16 %v105, %v101
  %v158 = vpack.c.b16 %v106, %v102
  %v159 = vpack.c.b16 %v111, %v107
  %v160 = vpack.c.b16 %v112, %v108
  %v161 = vpack.c.b16 %v113, %v109
  %v162 = vpack.c.b16 %v114, %v110
  %v163 = vpack.c.b16 %v119, %v115
  %v164 = vpack.c.b16 %v120, %v116
  %v165 = vpack.c.b16 %v121, %v117
  %v166 = vpack.c.b16 %v122, %v118
  %v167 = vpack.c.b16 %v127, %v123
  %v168 = vpack.c.b16 %v128, %v124
  %v169 = vpack.c.b16 %v129, %v125
  %v170 = vpack.c.b16 %v130, %v126
  %v171 = vpack.c.b16 %v135, %v131
  %v172 = vpack.c.b16 %v136, %v132
  %v173 = vpack.c.b16 %v137, %v133
  %v174 = vpack.c.b16 %v138, %v134
  %v175 = vpack.c.b16 %v143, %v139
  %v176 = vpack.c.b16 %v144, %v140
  %v177 = vpack.c.b16 %v145, %v141
  %v178 = vpack.c.b16 %v146, %v142
  %211 = vmatprep.subr.bf16.mxu0 %v148
  %212 = vmatpush1.bf16.msra.mxu0 %v147
  %213 = vmatprep.subr.bf16.mxu0 %v152
  %214 = vmatpush1.bf16.msra.mxu0 %v151
  %215 = vmatprep.subr.bf16.mxu0 %v156
  %216 = vmatpush1.bf16.msra.mxu0 %v155
  %217 = vmatprep.subr.bf16.mxu0 %v160
  %218 = vmatpush1.bf16.msra.mxu0 %v159
  %219 = vmatprep.subr.bf16.mxu0 %v164
  %220 = vmatpush1.bf16.msra.mxu0 %v163
  %221 = vmatprep.subr.bf16.mxu0 %v168
  %222 = vmatpush1.bf16.msra.mxu0 %v167
  %223 = vmatprep.subr.bf16.mxu0 %v172
  %224 = vmatpush1.bf16.msra.mxu0 %v171
  %225 = vmatprep.subr.bf16.mxu0 %v176
  %226 = vmatpush1.bf16.msra.mxu0 %v175
  %227 = vmatprep.subr.bf16.mxu0 0
  %228 = vmatpush1.bf16.msra.mxu0 0
  %229 = vmatprep.subr.bf16.mxu0 0
  %230 = vmatpush1.bf16.msra.mxu0 0
  %231 = vmatprep.subr.bf16.mxu0 0
  %232 = vmatpush1.bf16.msra.mxu0 0
  %233 = vmatprep.subr.bf16.mxu0 0
  %234 = vmatpush1.bf16.msra.mxu0 0
  %235 = vmatprep.subr.bf16.mxu0 0
  %236 = vmatpush1.bf16.msra.mxu0 0
  %237 = vmatprep.subr.bf16.mxu0 0
  %238 = vmatpush1.bf16.msra.mxu0 0
  %239 = vmatprep.subr.bf16.mxu0 0
  %240 = vmatpush1.bf16.msra.mxu0 0
  %241 = vmatprep.subr.bf16.mxu0 0
  %242 = vmatpush1.bf16.msra.mxu0 0
  %243 = vmatprep.mubr.bf16.mxu0 0
  %244 = vmatmul.mubr.bf16.gmra.mrb[0].mxu0 %v18
  %v245 = vpop.f32.mrb[0].mxu0
  %v246 = vadd.f32 0.0, %v245
  %v247 = vpop.f32.mrb[0].mxu0
  %v248 = vadd.f32 0.0, %v247
  %v249 = vpop.f32.mrb[0].mxu0
  %v250 = vpop.f32.mrb[0].mxu0
  %251 = vdwg.mxu0
  %252 = vmatprep.subr.bf16.mxu0 %v150
  %253 = vmatpush1.bf16.msra.mxu0 %v149
  %254 = vmatprep.subr.bf16.mxu0 %v154
  %255 = vmatpush1.bf16.msra.mxu0 %v153
  %256 = vmatprep.subr.bf16.mxu0 %v158
  %257 = vmatpush1.bf16.msra.mxu0 %v157
  %258 = vmatprep.subr.bf16.mxu0 %v162
  %259 = vmatpush1.bf16.msra.mxu0 %v161
  %260 = vmatprep.subr.bf16.mxu0 %v166
  %261 = vmatpush1.bf16.msra.mxu0 %v165
  %262 = vmatprep.subr.bf16.mxu0 %v170
  %263 = vmatpush1.bf16.msra.mxu0 %v169
  %264 = vmatprep.subr.bf16.mxu0 %v174
  %265 = vmatpush1.bf16.msra.mxu0 %v173
  %266 = vmatprep.subr.bf16.mxu0 %v178
  %267 = vmatpush1.bf16.msra.mxu0 %v177
  %268 = vmatprep.subr.bf16.mxu0 0
  %269 = vmatpush1.bf16.msra.mxu0 0
  %270 = vmatprep.subr.bf16.mxu0 0
  %271 = vmatpush1.bf16.msra.mxu0 0
  %272 = vmatprep.subr.bf16.mxu0 0
  %273 = vmatpush1.bf16.msra.mxu0 0
  %274 = vmatprep.subr.bf16.mxu0 0
  %275 = vmatpush1.bf16.msra.mxu0 0
  %276 = vmatprep.subr.bf16.mxu0 0
  %277 = vmatpush1.bf16.msra.mxu0 0
  %278 = vmatprep.subr.bf16.mxu0 0
  %279 = vmatpush1.bf16.msra.mxu0 0
  %280 = vmatprep.subr.bf16.mxu0 0
  %281 = vmatpush1.bf16.msra.mxu0 0
  %282 = vmatprep.subr.bf16.mxu0 0
  %283 = vmatpush1.bf16.msra.mxu0 0
  %284 = vmatprep.mubr.bf16.mxu0 0
  %285 = vmatmul.mubr.bf16.gmra.mrb[0].mxu0 %v18
  %v286 = vpop.f32.mrb[0].mxu0
  %v287 = vadd.f32 0.0, %v286
  %v288 = vpop.f32.mrb[0].mxu0
  %v289 = vadd.f32 0.0, %v288
  %v290 = vpop.f32.mrb[0].mxu0
  %v291 = vpop.f32.mrb[0].mxu0
  %292 = vdwg.mxu0
  %v293 = vld [vmem:[%s2] sm:$0xf]
  %295 = vset.pattern.permute.xlu0 0
  %296 = vperm.xlu0 %295, %v293
  %v297 = vpop.permute.xlu0 %296
  %v299 = vmul.f32 %v246, %v297
  %v300 = vmul.f32 %v248, %v297
  %v301 = vmul.f32 %v287, %v297
  %v302 = vmul.f32 %v289, %v297
  %v303 = vld [vmem:[%s3] sm:$0xf]
  %305 = vset.pattern.permute.xlu0 0
  %306 = vperm.xlu0 %305, %v303
  %v307 = vpop.permute.xlu0 %306
  %v309 = vadd.f32 %v299, %v307
  %v310 = vadd.f32 %v300, %v307
  %v311 = vadd.f32 %v301, %v307
  %v312 = vadd.f32 %v302, %v307
  %v313 = vmax.f32 %v309, 0.0
  %v314 = vmax.f32 %v310, 0.0
  %v315 = vmax.f32 %v311, 0.0
  %v316 = vmax.f32 %v312, 0.0
  %v317 = vpack.c.bf16 %v313, %v313
  %v318 = vpack.c.bf16 %v314, %v314
  %v319 = vpack.c.bf16 %v315, %v315
  %v320 = vpack.c.bf16 %v316, %v316
  %v325 = vcombine.low %v317, %v318
  %v326 = vcombine.low %v319, %v320
  %v328 = vunpack.c.l.s4 1983009808
  %v329 = vunpack.c.0.s8 %v328
  %v330 = vlaneseq
  %v331 = vshrl.u32 %v330, 7
  %v332 = vsub.s32 %v329, %v331
  %v333 = vrot.slane %v325, %v332
  %v335 = vunpack.c.l.s4 1983009808
  %v336 = vunpack.c.0.s8 %v335
  %v337 = vlaneseq
  %v338 = vshrl.u32 %v337, 7
  %v339 = vsub.s32 %v336, %v338
  %v340 = vrot.slane %v326, %v339
  %v341 = vcombine.low %v333, %v340
  %vm343 = vcmask 1041408
  %vm344 = vcmask 1043458
  %vm345 = vmor %vm344, %vm343
  %vm346 = vcmask 1045508
  %vm347 = vmor %vm346, %vm345
  %vm348 = vcmask 64518
  %vm349 = vmor %vm348, %vm347
  %350 = vst.msk [vmem:[%s4] sm:$0xff] %vm349, %v341
  // Predicated region
  $region18: #{autoencoder_forward.10} parent=0 // pred_check
    _
  $region19: #{autoencoder_forward.10} parent=0 // pred_check_branch
    %352 = sbr.rel (0) target = $region21
  $region20: #{autoencoder_forward.10} parent=0 // pred_region
    _
  $region21: #{autoencoder_forward.10} parent=0 // pred_fallthru
    _
  // Predicated region
  $region22: #{autoencoder_forward.10} parent=0 // pred_check
    _
  $region23: #{autoencoder_forward.10} parent=0 // pred_check_branch
    %354 = sbr.rel (0) target = $region25
  $region24: #{autoencoder_forward.10} parent=0 // pred_region
    _
  $region25: #{autoencoder_forward.10} parent=0 // pred_fallthru
    _

// kernel: autoencoder_forward.11
$region0: #{autoencoder_forward.11}
  #allocation0 [shape = 'u32[]', space=smem, size = 0x4, offset = 0x4, fixed_abs, tag = 'smem constant byte address 0x4 - core index']
  #allocation1 [shape = 'u32[144,128]{1,0:T(1,128)}', space=vmem, size = 0x12000, scoped, tag = 'internal scratch']
  %s0 = inlined_call_operand.vmem [shape: bf16[1,64], index: 0, kind: input, shape index: {}]
  %s1 = inlined_call_operand.vmem [shape: bf16[64,1568], index: 1, kind: input, shape index: {}]
  %s2 = inlined_call_operand.vmem [shape: f32[1,1568], index: 2, kind: output, shape index: {}]
  %s3 = sld [smem:[#allocation0]]
  $region18: #{autoencoder_forward.11} parent=0
    _
  %s5 = ssub.s32 1, %s3
  %s6 = scalar_select 0, %s5, %s3
  // Predicated region
  $region2: #{autoencoder_forward.11} parent=0 // pred_check
    _
  $region3: #{autoencoder_forward.11} parent=0 // pred_check_branch
    %8 = sbr.rel (0) target = $region5
  $region4: #{autoencoder_forward.11} parent=0 // pred_region
    _
  $region5: #{autoencoder_forward.11} parent=0 // pred_fallthru
    _
  // Predicated region
  $region6: #{autoencoder_forward.11} parent=0 // pred_check
    _
  $region7: #{autoencoder_forward.11} parent=0 // pred_check_branch
    %10 = sbr.rel (0) target = $region9
  $region8: #{autoencoder_forward.11} parent=0 // pred_region
    _
  $region9: #{autoencoder_forward.11} parent=0 // pred_fallthru
    _
  %v12 = vld [vmem:[%s0] sm:$0x1]
  %v13 = vld [vmem:[%s1] sm:$0xff]
  %v14 = vld [vmem:[%s1 + $0x8] sm:$0xff]
  %v15 = vld [vmem:[%s1 + $0x10] sm:$0xff]
  %v16 = vld [vmem:[%s1 + $0x18] sm:$0xff]
  %v17 = vld [vmem:[%s1 + $0x20] sm:$0xff]
  %v18 = vld [vmem:[%s1 + $0x28] sm:$0xff]
  %v19 = vld [vmem:[%s1 + $0x30] sm:$0xf]
  %v20 = vld [vmem:[%s1 + $0x34] sm:$0xff]
  %v21 = vld [vmem:[%s1 + $0x3c] sm:$0xff]
  %v22 = vld [vmem:[%s1 + $0x44] sm:$0xff]
  %v23 = vld [vmem:[%s1 + $0x4c] sm:$0xff]
  %v24 = vld [vmem:[%s1 + $0x54] sm:$0xff]
  %v25 = vld [vmem:[%s1 + $0x5c] sm:$0xff]
  %v26 = vld [vmem:[%s1 + $0x64] sm:$0xf]
  %v27 = vld [vmem:[%s1 + $0x68] sm:$0xff]
  %v28 = vld [vmem:[%s1 + $0x70] sm:$0xff]
  %v29 = vld [vmem:[%s1 + $0x78] sm:$0xff]
  %v30 = vld [vmem:[%s1 + $0x80] sm:$0xff]
  %v31 = vld [vmem:[%s1 + $0x88] sm:$0xff]
  %v32 = vld [vmem:[%s1 + $0x90] sm:$0xff]
  %v33 = vld [vmem:[%s1 + $0x98] sm:$0xf]
  %v34 = vld [vmem:[%s1 + $0x9c] sm:$0xff]
  %v35 = vld [vmem:[%s1 + $0xa4] sm:$0xff]
  %v36 = vld [vmem:[%s1 + $0xac] sm:$0xff]
  %v37 = vld [vmem:[%s1 + $0xb4] sm:$0xff]
  %v38 = vld [vmem:[%s1 + $0xbc] sm:$0xff]
  %v39 = vld [vmem:[%s1 + $0xc4] sm:$0xff]
  %v40 = vld [vmem:[%s1 + $0xcc] sm:$0xf]
  %v41 = vld [vmem:[%s1 + $0xd0] sm:$0xff]
  %v42 = vld [vmem:[%s1 + $0xd8] sm:$0xff]
  %v43 = vld [vmem:[%s1 + $0xe0] sm:$0xff]
  %v44 = vld [vmem:[%s1 + $0xe8] sm:$0xff]
  %v45 = vld [vmem:[%s1 + $0xf0] sm:$0xff]
  %v46 = vld [vmem:[%s1 + $0xf8] sm:$0xff]
  %v47 = vld [vmem:[%s1 + $0x100] sm:$0xf]
  %v48 = vld [vmem:[%s1 + $0x104] sm:$0xff]
  %v49 = vld [vmem:[%s1 + $0x10c] sm:$0xff]
  %v50 = vld [vmem:[%s1 + $0x114] sm:$0xff]
  %v51 = vld [vmem:[%s1 + $0x11c] sm:$0xff]
  %v52 = vld [vmem:[%s1 + $0x124] sm:$0xff]
  %v53 = vld [vmem:[%s1 + $0x12c] sm:$0xff]
  %v54 = vld [vmem:[%s1 + $0x134] sm:$0xf]
  %v55 = vld [vmem:[%s1 + $0x138] sm:$0xff]
  %v56 = vld [vmem:[%s1 + $0x140] sm:$0xff]
  %v57 = vld [vmem:[%s1 + $0x148] sm:$0xff]
  %v58 = vld [vmem:[%s1 + $0x150] sm:$0xff]
  %v59 = vld [vmem:[%s1 + $0x158] sm:$0xff]
  %v60 = vld [vmem:[%s1 + $0x160] sm:$0xff]
  %v61 = vld [vmem:[%s1 + $0x168] sm:$0xf]
  %v62 = vld [vmem:[%s1 + $0x16c] sm:$0xff]
  %v63 = vld [vmem:[%s1 + $0x174] sm:$0xff]
  %v64 = vld [vmem:[%s1 + $0x17c] sm:$0xff]
  %v65 = vld [vmem:[%s1 + $0x184] sm:$0xff]
  %v66 = vld [vmem:[%s1 + $0x18c] sm:$0xff]
  %v67 = vld [vmem:[%s1 + $0x194] sm:$0xff]
  %v68 = vld [vmem:[%s1 + $0x19c] sm:$0xf]
  %v125 = vunpack.c.l.b16 %v13
  %v126 = vunpack.c.h.b16 %v13
  %v127 = vunpack.c.l.b16 %v14
  %v128 = vunpack.c.h.b16 %v14
  %v129 = vunpack.c.l.b16 %v15
  %v130 = vunpack.c.h.b16 %v15
  %v131 = vunpack.c.l.b16 %v16
  %v132 = vunpack.c.h.b16 %v16
  %v133 = vunpack.c.l.b16 %v17
  %v134 = vunpack.c.h.b16 %v17
  %v135 = vunpack.c.l.b16 %v18
  %v136 = vunpack.c.h.b16 %v18
  %v137 = vunpack.c.l.b16 %v19
  %v138 = vunpack.c.l.b16 %v20
  %v139 = vunpack.c.h.b16 %v20
  %v140 = vunpack.c.l.b16 %v21
  %v141 = vunpack.c.h.b16 %v21
  %v142 = vunpack.c.l.b16 %v22
  %v143 = vunpack.c.h.b16 %v22
  %v144 = vunpack.c.l.b16 %v23
  %v145 = vunpack.c.h.b16 %v23
  %v146 = vunpack.c.l.b16 %v24
  %v147 = vunpack.c.h.b16 %v24
  %v148 = vunpack.c.l.b16 %v25
  %v149 = vunpack.c.h.b16 %v25
  %v150 = vunpack.c.l.b16 %v26
  %v151 = vunpack.c.l.b16 %v27
  %v152 = vunpack.c.h.b16 %v27
  %v153 = vunpack.c.l.b16 %v28
  %v154 = vunpack.c.h.b16 %v28
  %v155 = vunpack.c.l.b16 %v29
  %v156 = vunpack.c.h.b16 %v29
  %v157 = vunpack.c.l.b16 %v30
  %v158 = vunpack.c.h.b16 %v30
  %v159 = vunpack.c.l.b16 %v31
  %v160 = vunpack.c.h.b16 %v31
  %v161 = vunpack.c.l.b16 %v32
  %v162 = vunpack.c.h.b16 %v32
  %v163 = vunpack.c.l.b16 %v33
  %v164 = vunpack.c.l.b16 %v34
  %v165 = vunpack.c.h.b16 %v34
  %v166 = vunpack.c.l.b16 %v35
  %v167 = vunpack.c.h.b16 %v35
  %v168 = vunpack.c.l.b16 %v36
  %v169 = vunpack.c.h.b16 %v36
  %v170 = vunpack.c.l.b16 %v37
  %v171 = vunpack.c.h.b16 %v37
  %v172 = vunpack.c.l.b16 %v38
  %v173 = vunpack.c.h.b16 %v38
  %v174 = vunpack.c.l.b16 %v39
  %v175 = vunpack.c.h.b16 %v39
  %v176 = vunpack.c.l.b16 %v40
  %v177 = vunpack.c.l.b16 %v41
  %v178 = vunpack.c.h.b16 %v41
  %v179 = vunpack.c.l.b16 %v42
  %v180 = vunpack.c.h.b16 %v42
  %v181 = vunpack.c.l.b16 %v43
  %v182 = vunpack.c.h.b16 %v43
  %v183 = vunpack.c.l.b16 %v44
  %v184 = vunpack.c.h.b16 %v44
  %v185 = vunpack.c.l.b16 %v45
  %v186 = vunpack.c.h.b16 %v45
  %v187 = vunpack.c.l.b16 %v46
  %v188 = vunpack.c.h.b16 %v46
  %v189 = vunpack.c.l.b16 %v47
  %v190 = vunpack.c.l.b16 %v48
  %v191 = vunpack.c.h.b16 %v48
  %v192 = vunpack.c.l.b16 %v49
  %v193 = vunpack.c.h.b16 %v49
  %v194 = vunpack.c.l.b16 %v50
  %v195 = vunpack.c.h.b16 %v50
  %v196 = vunpack.c.l.b16 %v51
  %v197 = vunpack.c.h.b16 %v51
  %v198 = vunpack.c.l.b16 %v52
  %v199 = vunpack.c.h.b16 %v52
  %v200 = vunpack.c.l.b16 %v53
  %v201 = vunpack.c.h.b16 %v53
  %v202 = vunpack.c.l.b16 %v54
  %v203 = vunpack.c.l.b16 %v55
  %v204 = vunpack.c.h.b16 %v55
  %v205 = vunpack.c.l.b16 %v56
  %v206 = vunpack.c.h.b16 %v56
  %v207 = vunpack.c.l.b16 %v57
  %v208 = vunpack.c.h.b16 %v57
  %v209 = vunpack.c.l.b16 %v58
  %v210 = vunpack.c.h.b16 %v58
  %v211 = vunpack.c.l.b16 %v59
  %v212 = vunpack.c.h.b16 %v59
  %v213 = vunpack.c.l.b16 %v60
  %v214 = vunpack.c.h.b16 %v60
  %v215 = vunpack.c.l.b16 %v61
  %v216 = vunpack.c.l.b16 %v62
  %v217 = vunpack.c.h.b16 %v62
  %v218 = vunpack.c.l.b16 %v63
  %v219 = vunpack.c.h.b16 %v63
  %v220 = vunpack.c.l.b16 %v64
  %v221 = vunpack.c.h.b16 %v64
  %v222 = vunpack.c.l.b16 %v65
  %v223 = vunpack.c.h.b16 %v65
  %v224 = vunpack.c.l.b16 %v66
  %v225 = vunpack.c.h.b16 %v66
  %v226 = vunpack.c.l.b16 %v67
  %v227 = vunpack.c.h.b16 %v67
  %v228 = vunpack.c.l.b16 %v68
  %v229 = vpack.c.b16 %v138, %v125
  %v230 = vpack.c.b16 %v139, %v126
  %v231 = vpack.c.b16 %v140, %v127
  %v232 = vpack.c.b16 %v141, %v128
  %v233 = vpack.c.b16 %v142, %v129
  %v234 = vpack.c.b16 %v143, %v130
  %v235 = vpack.c.b16 %v144, %v131
  %v236 = vpack.c.b16 %v145, %v132
  %v237 = vpack.c.b16 %v146, %v133
  %v238 = vpack.c.b16 %v147, %v134
  %v239 = vpack.c.b16 %v148, %v135
  %v240 = vpack.c.b16 %v149, %v136
  %v241 = vpack.c.b16 %v150, %v137
  %v242 = vpack.c.b16 %v164, %v151
  %v243 = vpack.c.b16 %v165, %v152
  %v244 = vpack.c.b16 %v166, %v153
  %v245 = vpack.c.b16 %v167, %v154
  %v246 = vpack.c.b16 %v168, %v155
  %v247 = vpack.c.b16 %v169, %v156
  %v248 = vpack.c.b16 %v170, %v157
  %v249 = vpack.c.b16 %v171, %v158
  %v250 = vpack.c.b16 %v172, %v159
  %v251 = vpack.c.b16 %v173, %v160
  %v252 = vpack.c.b16 %v174, %v161
  %v253 = vpack.c.b16 %v175, %v162
  %v254 = vpack.c.b16 %v176, %v163
  %v255 = vpack.c.b16 %v190, %v177
  %v256 = vpack.c.b16 %v191, %v178
  %v257 = vpack.c.b16 %v192, %v179
  %v258 = vpack.c.b16 %v193, %v180
  %v259 = vpack.c.b16 %v194, %v181
  %v260 = vpack.c.b16 %v195, %v182
  %v261 = vpack.c.b16 %v196, %v183
  %v262 = vpack.c.b16 %v197, %v184
  %v263 = vpack.c.b16 %v198, %v185
  %v264 = vpack.c.b16 %v199, %v186
  %v265 = vpack.c.b16 %v200, %v187
  %v266 = vpack.c.b16 %v201, %v188
  %v267 = vpack.c.b16 %v202, %v189
  %v268 = vpack.c.b16 %v216, %v203
  %v269 = vpack.c.b16 %v217, %v204
  %v270 = vpack.c.b16 %v218, %v205
  %v271 = vpack.c.b16 %v219, %v206
  %v272 = vpack.c.b16 %v220, %v207
  %v273 = vpack.c.b16 %v221, %v208
  %v274 = vpack.c.b16 %v222, %v209
  %v275 = vpack.c.b16 %v223, %v210
  %v276 = vpack.c.b16 %v224, %v211
  %v277 = vpack.c.b16 %v225, %v212
  %v278 = vpack.c.b16 %v226, %v213
  %v279 = vpack.c.b16 %v227, %v214
  %v280 = vpack.c.b16 %v228, %v215
  %vm333 = vcmask 523264
  %v335 = vsel %vm333, %v12, 0
  %337 = vmatprep.subr.bf16.mxu0 %v230
  %338 = vmatpush1.bf16.msra.mxu0 %v229
  %339 = vmatprep.subr.bf16.mxu0 %v243
  %340 = vmatpush1.bf16.msra.mxu0 %v242
  %341 = vmatprep.subr.bf16.mxu0 %v256
  %342 = vmatpush1.bf16.msra.mxu0 %v255
  %343 = vmatprep.subr.bf16.mxu0 %v269
  %344 = vmatpush1.bf16.msra.mxu0 %v268
  %345 = vmatprep.subr.bf16.mxu0 0
  %346 = vmatpush1.bf16.msra.mxu0 0
  %347 = vmatprep.subr.bf16.mxu0 0
  %348 = vmatpush1.bf16.msra.mxu0 0
  %349 = vmatprep.subr.bf16.mxu0 0
  %350 = vmatpush1.bf16.msra.mxu0 0
  %351 = vmatprep.subr.bf16.mxu0 0
  %352 = vmatpush1.bf16.msra.mxu0 0
  %353 = vmatprep.subr.bf16.mxu0 0
  %354 = vmatpush1.bf16.msra.mxu0 0
  %355 = vmatprep.subr.bf16.mxu0 0
  %356 = vmatpush1.bf16.msra.mxu0 0
  %357 = vmatprep.subr.bf16.mxu0 0
  %358 = vmatpush1.bf16.msra.mxu0 0
  %359 = vmatprep.subr.bf16.mxu0 0
  %360 = vmatpush1.bf16.msra.mxu0 0
  %361 = vmatprep.subr.bf16.mxu0 0
  %362 = vmatpush1.bf16.msra.mxu0 0
  %363 = vmatprep.subr.bf16.mxu0 0
  %364 = vmatpush1.bf16.msra.mxu0 0
  %365 = vmatprep.subr.bf16.mxu0 0
  %366 = vmatpush1.bf16.msra.mxu0 0
  %367 = vmatprep.subr.bf16.mxu0 0
  %368 = vmatpush1.bf16.msra.mxu0 0
  %369 = vmatprep.mubr.bf16.mxu0 0
  %370 = vmatmul.mubr.bf16.gmra.mrb[0].mxu0 %v335
  %v371 = vpop.f32.mrb[0].mxu0
  %v372 = vadd.f32 0.0, %v371
  %v373 = vpop.f32.mrb[0].mxu0
  %v374 = vadd.f32 0.0, %v373
  %v375 = vpop.f32.mrb[0].mxu0
  %v376 = vpop.f32.mrb[0].mxu0
  %377 = vdwg.mxu0
  %378 = vmatprep.subr.bf16.mxu0 %v232
  %379 = vmatpush1.bf16.msra.mxu0 %v231
  %380 = vmatprep.subr.bf16.mxu0 %v245
  %381 = vmatpush1.bf16.msra.mxu0 %v244
  %382 = vmatprep.subr.bf16.mxu0 %v258
  %383 = vmatpush1.bf16.msra.mxu0 %v257
  %384 = vmatprep.subr.bf16.mxu0 %v271
  %385 = vmatpush1.bf16.msra.mxu0 %v270
  %386 = vmatprep.subr.bf16.mxu0 0
  %387 = vmatpush1.bf16.msra.mxu0 0
  %388 = vmatprep.subr.bf16.mxu0 0
  %389 = vmatpush1.bf16.msra.mxu0 0
  %390 = vmatprep.subr.bf16.mxu0 0
  %391 = vmatpush1.bf16.msra.mxu0 0
  %392 = vmatprep.subr.bf16.mxu0 0
  %393 = vmatpush1.bf16.msra.mxu0 0
  %394 = vmatprep.subr.bf16.mxu0 0
  %395 = vmatpush1.bf16.msra.mxu0 0
  %396 = vmatprep.subr.bf16.mxu0 0
  %397 = vmatpush1.bf16.msra.mxu0 0
  %398 = vmatprep.subr.bf16.mxu0 0
  %399 = vmatpush1.bf16.msra.mxu0 0
  %400 = vmatprep.subr.bf16.mxu0 0
  %401 = vmatpush1.bf16.msra.mxu0 0
  %402 = vmatprep.subr.bf16.mxu0 0
  %403 = vmatpush1.bf16.msra.mxu0 0
  %404 = vmatprep.subr.bf16.mxu0 0
  %405 = vmatpush1.bf16.msra.mxu0 0
  %406 = vmatprep.subr.bf16.mxu0 0
  %407 = vmatpush1.bf16.msra.mxu0 0
  %408 = vmatprep.subr.bf16.mxu0 0
  %409 = vmatpush1.bf16.msra.mxu0 0
  %410 = vmatprep.mubr.bf16.mxu0 0
  %411 = vmatmul.mubr.bf16.gmra.mrb[0].mxu0 %v335
  %v412 = vpop.f32.mrb[0].mxu0
  %v413 = vadd.f32 0.0, %v412
  %v414 = vpop.f32.mrb[0].mxu0
  %v415 = vadd.f32 0.0, %v414
  %v416 = vpop.f32.mrb[0].mxu0
  %v417 = vpop.f32.mrb[0].mxu0
  %418 = vdwg.mxu0
  %419 = vmatprep.subr.bf16.mxu0 %v234
  %420 = vmatpush1.bf16.msra.mxu0 %v233
  %421 = vmatprep.subr.bf16.mxu0 %v247
  %422 = vmatpush1.bf16.msra.mxu0 %v246
  %423 = vmatprep.subr.bf16.mxu0 %v260
  %424 = vmatpush1.bf16.msra.mxu0 %v259
  %425 = vmatprep.subr.bf16.mxu0 %v273
  %426 = vmatpush1.bf16.msra.mxu0 %v272
  %427 = vmatprep.subr.bf16.mxu0 0
  %428 = vmatpush1.bf16.msra.mxu0 0
  %429 = vmatprep.subr.bf16.mxu0 0
  %430 = vmatpush1.bf16.msra.mxu0 0
  %431 = vmatprep.subr.bf16.mxu0 0
  %432 = vmatpush1.bf16.msra.mxu0 0
  %433 = vmatprep.subr.bf16.mxu0 0
  %434 = vmatpush1.bf16.msra.mxu0 0
  %435 = vmatprep.subr.bf16.mxu0 0
  %436 = vmatpush1.bf16.msra.mxu0 0
  %437 = vmatprep.subr.bf16.mxu0 0
  %438 = vmatpush1.bf16.msra.mxu0 0
  %439 = vmatprep.subr.bf16.mxu0 0
  %440 = vmatpush1.bf16.msra.mxu0 0
  %441 = vmatprep.subr.bf16.mxu0 0
  %442 = vmatpush1.bf16.msra.mxu0 0
  %443 = vmatprep.subr.bf16.mxu0 0
  %444 = vmatpush1.bf16.msra.mxu0 0
  %445 = vmatprep.subr.bf16.mxu0 0
  %446 = vmatpush1.bf16.msra.mxu0 0
  %447 = vmatprep.subr.bf16.mxu0 0
  %448 = vmatpush1.bf16.msra.mxu0 0
  %449 = vmatprep.subr.bf16.mxu0 0
  %450 = vmatpush1.bf16.msra.mxu0 0
  %451 = vmatprep.mubr.bf16.mxu0 0
  %452 = vmatmul.mubr.bf16.gmra.mrb[0].mxu0 %v335
  %v453 = vpop.f32.mrb[0].mxu0
  %v454 = vadd.f32 0.0, %v453
  %v455 = vpop.f32.mrb[0].mxu0
  %v456 = vadd.f32 0.0, %v455
  %v457 = vpop.f32.mrb[0].mxu0
  %v458 = vpop.f32.mrb[0].mxu0
  %459 = vdwg.mxu0
  %460 = vmatprep.subr.bf16.mxu0 %v236
  %461 = vmatpush1.bf16.msra.mxu0 %v235
  %462 = vmatprep.subr.bf16.mxu0 %v249
  %463 = vmatpush1.bf16.msra.mxu0 %v248
  %464 = vmatprep.subr.bf16.mxu0 %v262
  %465 = vmatpush1.bf16.msra.mxu0 %v261
  %466 = vmatprep.subr.bf16.mxu0 %v275
  %467 = vmatpush1.bf16.msra.mxu0 %v274
  %468 = vmatprep.subr.bf16.mxu0 0
  %469 = vmatpush1.bf16.msra.mxu0 0
  %470 = vmatprep.subr.bf16.mxu0 0
  %471 = vmatpush1.bf16.msra.mxu0 0
  %472 = vmatprep.subr.bf16.mxu0 0
  %473 = vmatpush1.bf16.msra.mxu0 0
  %474 = vmatprep.subr.bf16.mxu0 0
  %475 = vmatpush1.bf16.msra.mxu0 0
  %476 = vmatprep.subr.bf16.mxu0 0
  %477 = vmatpush1.bf16.msra.mxu0 0
  %478 = vmatprep.subr.bf16.mxu0 0
  %479 = vmatpush1.bf16.msra.mxu0 0
  %480 = vmatprep.subr.bf16.mxu0 0
  %481 = vmatpush1.bf16.msra.mxu0 0
  %482 = vmatprep.subr.bf16.mxu0 0
  %483 = vmatpush1.bf16.msra.mxu0 0
  %484 = vmatprep.subr.bf16.mxu0 0
  %485 = vmatpush1.bf16.msra.mxu0 0
  %486 = vmatprep.subr.bf16.mxu0 0
  %487 = vmatpush1.bf16.msra.mxu0 0
  %488 = vmatprep.subr.bf16.mxu0 0
  %489 = vmatpush1.bf16.msra.mxu0 0
  %490 = vmatprep.subr.bf16.mxu0 0
  %491 = vmatpush1.bf16.msra.mxu0 0
  %492 = vmatprep.mubr.bf16.mxu0 0
  %493 = vmatmul.mubr.bf16.gmra.mrb[0].mxu0 %v335
  %v494 = vpop.f32.mrb[0].mxu0
  %v495 = vadd.f32 0.0, %v494
  %v496 = vpop.f32.mrb[0].mxu0
  %v497 = vadd.f32 0.0, %v496
  %v498 = vpop.f32.mrb[0].mxu0
  %v499 = vpop.f32.mrb[0].mxu0
  %500 = vdwg.mxu0
  %501 = vmatprep.subr.bf16.mxu0 %v238
  %502 = vmatpush1.bf16.msra.mxu0 %v237
  %503 = vmatprep.subr.bf16.mxu0 %v251
  %504 = vmatpush1.bf16.msra.mxu0 %v250
  %505 = vmatprep.subr.bf16.mxu0 %v264
  %506 = vmatpush1.bf16.msra.mxu0 %v263
  %507 = vmatprep.subr.bf16.mxu0 %v277
  %508 = vmatpush1.bf16.msra.mxu0 %v276
  %509 = vmatprep.subr.bf16.mxu0 0
  %510 = vmatpush1.bf16.msra.mxu0 0
  %511 = vmatprep.subr.bf16.mxu0 0
  %512 = vmatpush1.bf16.msra.mxu0 0
  %513 = vmatprep.subr.bf16.mxu0 0
  %514 = vmatpush1.bf16.msra.mxu0 0
  %515 = vmatprep.subr.bf16.mxu0 0
  %516 = vmatpush1.bf16.msra.mxu0 0
  %517 = vmatprep.subr.bf16.mxu0 0
  %518 = vmatpush1.bf16.msra.mxu0 0
  %519 = vmatprep.subr.bf16.mxu0 0
  %520 = vmatpush1.bf16.msra.mxu0 0
  %521 = vmatprep.subr.bf16.mxu0 0
  %522 = vmatpush1.bf16.msra.mxu0 0
  %523 = vmatprep.subr.bf16.mxu0 0
  %524 = vmatpush1.bf16.msra.mxu0 0
  %525 = vmatprep.subr.bf16.mxu0 0
  %526 = vmatpush1.bf16.msra.mxu0 0
  %527 = vmatprep.subr.bf16.mxu0 0
  %528 = vmatpush1.bf16.msra.mxu0 0
  %529 = vmatprep.subr.bf16.mxu0 0
  %530 = vmatpush1.bf16.msra.mxu0 0
  %531 = vmatprep.subr.bf16.mxu0 0
  %532 = vmatpush1.bf16.msra.mxu0 0
  %533 = vmatprep.mubr.bf16.mxu0 0
  %534 = vmatmul.mubr.bf16.gmra.mrb[0].mxu0 %v335
  %v535 = vpop.f32.mrb[0].mxu0
  %v536 = vadd.f32 0.0, %v535
  %v537 = vpop.f32.mrb[0].mxu0
  %v538 = vadd.f32 0.0, %v537
  %v539 = vpop.f32.mrb[0].mxu0
  %v540 = vpop.f32.mrb[0].mxu0
  %541 = vdwg.mxu0
  %542 = vmatprep.subr.bf16.mxu0 %v240
  %543 = vmatpush1.bf16.msra.mxu0 %v239
  %544 = vmatprep.subr.bf16.mxu0 %v253
  %545 = vmatpush1.bf16.msra.mxu0 %v252
  %546 = vmatprep.subr.bf16.mxu0 %v266
  %547 = vmatpush1.bf16.msra.mxu0 %v265
  %548 = vmatprep.subr.bf16.mxu0 %v279
  %549 = vmatpush1.bf16.msra.mxu0 %v278
  %550 = vmatprep.subr.bf16.mxu0 0
  %551 = vmatpush1.bf16.msra.mxu0 0
  %552 = vmatprep.subr.bf16.mxu0 0
  %553 = vmatpush1.bf16.msra.mxu0 0
  %554 = vmatprep.subr.bf16.mxu0 0
  %555 = vmatpush1.bf16.msra.mxu0 0
  %556 = vmatprep.subr.bf16.mxu0 0
  %557 = vmatpush1.bf16.msra.mxu0 0
  %558 = vmatprep.subr.bf16.mxu0 0
  %559 = vmatpush1.bf16.msra.mxu0 0
  %560 = vmatprep.subr.bf16.mxu0 0
  %561 = vmatpush1.bf16.msra.mxu0 0
  %562 = vmatprep.subr.bf16.mxu0 0
  %563 = vmatpush1.bf16.msra.mxu0 0
  %564 = vmatprep.subr.bf16.mxu0 0
  %565 = vmatpush1.bf16.msra.mxu0 0
  %566 = vmatprep.subr.bf16.mxu0 0
  %567 = vmatpush1.bf16.msra.mxu0 0
  %568 = vmatprep.subr.bf16.mxu0 0
  %569 = vmatpush1.bf16.msra.mxu0 0
  %570 = vmatprep.subr.bf16.mxu0 0
  %571 = vmatpush1.bf16.msra.mxu0 0
  %572 = vmatprep.subr.bf16.mxu0 0
  %573 = vmatpush1.bf16.msra.mxu0 0
  %574 = vmatprep.mubr.bf16.mxu0 0
  %575 = vmatmul.mubr.bf16.gmra.mrb[0].mxu0 %v335
  %v576 = vpop.f32.mrb[0].mxu0
  %v577 = vadd.f32 0.0, %v576
  %v578 = vpop.f32.mrb[0].mxu0
  %v579 = vadd.f32 0.0, %v578
  %v580 = vpop.f32.mrb[0].mxu0
  %v581 = vpop.f32.mrb[0].mxu0
  %582 = vdwg.mxu0
  %583 = vmatprep.subr.bf16.mxu0 0
  %584 = vmatpush1.bf16.msra.mxu0 %v241
  %585 = vmatprep.subr.bf16.mxu0 0
  %586 = vmatpush1.bf16.msra.mxu0 %v254
  %587 = vmatprep.subr.bf16.mxu0 0
  %588 = vmatpush1.bf16.msra.mxu0 %v267
  %589 = vmatprep.subr.bf16.mxu0 0
  %590 = vmatpush1.bf16.msra.mxu0 %v280
  %591 = vmatprep.subr.bf16.mxu0 0
  %592 = vmatpush1.bf16.msra.mxu0 0
  %593 = vmatprep.subr.bf16.mxu0 0
  %594 = vmatpush1.bf16.msra.mxu0 0
  %595 = vmatprep.subr.bf16.mxu0 0
  %596 = vmatpush1.bf16.msra.mxu0 0
  %597 = vmatprep.subr.bf16.mxu0 0
  %598 = vmatpush1.bf16.msra.mxu0 0
  %599 = vmatprep.subr.bf16.mxu0 0
  %600 = vmatpush1.bf16.msra.mxu0 0
  %601 = vmatprep.subr.bf16.mxu0 0
  %602 = vmatpush1.bf16.msra.mxu0 0
  %603 = vmatprep.subr.bf16.mxu0 0
  %604 = vmatpush1.bf16.msra.mxu0 0
  %605 = vmatprep.subr.bf16.mxu0 0
  %606 = vmatpush1.bf16.msra.mxu0 0
  %607 = vmatprep.subr.bf16.mxu0 0
  %608 = vmatpush1.bf16.msra.mxu0 0
  %609 = vmatprep.subr.bf16.mxu0 0
  %610 = vmatpush1.bf16.msra.mxu0 0
  %611 = vmatprep.subr.bf16.mxu0 0
  %612 = vmatpush1.bf16.msra.mxu0 0
  %613 = vmatprep.subr.bf16.mxu0 0
  %614 = vmatpush1.bf16.msra.mxu0 0
  %615 = vmatprep.mubr.bf16.mxu0 0
  %616 = vmatmul.mubr.bf16.gmra.mrb[0].mxu0 %v335
  %v617 = vpop.f32.mrb[0].mxu0
  %v618 = vadd.f32 0.0, %v617
  %v619 = vpop.f32.mrb[0].mxu0
  %v620 = vpop.f32.mrb[0].mxu0
  %v621 = vpop.f32.mrb[0].mxu0
  %622 = vdwg.mxu0
  %v623 = vtanh.pop %v372
  %v624 = vtanh.pop %v374
  %v625 = vtanh.pop %v413
  %v626 = vtanh.pop %v415
  %v627 = vtanh.pop %v454
  %v628 = vtanh.pop %v456
  %v629 = vtanh.pop %v495
  %v630 = vtanh.pop %v497
  %v631 = vtanh.pop %v536
  %v632 = vtanh.pop %v538
  %v633 = vtanh.pop %v577
  %v634 = vtanh.pop %v579
  %v635 = vtanh.pop %v618
  %v649 = vcombine.low %v623, %v624
  %v650 = vcombine.low %v625, %v626
  %v651 = vcombine.low %v627, %v628
  %v652 = vcombine.low %v629, %v630
  %v654 = vunpack.c.l.s4 1966171168
  %v655 = vunpack.c.0.s8 %v654
  %v656 = vlaneseq
  %v657 = vshrl.u32 %v656, 7
  %v658 = vsub.s32 %v655, %v657
  %v659 = vrot.slane %v649, %v658
  %v661 = vunpack.c.l.s4 1966171168
  %v662 = vunpack.c.0.s8 %v661
  %v663 = vlaneseq
  %v664 = vshrl.u32 %v663, 7
  %v665 = vsub.s32 %v662, %v664
  %v666 = vrot.slane %v650, %v665
  %v668 = vunpack.c.l.s4 1966171168
  %v669 = vunpack.c.0.s8 %v668
  %v670 = vlaneseq
  %v671 = vshrl.u32 %v670, 7
  %v672 = vsub.s32 %v669, %v671
  %v673 = vrot.slane %v651, %v672
  %v675 = vunpack.c.l.s4 1966171168
  %v676 = vunpack.c.0.s8 %v675
  %v677 = vlaneseq
  %v678 = vshrl.u32 %v677, 7
  %v679 = vsub.s32 %v676, %v678
  %v680 = vrot.slane %v652, %v679
  %v681 = vcombine.low %v659, %v666
  %v682 = vcombine.low %v673, %v680
  %v684 = vunpack.c.l.s4 1966171168
  %v685 = vunpack.c.0.s8 %v684
  %v686 = vlaneseq
  %v687 = vshrl.u32 %v686, 7
  %v688 = vsub.s32 %v685, %v687
  %v689 = vrot.slane %v681, %v688
  %v691 = vunpack.c.l.s4 1966171168
  %v692 = vunpack.c.0.s8 %v691
  %v693 = vlaneseq
  %v694 = vshrl.u32 %v693, 7
  %v695 = vsub.s32 %v692, %v694
  %v696 = vrot.slane %v682, %v695
  %v697 = vcombine.low %v689, %v696
  %v698 = vcombine.low %v631, %v632
  %v699 = vcombine.low %v633, %v634
  %v701 = vunpack.c.l.s4 1966171168
  %v702 = vunpack.c.0.s8 %v701
  %v703 = vlaneseq
  %v704 = vshrl.u32 %v703, 7
  %v705 = vsub.s32 %v702, %v704
  %v706 = vrot.slane %v698, %v705
  %v708 = vunpack.c.l.s4 1966171168
  %v709 = vunpack.c.0.s8 %v708
  %v710 = vlaneseq
  %v711 = vshrl.u32 %v710, 7
  %v712 = vsub.s32 %v709, %v711
  %v713 = vrot.slane %v699, %v712
  %v715 = vunpack.c.l.s4 1966171168
  %v716 = vunpack.c.0.s8 %v715
  %v717 = vlaneseq
  %v718 = vshrl.u32 %v717, 7
  %v719 = vsub.s32 %v716, %v718
  %v720 = vrot.slane %v635, %v719
  %v721 = vcombine.low %v706, %v713
  %v723 = vunpack.c.l.s4 1966171168
  %v724 = vunpack.c.0.s8 %v723
  %v725 = vlaneseq
  %v726 = vshrl.u32 %v725, 7
  %v727 = vsub.s32 %v724, %v726
  %v728 = vrot.slane %v721, %v727
  %v730 = vunpack.c.l.s4 1966171168
  %v731 = vunpack.c.0.s8 %v730
  %v732 = vlaneseq
  %v733 = vshrl.u32 %v732, 7
  %v734 = vsub.s32 %v731, %v733
  %v735 = vrot.slane %v720, %v734
  %v736 = vcombine.low %v728, %v735
  %739 = vst [vmem:[%s2] sm:$0xff] %v697
  %v740 = vlaneseq
  %vm741 = vcmp.ge.s32.totalorder %v740, 0
  %vm742 = vcmp.lt.s32.totalorder %v740, 544
  %vm743 = vmand %vm741, %vm742
  %744 = vst.msk [vmem:[%s2 + $0x8] sm:$0x1f] %vm743, %v736
  // Predicated region
  $region10: #{autoencoder_forward.11} parent=0 // pred_check
    _
  $region11: #{autoencoder_forward.11} parent=0 // pred_check_branch
    %746 = sbr.rel (0) target = $region13
  $region12: #{autoencoder_forward.11} parent=0 // pred_region
    _
  $region13: #{autoencoder_forward.11} parent=0 // pred_fallthru
    _
  // Predicated region
  $region14: #{autoencoder_forward.11} parent=0 // pred_check
    _
  $region15: #{autoencoder_forward.11} parent=0 // pred_check_branch
    %748 = sbr.rel (0) target = $region17
  $region16: #{autoencoder_forward.11} parent=0 // pred_region
    _
  $region17: #{autoencoder_forward.11} parent=0 // pred_fallthru
    _

</llo_original>
